<compile_context>
chip_gen: v6e
topology: v6e:2x2x1
jax: 0.10.0
libtpu: 0.0.40
codegen_flags: <defaults>
</compile_context>

<pallas_src>
import math
import jax
import jax.numpy as jnp
from jax.experimental import pallas as pl
from jax.experimental.pallas import tpu as pltpu

# ---------------- synthetic "bert_config" + module hyper-params ----------------
VOCAB, MAX_POS, TYPE_VOCAB = 100, 16, 2
HIDDEN, N_HEADS, FFN, N_LAYERS = 32, 2, 64, 2
HEAD_DIM = HIDDEN // N_HEADS
DESIGN_DIM, MLP_HIDDEN = 10, 50          # design_dim=10, hidden_dim=50, hidden_layers=2
LN_EPS = 1e-12

_VMEM = pl.BlockSpec(memory_space=pltpu.MemorySpace.VMEM)


# ------------------------------- in-kernel helpers -------------------------------
def _layernorm(x, g, b):
    mu = jnp.mean(x, axis=-1, keepdims=True)
    var = jnp.mean((x - mu) ** 2, axis=-1, keepdims=True)
    return (x - mu) * jax.lax.rsqrt(var + LN_EPS) * g + b


def _gelu(y):
    # tanh-approx GELU (HF BERT uses erf-GELU; tanh approx used for TPU lowering)
    return 0.5 * y * (1.0 + jnp.tanh(0.7978845608028654 * (y + 0.044715 * y * y * y)))


# ------------------------------ fused forward kernel ------------------------------
def _fused_forward(B, S):
    BS = B * S
    scale = 1.0 / math.sqrt(HEAD_DIM)

    def kernel(emb_ref, mask_ref, design_ref,
               eg_ref, eb_ref,
               wqkv_ref, bqkv_ref, wo_ref, bo_ref, ln1g_ref, ln1b_ref,
               wf1_ref, bf1_ref, wf2_ref, bf2_ref, ln2g_ref, ln2b_ref,
               hw1_ref, hb1_ref, hw2_ref, hb2_ref, wfb_ref, wfm_ref, bfin_ref,
               o_ref):
        # embedding LayerNorm
        x = _layernorm(emb_ref[...], eg_ref[...], eb_ref[...])            # (BS, H)
        # additive attention-mask bias, broadcast over heads / query rows
        bias = (1.0 - mask_ref[...]) * -1e9                               # (B, 1, S)

        for l in range(N_LAYERS):                                          # static unroll
            # ---- self-attention: fused QKV projection (one lane-denser (H,3H) matmul) ----
            qkv = jnp.dot(x, wqkv_ref[l], preferred_element_type=jnp.float32) + bqkv_ref[l]
            wol = wo_ref[l]                                                 # (H, H)
            attn_out = jnp.zeros((BS, HIDDEN), jnp.float32)
            for h in range(N_HEADS):                                        # static unroll
                lo = h * HEAD_DIM
                qh = qkv[:, lo:lo + HEAD_DIM].reshape(B, S, HEAD_DIM)
                kh = qkv[:, HIDDEN + lo:HIDDEN + lo + HEAD_DIM].reshape(B, S, HEAD_DIM)
                vh = qkv[:, 2 * HIDDEN + lo:2 * HIDDEN + lo + HEAD_DIM].reshape(B, S, HEAD_DIM)
                # contraction expressed to the MXU directly (no explicit kv.T)
                s = jnp.einsum('bqd,bkd->bqk', qh, kh,
                               preferred_element_type=jnp.float32) * scale + bias
                s = s - jnp.max(s, axis=-1, keepdims=True)
                p = jnp.exp(s)
                p = p * pl.reciprocal(jnp.sum(p, axis=-1, keepdims=True), approx=True)
                ctxh = jnp.einsum('bqk,bkd->bqd', p, vh,
                                  preferred_element_type=jnp.float32)       # (B, S, dh)
                # per-head output projection accumulated against the matching Wo row-slice
                attn_out = attn_out + jnp.dot(ctxh.reshape(BS, HEAD_DIM),
                                              wol[lo:lo + HEAD_DIM, :],
                                              preferred_element_type=jnp.float32)
            attn_out = attn_out + bo_ref[l]
            x = _layernorm(x + attn_out, ln1g_ref[l], ln1b_ref[l])

            # ---- FFN: Linear -> GELU -> Linear -> residual -> LayerNorm ----
            hdn = _gelu(jnp.dot(x, wf1_ref[l], preferred_element_type=jnp.float32) + bf1_ref[l])
            ffn = jnp.dot(hdn, wf2_ref[l], preferred_element_type=jnp.float32) + bf2_ref[l]
            x = _layernorm(x + ffn, ln2g_ref[l], ln2b_ref[l])

        # ---- head: CLS gather (one-hot matmul) + design-var MLP + final linear ----
        col = jax.lax.broadcasted_iota(jnp.int32, (B, BS), 1)
        row = jax.lax.broadcasted_iota(jnp.int32, (B, BS), 0)
        sel = (col == row * S).astype(jnp.float32)                          # picks rows b*S
        cls_tok = jnp.dot(sel, x, preferred_element_type=jnp.float32)       # (B, H)

        hm = jnp.dot(design_ref[...], hw1_ref[...],
                     preferred_element_type=jnp.float32) + hb1_ref[...]
        hm = jnp.maximum(hm, 0.0)
        hm = jnp.dot(hm, hw2_ref[...], preferred_element_type=jnp.float32) + hb2_ref[...]
        # final(cat([cls, mlp_out])) == cls @ Wf[:H] + mlp_out @ Wf[H:] + bf
        o_ref[...] = (jnp.dot(cls_tok, wfb_ref[...], preferred_element_type=jnp.float32)
                      + jnp.dot(hm, wfm_ref[...], preferred_element_type=jnp.float32)
                      + bfin_ref[...])

    return pl.pallas_call(
        kernel,
        out_shape=jax.ShapeDtypeStruct((B, 1), jnp.float32),
        in_specs=[_VMEM] * 24,
        out_specs=_VMEM,
    )


# -------------------------------- model assembly --------------------------------
def sequence_classification_forward(params, input_ids, attention_mask, design_var,
                                     token_type_ids=None):
    B, S = input_ids.shape
    if token_type_ids is None:
        token_type_ids = jnp.zeros_like(input_ids)

    # embedding-table gathers stay as XLA glue (int gather); everything downstream is one kernel
    emb = (params["word_emb"][input_ids]
           + params["pos_emb"][None, :S, :]
           + params["type_emb"][token_type_ids]).reshape(B * S, HIDDEN)
    mask3 = attention_mask.astype(jnp.float32).reshape(B, 1, S)

    hp = params["head"]
    out = _fused_forward(B, S)(
        emb, mask3, design_var.astype(jnp.float32),
        params["emb_ln_g"], params["emb_ln_b"],
        params["wqkv"], params["bqkv"], params["wo"], params["bo"],
        params["ln1_g"], params["ln1_b"],
        params["w_ffn1"], params["b_ffn1"], params["w_ffn2"], params["b_ffn2"],
        params["ln2_g"], params["ln2_b"],
        hp["w1"], hp["b1"], hp["w2"], hp["b2"],
        hp["wf_bert"], hp["wf_mlp"], hp["bf"])
    return out[:, 0]                           # final(...)[:, 0] -> shape (B,)


# --------------------------- deterministic parameters ---------------------------
def init_params(key):
    keys = iter(jax.random.split(key, 32))
    nrm = lambda shape: jax.random.normal(next(keys), shape, jnp.float32) * 0.02
    L = N_LAYERS
    params = {
        "word_emb": nrm((VOCAB, HIDDEN)),
        "pos_emb": nrm((MAX_POS, HIDDEN)),
        "type_emb": nrm((TYPE_VOCAB, HIDDEN)),
        "emb_ln_g": jnp.ones((1, HIDDEN), jnp.float32),
        "emb_ln_b": jnp.zeros((1, HIDDEN), jnp.float32),
        # per-layer weights stacked along a leading layer axis (static in-kernel indexing)
        "wqkv": nrm((L, HIDDEN, 3 * HIDDEN)),
        "bqkv": jnp.zeros((L, 1, 3 * HIDDEN), jnp.float32),
        "wo": nrm((L, HIDDEN, HIDDEN)),
        "bo": jnp.zeros((L, 1, HIDDEN), jnp.float32),
        "ln1_g": jnp.ones((L, 1, HIDDEN), jnp.float32),
        "ln1_b": jnp.zeros((L, 1, HIDDEN), jnp.float32),
        "w_ffn1": nrm((L, HIDDEN, FFN)),
        "b_ffn1": jnp.zeros((L, 1, FFN), jnp.float32),
        "w_ffn2": nrm((L, FFN, HIDDEN)),
        "b_ffn2": jnp.zeros((L, 1, HIDDEN), jnp.float32),
        "ln2_g": jnp.ones((L, 1, HIDDEN), jnp.float32),
        "ln2_b": jnp.zeros((L, 1, HIDDEN), jnp.float32),
        "head": {
            "w1": nrm((DESIGN_DIM, MLP_HIDDEN)), "b1": jnp.zeros((1, MLP_HIDDEN), jnp.float32),
            "w2": nrm((MLP_HIDDEN, MLP_HIDDEN)), "b2": jnp.zeros((1, MLP_HIDDEN), jnp.float32),
            "wf_bert": nrm((HIDDEN, 1)),
            "wf_mlp": nrm((MLP_HIDDEN, 1)),
            "bf": jnp.zeros((1, 1), jnp.float32),
        },
    }
    return params


# ------------------------------------- main -------------------------------------
if __name__ == "__main__":
    key = jax.random.PRNGKey(0)
    k_param, k_ids, k_design = jax.random.split(key, 3)

    B, S = 2, 8
    params = init_params(k_param)
    input_ids = jax.random.randint(k_ids, (B, S), 0, VOCAB, dtype=jnp.int32)
    # example 0 fully attended, example 1 has the last 2 tokens masked out
    attention_mask = (jnp.arange(S)[None, :] < jnp.array([S, S - 2])[:, None]).astype(jnp.float32)
    design_var = jax.random.normal(k_design, (B, DESIGN_DIM), jnp.float32)

    out = sequence_classification_forward(params, input_ids, attention_mask, design_var)
    jax.block_until_ready(out)
    assert out.shape == (B,) and out.dtype == jnp.float32
    print("KERNEL_OK")
</pallas_src>

<mosaic_0001>
module attributes {stable_mosaic.version = 11 : i64} {
  func.func @kernel(%arg0: memref<16x32xf32, #tpu.memory_space<vmem>>, %arg1: memref<2x1x8xf32, #tpu.memory_space<vmem>>, %arg2: memref<2x10xf32, #tpu.memory_space<vmem>>, %arg3: memref<1x32xf32, #tpu.memory_space<vmem>>, %arg4: memref<1x32xf32, #tpu.memory_space<vmem>>, %arg5: memref<2x32x96xf32, #tpu.memory_space<vmem>>, %arg6: memref<2x1x96xf32, #tpu.memory_space<vmem>>, %arg7: memref<2x32x32xf32, #tpu.memory_space<vmem>>, %arg8: memref<2x1x32xf32, #tpu.memory_space<vmem>>, %arg9: memref<2x1x32xf32, #tpu.memory_space<vmem>>, %arg10: memref<2x1x32xf32, #tpu.memory_space<vmem>>, %arg11: memref<2x32x64xf32, #tpu.memory_space<vmem>>, %arg12: memref<2x1x64xf32, #tpu.memory_space<vmem>>, %arg13: memref<2x64x32xf32, #tpu.memory_space<vmem>>, %arg14: memref<2x1x32xf32, #tpu.memory_space<vmem>>, %arg15: memref<2x1x32xf32, #tpu.memory_space<vmem>>, %arg16: memref<2x1x32xf32, #tpu.memory_space<vmem>>, %arg17: memref<10x50xf32, #tpu.memory_space<vmem>>, %arg18: memref<1x50xf32, #tpu.memory_space<vmem>>, %arg19: memref<50x50xf32, #tpu.memory_space<vmem>>, %arg20: memref<1x50xf32, #tpu.memory_space<vmem>>, %arg21: memref<32x1xf32, #tpu.memory_space<vmem>>, %arg22: memref<50x1xf32, #tpu.memory_space<vmem>>, %arg23: memref<1x1xf32, #tpu.memory_space<vmem>>, %arg24: memref<2x1xf32, #tpu.memory_space<vmem>>) attributes {dimension_semantics = [], scalar_prefetch = 0 : i64, scratch_operands = 0 : i64, tpu.core_type = #tpu.core_type<tc>} {
    %c0 = arith.constant 0 : index
    %c0_0 = arith.constant 0 : index
    %0 = vector.load %arg0[%c0, %c0_0] : memref<16x32xf32, #tpu.memory_space<vmem>>, vector<16x32xf32>
    %c0_1 = arith.constant 0 : index
    %c0_2 = arith.constant 0 : index
    %1 = vector.load %arg3[%c0_1, %c0_2] : memref<1x32xf32, #tpu.memory_space<vmem>>, vector<1x32xf32>
    %c0_3 = arith.constant 0 : index
    %c0_4 = arith.constant 0 : index
    %2 = vector.load %arg4[%c0_3, %c0_4] : memref<1x32xf32, #tpu.memory_space<vmem>>, vector<1x32xf32>
    %cst = arith.constant dense<0.000000e+00> : vector<16xf32>
    %3 = vector.multi_reduction <add>, %0, %cst [1] : vector<16x32xf32> to vector<16xf32>
    %4 = vector.shape_cast %3 : vector<16xf32> to vector<16x1xf32>
    %cst_5 = arith.constant 3.200000e+01 : f32
    %5 = vector.broadcast %cst_5 : f32 to vector<16x1xf32>
    %6 = arith.divf %4, %5 : vector<16x1xf32>
    %7 = vector.broadcast %6 : vector<16x1xf32> to vector<16x32xf32>
    %8 = arith.subf %0, %7 : vector<16x32xf32>
    %9 = arith.mulf %8, %8 : vector<16x32xf32>
    %cst_6 = arith.constant dense<0.000000e+00> : vector<16xf32>
    %10 = vector.multi_reduction <add>, %9, %cst_6 [1] : vector<16x32xf32> to vector<16xf32>
    %11 = vector.shape_cast %10 : vector<16xf32> to vector<16x1xf32>
    %cst_7 = arith.constant 3.200000e+01 : f32
    %12 = vector.broadcast %cst_7 : f32 to vector<16x1xf32>
    %13 = arith.divf %11, %12 : vector<16x1xf32>
    %14 = vector.broadcast %6 : vector<16x1xf32> to vector<16x32xf32>
    %15 = arith.subf %0, %14 : vector<16x32xf32>
    %cst_8 = arith.constant 9.99999996E-13 : f32
    %16 = vector.broadcast %cst_8 : f32 to vector<16x1xf32>
    %17 = arith.addf %13, %16 : vector<16x1xf32>
    %18 = math.rsqrt %17 : vector<16x1xf32>
    %19 = vector.broadcast %18 : vector<16x1xf32> to vector<16x32xf32>
    %20 = arith.mulf %15, %19 : vector<16x32xf32>
    %21 = vector.broadcast %1 : vector<1x32xf32> to vector<16x32xf32>
    %22 = arith.mulf %20, %21 : vector<16x32xf32>
    %23 = vector.broadcast %2 : vector<1x32xf32> to vector<16x32xf32>
    %24 = arith.addf %22, %23 : vector<16x32xf32>
    %c0_9 = arith.constant 0 : index
    %c0_10 = arith.constant 0 : index
    %c0_11 = arith.constant 0 : index
    %25 = vector.load %arg1[%c0_9, %c0_10, %c0_11] : memref<2x1x8xf32, #tpu.memory_space<vmem>>, vector<2x1x8xf32>
    %cst_12 = arith.constant 1.000000e+00 : f32
    %26 = vector.broadcast %cst_12 : f32 to vector<2x1x8xf32>
    %27 = arith.subf %26, %25 : vector<2x1x8xf32>
    %cst_13 = arith.constant -1.000000e+09 : f32
    %28 = vector.broadcast %cst_13 : f32 to vector<2x1x8xf32>
    %29 = arith.mulf %27, %28 : vector<2x1x8xf32>
    %c0_14 = arith.constant 0 : index
    %c0_15 = arith.constant 0 : index
    %c0_16 = arith.constant 0 : index
    %30 = vector.load %arg5[%c0_14, %c0_15, %c0_16] : memref<2x32x96xf32, #tpu.memory_space<vmem>>, vector<1x32x96xf32>
    %31 = vector.shape_cast %30 : vector<1x32x96xf32> to vector<32x96xf32>
    %cst_17 = arith.constant dense<0.000000e+00> : vector<16x96xf32>
    %32 = tpu.matmul %24, %31, %cst_17 {dimension_numbers = #tpu.dot_dimension_numbers<[1], [0], [0], [1], [0, 0, 1, 1], [], []>} : vector<16x32xf32>, vector<32x96xf32>, vector<16x96xf32> -> vector<16x96xf32>
    %c0_18 = arith.constant 0 : index
    %c0_19 = arith.constant 0 : index
    %c0_20 = arith.constant 0 : index
    %33 = vector.load %arg6[%c0_18, %c0_19, %c0_20] : memref<2x1x96xf32, #tpu.memory_space<vmem>>, vector<1x1x96xf32>
    %34 = vector.shape_cast %33 : vector<1x1x96xf32> to vector<1x96xf32>
    %35 = vector.broadcast %34 : vector<1x96xf32> to vector<16x96xf32>
    %36 = arith.addf %32, %35 : vector<16x96xf32>
    %c0_21 = arith.constant 0 : index
    %c0_22 = arith.constant 0 : index
    %c0_23 = arith.constant 0 : index
    %37 = vector.load %arg7[%c0_21, %c0_22, %c0_23] : memref<2x32x32xf32, #tpu.memory_space<vmem>>, vector<1x32x32xf32>
    %38 = vector.shape_cast %37 : vector<1x32x32xf32> to vector<32x32xf32>
    %cst_24 = arith.constant 0.000000e+00 : f32
    %39 = vector.broadcast %cst_24 : f32 to vector<16x32xf32>
    %40 = vector.extract_strided_slice %36 {offsets = [0, 0], sizes = [16, 16], strides = [1, 1]} : vector<16x96xf32> to vector<16x16xf32>
    %41 = vector.shape_cast %40 : vector<16x16xf32> to vector<2x8x16xf32>
    %42 = vector.extract_strided_slice %36 {offsets = [0, 32], sizes = [16, 16], strides = [1, 1]} : vector<16x96xf32> to vector<16x16xf32>
    %43 = vector.shape_cast %42 : vector<16x16xf32> to vector<2x8x16xf32>
    %44 = vector.extract_strided_slice %36 {offsets = [0, 64], sizes = [16, 16], strides = [1, 1]} : vector<16x96xf32> to vector<16x16xf32>
    %45 = vector.shape_cast %44 : vector<16x16xf32> to vector<2x8x16xf32>
    "tpu.trace_start"() <{level = 10 : i32, message = "bqd,bkd->bqk"}> : () -> ()
    %cst_25 = arith.constant dense<0.000000e+00> : vector<2x8x8xf32>
    %46 = tpu.matmul %41, %43, %cst_25 {dimension_numbers = #tpu.dot_dimension_numbers<[2], [2], [1], [1], [0, 0, 0, 1, 1, 1], [0], [0]>} : vector<2x8x16xf32>, vector<2x8x16xf32>, vector<2x8x8xf32> -> vector<2x8x8xf32>
    "tpu.trace_stop"() : () -> ()
    %cst_26 = arith.constant 2.500000e-01 : f32
    %47 = vector.broadcast %cst_26 : f32 to vector<2x8x8xf32>
    %48 = arith.mulf %46, %47 : vector<2x8x8xf32>
    %49 = vector.broadcast %29 : vector<2x1x8xf32> to vector<2x8x8xf32>
    %50 = arith.addf %48, %49 : vector<2x8x8xf32>
    %cst_27 = arith.constant dense<0xFF800000> : vector<2x8xf32>
    %51 = vector.multi_reduction <maximumf>, %50, %cst_27 [2] : vector<2x8x8xf32> to vector<2x8xf32>
    %52 = vector.shape_cast %51 : vector<2x8xf32> to vector<2x8x1xf32>
    %53 = vector.broadcast %52 : vector<2x8x1xf32> to vector<2x8x8xf32>
    %54 = arith.subf %50, %53 : vector<2x8x8xf32>
    %55 = math.exp %54 : vector<2x8x8xf32>
    %cst_28 = arith.constant dense<0.000000e+00> : vector<2x8xf32>
    %56 = vector.multi_reduction <add>, %55, %cst_28 [2] : vector<2x8x8xf32> to vector<2x8xf32>
    %57 = vector.shape_cast %56 : vector<2x8xf32> to vector<2x8x1xf32>
    %58 = tpu.reciprocal %57 {approx = true} : vector<2x8x1xf32> -> vector<2x8x1xf32>
    %59 = vector.broadcast %58 : vector<2x8x1xf32> to vector<2x8x8xf32>
    %60 = arith.mulf %55, %59 : vector<2x8x8xf32>
    "tpu.trace_start"() <{level = 10 : i32, message = "bqk,bkd->bqd"}> : () -> ()
    %cst_29 = arith.constant dense<0.000000e+00> : vector<2x8x16xf32>
    %61 = tpu.matmul %60, %45, %cst_29 {dimension_numbers = #tpu.dot_dimension_numbers<[2], [1], [1], [2], [0, 0, 0, 1, 1, 2], [0], [0]>} : vector<2x8x8xf32>, vector<2x8x16xf32>, vector<2x8x16xf32> -> vector<2x8x16xf32>
    "tpu.trace_stop"() : () -> ()
    %62 = vector.shape_cast %61 : vector<2x8x16xf32> to vector<16x16xf32>
    %63 = vector.extract_strided_slice %38 {offsets = [0, 0], sizes = [16, 32], strides = [1, 1]} : vector<32x32xf32> to vector<16x32xf32>
    %cst_30 = arith.constant dense<0.000000e+00> : vector<16x32xf32>
    %64 = tpu.matmul %62, %63, %cst_30 {dimension_numbers = #tpu.dot_dimension_numbers<[1], [0], [0], [1], [0, 0, 1, 1], [], []>} : vector<16x16xf32>, vector<16x32xf32>, vector<16x32xf32> -> vector<16x32xf32>
    %65 = arith.addf %39, %64 : vector<16x32xf32>
    %66 = vector.extract_strided_slice %36 {offsets = [0, 16], sizes = [16, 16], strides = [1, 1]} : vector<16x96xf32> to vector<16x16xf32>
    %67 = vector.shape_cast %66 : vector<16x16xf32> to vector<2x8x16xf32>
    %68 = vector.extract_strided_slice %36 {offsets = [0, 48], sizes = [16, 16], strides = [1, 1]} : vector<16x96xf32> to vector<16x16xf32>
    %69 = vector.shape_cast %68 : vector<16x16xf32> to vector<2x8x16xf32>
    %70 = vector.extract_strided_slice %36 {offsets = [0, 80], sizes = [16, 16], strides = [1, 1]} : vector<16x96xf32> to vector<16x16xf32>
    %71 = vector.shape_cast %70 : vector<16x16xf32> to vector<2x8x16xf32>
    "tpu.trace_start"() <{level = 10 : i32, message = "bqd,bkd->bqk"}> : () -> ()
    %cst_31 = arith.constant dense<0.000000e+00> : vector<2x8x8xf32>
    %72 = tpu.matmul %67, %69, %cst_31 {dimension_numbers = #tpu.dot_dimension_numbers<[2], [2], [1], [1], [0, 0, 0, 1, 1, 1], [0], [0]>} : vector<2x8x16xf32>, vector<2x8x16xf32>, vector<2x8x8xf32> -> vector<2x8x8xf32>
    "tpu.trace_stop"() : () -> ()
    %cst_32 = arith.constant 2.500000e-01 : f32
    %73 = vector.broadcast %cst_32 : f32 to vector<2x8x8xf32>
    %74 = arith.mulf %72, %73 : vector<2x8x8xf32>
    %75 = vector.broadcast %29 : vector<2x1x8xf32> to vector<2x8x8xf32>
    %76 = arith.addf %74, %75 : vector<2x8x8xf32>
    %cst_33 = arith.constant dense<0xFF800000> : vector<2x8xf32>
    %77 = vector.multi_reduction <maximumf>, %76, %cst_33 [2] : vector<2x8x8xf32> to vector<2x8xf32>
    %78 = vector.shape_cast %77 : vector<2x8xf32> to vector<2x8x1xf32>
    %79 = vector.broadcast %78 : vector<2x8x1xf32> to vector<2x8x8xf32>
    %80 = arith.subf %76, %79 : vector<2x8x8xf32>
    %81 = math.exp %80 : vector<2x8x8xf32>
    %cst_34 = arith.constant dense<0.000000e+00> : vector<2x8xf32>
    %82 = vector.multi_reduction <add>, %81, %cst_34 [2] : vector<2x8x8xf32> to vector<2x8xf32>
    %83 = vector.shape_cast %82 : vector<2x8xf32> to vector<2x8x1xf32>
    %84 = tpu.reciprocal %83 {approx = true} : vector<2x8x1xf32> -> vector<2x8x1xf32>
    %85 = vector.broadcast %84 : vector<2x8x1xf32> to vector<2x8x8xf32>
    %86 = arith.mulf %81, %85 : vector<2x8x8xf32>
    "tpu.trace_start"() <{level = 10 : i32, message = "bqk,bkd->bqd"}> : () -> ()
    %cst_35 = arith.constant dense<0.000000e+00> : vector<2x8x16xf32>
    %87 = tpu.matmul %86, %71, %cst_35 {dimension_numbers = #tpu.dot_dimension_numbers<[2], [1], [1], [2], [0, 0, 0, 1, 1, 2], [0], [0]>} : vector<2x8x8xf32>, vector<2x8x16xf32>, vector<2x8x16xf32> -> vector<2x8x16xf32>
    "tpu.trace_stop"() : () -> ()
    %88 = vector.shape_cast %87 : vector<2x8x16xf32> to vector<16x16xf32>
    %89 = vector.extract_strided_slice %38 {offsets = [16, 0], sizes = [16, 32], strides = [1, 1]} : vector<32x32xf32> to vector<16x32xf32>
    %cst_36 = arith.constant dense<0.000000e+00> : vector<16x32xf32>
    %90 = tpu.matmul %88, %89, %cst_36 {dimension_numbers = #tpu.dot_dimension_numbers<[1], [0], [0], [1], [0, 0, 1, 1], [], []>} : vector<16x16xf32>, vector<16x32xf32>, vector<16x32xf32> -> vector<16x32xf32>
    %91 = arith.addf %65, %90 : vector<16x32xf32>
    %c0_37 = arith.constant 0 : index
    %c0_38 = arith.constant 0 : index
    %c0_39 = arith.constant 0 : index
    %92 = vector.load %arg8[%c0_37, %c0_38, %c0_39] : memref<2x1x32xf32, #tpu.memory_space<vmem>>, vector<1x1x32xf32>
    %93 = vector.shape_cast %92 : vector<1x1x32xf32> to vector<1x32xf32>
    %94 = vector.broadcast %93 : vector<1x32xf32> to vector<16x32xf32>
    %95 = arith.addf %91, %94 : vector<16x32xf32>
    %96 = arith.addf %24, %95 : vector<16x32xf32>
    %c0_40 = arith.constant 0 : index
    %c0_41 = arith.constant 0 : index
    %c0_42 = arith.constant 0 : index
    %97 = vector.load %arg9[%c0_40, %c0_41, %c0_42] : memref<2x1x32xf32, #tpu.memory_space<vmem>>, vector<1x1x32xf32>
    %98 = vector.shape_cast %97 : vector<1x1x32xf32> to vector<1x32xf32>
    %c0_43 = arith.constant 0 : index
    %c0_44 = arith.constant 0 : index
    %c0_45 = arith.constant 0 : index
    %99 = vector.load %arg10[%c0_43, %c0_44, %c0_45] : memref<2x1x32xf32, #tpu.memory_space<vmem>>, vector<1x1x32xf32>
    %100 = vector.shape_cast %99 : vector<1x1x32xf32> to vector<1x32xf32>
    %cst_46 = arith.constant dense<0.000000e+00> : vector<16xf32>
    %101 = vector.multi_reduction <add>, %96, %cst_46 [1] : vector<16x32xf32> to vector<16xf32>
    %102 = vector.shape_cast %101 : vector<16xf32> to vector<16x1xf32>
    %cst_47 = arith.constant 3.200000e+01 : f32
    %103 = vector.broadcast %cst_47 : f32 to vector<16x1xf32>
    %104 = arith.divf %102, %103 : vector<16x1xf32>
    %105 = vector.broadcast %104 : vector<16x1xf32> to vector<16x32xf32>
    %106 = arith.subf %96, %105 : vector<16x32xf32>
    %107 = arith.mulf %106, %106 : vector<16x32xf32>
    %cst_48 = arith.constant dense<0.000000e+00> : vector<16xf32>
    %108 = vector.multi_reduction <add>, %107, %cst_48 [1] : vector<16x32xf32> to vector<16xf32>
    %109 = vector.shape_cast %108 : vector<16xf32> to vector<16x1xf32>
    %cst_49 = arith.constant 3.200000e+01 : f32
    %110 = vector.broadcast %cst_49 : f32 to vector<16x1xf32>
    %111 = arith.divf %109, %110 : vector<16x1xf32>
    %112 = vector.broadcast %104 : vector<16x1xf32> to vector<16x32xf32>
    %113 = arith.subf %96, %112 : vector<16x32xf32>
    %cst_50 = arith.constant 9.99999996E-13 : f32
    %114 = vector.broadcast %cst_50 : f32 to vector<16x1xf32>
    %115 = arith.addf %111, %114 : vector<16x1xf32>
    %116 = math.rsqrt %115 : vector<16x1xf32>
    %117 = vector.broadcast %116 : vector<16x1xf32> to vector<16x32xf32>
    %118 = arith.mulf %113, %117 : vector<16x32xf32>
    %119 = vector.broadcast %98 : vector<1x32xf32> to vector<16x32xf32>
    %120 = arith.mulf %118, %119 : vector<16x32xf32>
    %121 = vector.broadcast %100 : vector<1x32xf32> to vector<16x32xf32>
    %122 = arith.addf %120, %121 : vector<16x32xf32>
    %c0_51 = arith.constant 0 : index
    %c0_52 = arith.constant 0 : index
    %c0_53 = arith.constant 0 : index
    %123 = vector.load %arg11[%c0_51, %c0_52, %c0_53] : memref<2x32x64xf32, #tpu.memory_space<vmem>>, vector<1x32x64xf32>
    %124 = vector.shape_cast %123 : vector<1x32x64xf32> to vector<32x64xf32>
    %cst_54 = arith.constant dense<0.000000e+00> : vector<16x64xf32>
    %125 = tpu.matmul %122, %124, %cst_54 {dimension_numbers = #tpu.dot_dimension_numbers<[1], [0], [0], [1], [0, 0, 1, 1], [], []>} : vector<16x32xf32>, vector<32x64xf32>, vector<16x64xf32> -> vector<16x64xf32>
    %c0_55 = arith.constant 0 : index
    %c0_56 = arith.constant 0 : index
    %c0_57 = arith.constant 0 : index
    %126 = vector.load %arg12[%c0_55, %c0_56, %c0_57] : memref<2x1x64xf32, #tpu.memory_space<vmem>>, vector<1x1x64xf32>
    %127 = vector.shape_cast %126 : vector<1x1x64xf32> to vector<1x64xf32>
    %128 = vector.broadcast %127 : vector<1x64xf32> to vector<16x64xf32>
    %129 = arith.addf %125, %128 : vector<16x64xf32>
    %cst_58 = arith.constant 5.000000e-01 : f32
    %130 = vector.broadcast %cst_58 : f32 to vector<16x64xf32>
    %131 = arith.mulf %130, %129 : vector<16x64xf32>
    %cst_59 = arith.constant 4.471500e-02 : f32
    %132 = vector.broadcast %cst_59 : f32 to vector<16x64xf32>
    %133 = arith.mulf %132, %129 : vector<16x64xf32>
    %134 = arith.mulf %133, %129 : vector<16x64xf32>
    %135 = arith.mulf %134, %129 : vector<16x64xf32>
    %136 = arith.addf %129, %135 : vector<16x64xf32>
    %cst_60 = arith.constant 0.797884583 : f32
    %137 = vector.broadcast %cst_60 : f32 to vector<16x64xf32>
    %138 = arith.mulf %137, %136 : vector<16x64xf32>
    %139 = math.tanh %138 : vector<16x64xf32>
    %cst_61 = arith.constant 1.000000e+00 : f32
    %140 = vector.broadcast %cst_61 : f32 to vector<16x64xf32>
    %141 = arith.addf %140, %139 : vector<16x64xf32>
    %142 = arith.mulf %131, %141 : vector<16x64xf32>
    %c0_62 = arith.constant 0 : index
    %c0_63 = arith.constant 0 : index
    %c0_64 = arith.constant 0 : index
    %143 = vector.load %arg13[%c0_62, %c0_63, %c0_64] : memref<2x64x32xf32, #tpu.memory_space<vmem>>, vector<1x64x32xf32>
    %144 = vector.shape_cast %143 : vector<1x64x32xf32> to vector<64x32xf32>
    %cst_65 = arith.constant dense<0.000000e+00> : vector<16x32xf32>
    %145 = tpu.matmul %142, %144, %cst_65 {dimension_numbers = #tpu.dot_dimension_numbers<[1], [0], [0], [1], [0, 0, 1, 1], [], []>} : vector<16x64xf32>, vector<64x32xf32>, vector<16x32xf32> -> vector<16x32xf32>
    %c0_66 = arith.constant 0 : index
    %c0_67 = arith.constant 0 : index
    %c0_68 = arith.constant 0 : index
    %146 = vector.load %arg14[%c0_66, %c0_67, %c0_68] : memref<2x1x32xf32, #tpu.memory_space<vmem>>, vector<1x1x32xf32>
    %147 = vector.shape_cast %146 : vector<1x1x32xf32> to vector<1x32xf32>
    %148 = vector.broadcast %147 : vector<1x32xf32> to vector<16x32xf32>
    %149 = arith.addf %145, %148 : vector<16x32xf32>
    %150 = arith.addf %122, %149 : vector<16x32xf32>
    %c0_69 = arith.constant 0 : index
    %c0_70 = arith.constant 0 : index
    %c0_71 = arith.constant 0 : index
    %151 = vector.load %arg15[%c0_69, %c0_70, %c0_71] : memref<2x1x32xf32, #tpu.memory_space<vmem>>, vector<1x1x32xf32>
    %152 = vector.shape_cast %151 : vector<1x1x32xf32> to vector<1x32xf32>
    %c0_72 = arith.constant 0 : index
    %c0_73 = arith.constant 0 : index
    %c0_74 = arith.constant 0 : index
    %153 = vector.load %arg16[%c0_72, %c0_73, %c0_74] : memref<2x1x32xf32, #tpu.memory_space<vmem>>, vector<1x1x32xf32>
    %154 = vector.shape_cast %153 : vector<1x1x32xf32> to vector<1x32xf32>
    %cst_75 = arith.constant dense<0.000000e+00> : vector<16xf32>
    %155 = vector.multi_reduction <add>, %150, %cst_75 [1] : vector<16x32xf32> to vector<16xf32>
    %156 = vector.shape_cast %155 : vector<16xf32> to vector<16x1xf32>
    %cst_76 = arith.constant 3.200000e+01 : f32
    %157 = vector.broadcast %cst_76 : f32 to vector<16x1xf32>
    %158 = arith.divf %156, %157 : vector<16x1xf32>
    %159 = vector.broadcast %158 : vector<16x1xf32> to vector<16x32xf32>
    %160 = arith.subf %150, %159 : vector<16x32xf32>
    %161 = arith.mulf %160, %160 : vector<16x32xf32>
    %cst_77 = arith.constant dense<0.000000e+00> : vector<16xf32>
    %162 = vector.multi_reduction <add>, %161, %cst_77 [1] : vector<16x32xf32> to vector<16xf32>
    %163 = vector.shape_cast %162 : vector<16xf32> to vector<16x1xf32>
    %cst_78 = arith.constant 3.200000e+01 : f32
    %164 = vector.broadcast %cst_78 : f32 to vector<16x1xf32>
    %165 = arith.divf %163, %164 : vector<16x1xf32>
    %166 = vector.broadcast %158 : vector<16x1xf32> to vector<16x32xf32>
    %167 = arith.subf %150, %166 : vector<16x32xf32>
    %cst_79 = arith.constant 9.99999996E-13 : f32
    %168 = vector.broadcast %cst_79 : f32 to vector<16x1xf32>
    %169 = arith.addf %165, %168 : vector<16x1xf32>
    %170 = math.rsqrt %169 : vector<16x1xf32>
    %171 = vector.broadcast %170 : vector<16x1xf32> to vector<16x32xf32>
    %172 = arith.mulf %167, %171 : vector<16x32xf32>
    %173 = vector.broadcast %152 : vector<1x32xf32> to vector<16x32xf32>
    %174 = arith.mulf %172, %173 : vector<16x32xf32>
    %175 = vector.broadcast %154 : vector<1x32xf32> to vector<16x32xf32>
    %176 = arith.addf %174, %175 : vector<16x32xf32>
    %c1 = arith.constant 1 : index
    %c0_80 = arith.constant 0 : index
    %c0_81 = arith.constant 0 : index
    %177 = vector.load %arg5[%c1, %c0_80, %c0_81] : memref<2x32x96xf32, #tpu.memory_space<vmem>>, vector<1x32x96xf32>
    %178 = vector.shape_cast %177 : vector<1x32x96xf32> to vector<32x96xf32>
    %cst_82 = arith.constant dense<0.000000e+00> : vector<16x96xf32>
    %179 = tpu.matmul %176, %178, %cst_82 {dimension_numbers = #tpu.dot_dimension_numbers<[1], [0], [0], [1], [0, 0, 1, 1], [], []>} : vector<16x32xf32>, vector<32x96xf32>, vector<16x96xf32> -> vector<16x96xf32>
    %c1_83 = arith.constant 1 : index
    %c0_84 = arith.constant 0 : index
    %c0_85 = arith.constant 0 : index
    %180 = vector.load %arg6[%c1_83, %c0_84, %c0_85] : memref<2x1x96xf32, #tpu.memory_space<vmem>>, vector<1x1x96xf32>
    %181 = vector.shape_cast %180 : vector<1x1x96xf32> to vector<1x96xf32>
    %182 = vector.broadcast %181 : vector<1x96xf32> to vector<16x96xf32>
    %183 = arith.addf %179, %182 : vector<16x96xf32>
    %c1_86 = arith.constant 1 : index
    %c0_87 = arith.constant 0 : index
    %c0_88 = arith.constant 0 : index
    %184 = vector.load %arg7[%c1_86, %c0_87, %c0_88] : memref<2x32x32xf32, #tpu.memory_space<vmem>>, vector<1x32x32xf32>
    %185 = vector.shape_cast %184 : vector<1x32x32xf32> to vector<32x32xf32>
    %cst_89 = arith.constant 0.000000e+00 : f32
    %186 = vector.broadcast %cst_89 : f32 to vector<16x32xf32>
    %187 = vector.extract_strided_slice %183 {offsets = [0, 0], sizes = [16, 16], strides = [1, 1]} : vector<16x96xf32> to vector<16x16xf32>
    %188 = vector.shape_cast %187 : vector<16x16xf32> to vector<2x8x16xf32>
    %189 = vector.extract_strided_slice %183 {offsets = [0, 32], sizes = [16, 16], strides = [1, 1]} : vector<16x96xf32> to vector<16x16xf32>
    %190 = vector.shape_cast %189 : vector<16x16xf32> to vector<2x8x16xf32>
    %191 = vector.extract_strided_slice %183 {offsets = [0, 64], sizes = [16, 16], strides = [1, 1]} : vector<16x96xf32> to vector<16x16xf32>
    %192 = vector.shape_cast %191 : vector<16x16xf32> to vector<2x8x16xf32>
    "tpu.trace_start"() <{level = 10 : i32, message = "bqd,bkd->bqk"}> : () -> ()
    %cst_90 = arith.constant dense<0.000000e+00> : vector<2x8x8xf32>
    %193 = tpu.matmul %188, %190, %cst_90 {dimension_numbers = #tpu.dot_dimension_numbers<[2], [2], [1], [1], [0, 0, 0, 1, 1, 1], [0], [0]>} : vector<2x8x16xf32>, vector<2x8x16xf32>, vector<2x8x8xf32> -> vector<2x8x8xf32>
    "tpu.trace_stop"() : () -> ()
    %cst_91 = arith.constant 2.500000e-01 : f32
    %194 = vector.broadcast %cst_91 : f32 to vector<2x8x8xf32>
    %195 = arith.mulf %193, %194 : vector<2x8x8xf32>
    %196 = vector.broadcast %29 : vector<2x1x8xf32> to vector<2x8x8xf32>
    %197 = arith.addf %195, %196 : vector<2x8x8xf32>
    %cst_92 = arith.constant dense<0xFF800000> : vector<2x8xf32>
    %198 = vector.multi_reduction <maximumf>, %197, %cst_92 [2] : vector<2x8x8xf32> to vector<2x8xf32>
    %199 = vector.shape_cast %198 : vector<2x8xf32> to vector<2x8x1xf32>
    %200 = vector.broadcast %199 : vector<2x8x1xf32> to vector<2x8x8xf32>
    %201 = arith.subf %197, %200 : vector<2x8x8xf32>
    %202 = math.exp %201 : vector<2x8x8xf32>
    %cst_93 = arith.constant dense<0.000000e+00> : vector<2x8xf32>
    %203 = vector.multi_reduction <add>, %202, %cst_93 [2] : vector<2x8x8xf32> to vector<2x8xf32>
    %204 = vector.shape_cast %203 : vector<2x8xf32> to vector<2x8x1xf32>
    %205 = tpu.reciprocal %204 {approx = true} : vector<2x8x1xf32> -> vector<2x8x1xf32>
    %206 = vector.broadcast %205 : vector<2x8x1xf32> to vector<2x8x8xf32>
    %207 = arith.mulf %202, %206 : vector<2x8x8xf32>
    "tpu.trace_start"() <{level = 10 : i32, message = "bqk,bkd->bqd"}> : () -> ()
    %cst_94 = arith.constant dense<0.000000e+00> : vector<2x8x16xf32>
    %208 = tpu.matmul %207, %192, %cst_94 {dimension_numbers = #tpu.dot_dimension_numbers<[2], [1], [1], [2], [0, 0, 0, 1, 1, 2], [0], [0]>} : vector<2x8x8xf32>, vector<2x8x16xf32>, vector<2x8x16xf32> -> vector<2x8x16xf32>
    "tpu.trace_stop"() : () -> ()
    %209 = vector.shape_cast %208 : vector<2x8x16xf32> to vector<16x16xf32>
    %210 = vector.extract_strided_slice %185 {offsets = [0, 0], sizes = [16, 32], strides = [1, 1]} : vector<32x32xf32> to vector<16x32xf32>
    %cst_95 = arith.constant dense<0.000000e+00> : vector<16x32xf32>
    %211 = tpu.matmul %209, %210, %cst_95 {dimension_numbers = #tpu.dot_dimension_numbers<[1], [0], [0], [1], [0, 0, 1, 1], [], []>} : vector<16x16xf32>, vector<16x32xf32>, vector<16x32xf32> -> vector<16x32xf32>
    %212 = arith.addf %186, %211 : vector<16x32xf32>
    %213 = vector.extract_strided_slice %183 {offsets = [0, 16], sizes = [16, 16], strides = [1, 1]} : vector<16x96xf32> to vector<16x16xf32>
    %214 = vector.shape_cast %213 : vector<16x16xf32> to vector<2x8x16xf32>
    %215 = vector.extract_strided_slice %183 {offsets = [0, 48], sizes = [16, 16], strides = [1, 1]} : vector<16x96xf32> to vector<16x16xf32>
    %216 = vector.shape_cast %215 : vector<16x16xf32> to vector<2x8x16xf32>
    %217 = vector.extract_strided_slice %183 {offsets = [0, 80], sizes = [16, 16], strides = [1, 1]} : vector<16x96xf32> to vector<16x16xf32>
    %218 = vector.shape_cast %217 : vector<16x16xf32> to vector<2x8x16xf32>
    "tpu.trace_start"() <{level = 10 : i32, message = "bqd,bkd->bqk"}> : () -> ()
    %cst_96 = arith.constant dense<0.000000e+00> : vector<2x8x8xf32>
    %219 = tpu.matmul %214, %216, %cst_96 {dimension_numbers = #tpu.dot_dimension_numbers<[2], [2], [1], [1], [0, 0, 0, 1, 1, 1], [0], [0]>} : vector<2x8x16xf32>, vector<2x8x16xf32>, vector<2x8x8xf32> -> vector<2x8x8xf32>
    "tpu.trace_stop"() : () -> ()
    %cst_97 = arith.constant 2.500000e-01 : f32
    %220 = vector.broadcast %cst_97 : f32 to vector<2x8x8xf32>
    %221 = arith.mulf %219, %220 : vector<2x8x8xf32>
    %222 = vector.broadcast %29 : vector<2x1x8xf32> to vector<2x8x8xf32>
    %223 = arith.addf %221, %222 : vector<2x8x8xf32>
    %cst_98 = arith.constant dense<0xFF800000> : vector<2x8xf32>
    %224 = vector.multi_reduction <maximumf>, %223, %cst_98 [2] : vector<2x8x8xf32> to vector<2x8xf32>
    %225 = vector.shape_cast %224 : vector<2x8xf32> to vector<2x8x1xf32>
    %226 = vector.broadcast %225 : vector<2x8x1xf32> to vector<2x8x8xf32>
    %227 = arith.subf %223, %226 : vector<2x8x8xf32>
    %228 = math.exp %227 : vector<2x8x8xf32>
    %cst_99 = arith.constant dense<0.000000e+00> : vector<2x8xf32>
    %229 = vector.multi_reduction <add>, %228, %cst_99 [2] : vector<2x8x8xf32> to vector<2x8xf32>
    %230 = vector.shape_cast %229 : vector<2x8xf32> to vector<2x8x1xf32>
    %231 = tpu.reciprocal %230 {approx = true} : vector<2x8x1xf32> -> vector<2x8x1xf32>
    %232 = vector.broadcast %231 : vector<2x8x1xf32> to vector<2x8x8xf32>
    %233 = arith.mulf %228, %232 : vector<2x8x8xf32>
    "tpu.trace_start"() <{level = 10 : i32, message = "bqk,bkd->bqd"}> : () -> ()
    %cst_100 = arith.constant dense<0.000000e+00> : vector<2x8x16xf32>
    %234 = tpu.matmul %233, %218, %cst_100 {dimension_numbers = #tpu.dot_dimension_numbers<[2], [1], [1], [2], [0, 0, 0, 1, 1, 2], [0], [0]>} : vector<2x8x8xf32>, vector<2x8x16xf32>, vector<2x8x16xf32> -> vector<2x8x16xf32>
    "tpu.trace_stop"() : () -> ()
    %235 = vector.shape_cast %234 : vector<2x8x16xf32> to vector<16x16xf32>
    %236 = vector.extract_strided_slice %185 {offsets = [16, 0], sizes = [16, 32], strides = [1, 1]} : vector<32x32xf32> to vector<16x32xf32>
    %cst_101 = arith.constant dense<0.000000e+00> : vector<16x32xf32>
    %237 = tpu.matmul %235, %236, %cst_101 {dimension_numbers = #tpu.dot_dimension_numbers<[1], [0], [0], [1], [0, 0, 1, 1], [], []>} : vector<16x16xf32>, vector<16x32xf32>, vector<16x32xf32> -> vector<16x32xf32>
    %238 = arith.addf %212, %237 : vector<16x32xf32>
    %c1_102 = arith.constant 1 : index
    %c0_103 = arith.constant 0 : index
    %c0_104 = arith.constant 0 : index
    %239 = vector.load %arg8[%c1_102, %c0_103, %c0_104] : memref<2x1x32xf32, #tpu.memory_space<vmem>>, vector<1x1x32xf32>
    %240 = vector.shape_cast %239 : vector<1x1x32xf32> to vector<1x32xf32>
    %241 = vector.broadcast %240 : vector<1x32xf32> to vector<16x32xf32>
    %242 = arith.addf %238, %241 : vector<16x32xf32>
    %243 = arith.addf %176, %242 : vector<16x32xf32>
    %c1_105 = arith.constant 1 : index
    %c0_106 = arith.constant 0 : index
    %c0_107 = arith.constant 0 : index
    %244 = vector.load %arg9[%c1_105, %c0_106, %c0_107] : memref<2x1x32xf32, #tpu.memory_space<vmem>>, vector<1x1x32xf32>
    %245 = vector.shape_cast %244 : vector<1x1x32xf32> to vector<1x32xf32>
    %c1_108 = arith.constant 1 : index
    %c0_109 = arith.constant 0 : index
    %c0_110 = arith.constant 0 : index
    %246 = vector.load %arg10[%c1_108, %c0_109, %c0_110] : memref<2x1x32xf32, #tpu.memory_space<vmem>>, vector<1x1x32xf32>
    %247 = vector.shape_cast %246 : vector<1x1x32xf32> to vector<1x32xf32>
    %cst_111 = arith.constant dense<0.000000e+00> : vector<16xf32>
    %248 = vector.multi_reduction <add>, %243, %cst_111 [1] : vector<16x32xf32> to vector<16xf32>
    %249 = vector.shape_cast %248 : vector<16xf32> to vector<16x1xf32>
    %cst_112 = arith.constant 3.200000e+01 : f32
    %250 = vector.broadcast %cst_112 : f32 to vector<16x1xf32>
    %251 = arith.divf %249, %250 : vector<16x1xf32>
    %252 = vector.broadcast %251 : vector<16x1xf32> to vector<16x32xf32>
    %253 = arith.subf %243, %252 : vector<16x32xf32>
    %254 = arith.mulf %253, %253 : vector<16x32xf32>
    %cst_113 = arith.constant dense<0.000000e+00> : vector<16xf32>
    %255 = vector.multi_reduction <add>, %254, %cst_113 [1] : vector<16x32xf32> to vector<16xf32>
    %256 = vector.shape_cast %255 : vector<16xf32> to vector<16x1xf32>
    %cst_114 = arith.constant 3.200000e+01 : f32
    %257 = vector.broadcast %cst_114 : f32 to vector<16x1xf32>
    %258 = arith.divf %256, %257 : vector<16x1xf32>
    %259 = vector.broadcast %251 : vector<16x1xf32> to vector<16x32xf32>
    %260 = arith.subf %243, %259 : vector<16x32xf32>
    %cst_115 = arith.constant 9.99999996E-13 : f32
    %261 = vector.broadcast %cst_115 : f32 to vector<16x1xf32>
    %262 = arith.addf %258, %261 : vector<16x1xf32>
    %263 = math.rsqrt %262 : vector<16x1xf32>
    %264 = vector.broadcast %263 : vector<16x1xf32> to vector<16x32xf32>
    %265 = arith.mulf %260, %264 : vector<16x32xf32>
    %266 = vector.broadcast %245 : vector<1x32xf32> to vector<16x32xf32>
    %267 = arith.mulf %265, %266 : vector<16x32xf32>
    %268 = vector.broadcast %247 : vector<1x32xf32> to vector<16x32xf32>
    %269 = arith.addf %267, %268 : vector<16x32xf32>
    %c1_116 = arith.constant 1 : index
    %c0_117 = arith.constant 0 : index
    %c0_118 = arith.constant 0 : index
    %270 = vector.load %arg11[%c1_116, %c0_117, %c0_118] : memref<2x32x64xf32, #tpu.memory_space<vmem>>, vector<1x32x64xf32>
    %271 = vector.shape_cast %270 : vector<1x32x64xf32> to vector<32x64xf32>
    %cst_119 = arith.constant dense<0.000000e+00> : vector<16x64xf32>
    %272 = tpu.matmul %269, %271, %cst_119 {dimension_numbers = #tpu.dot_dimension_numbers<[1], [0], [0], [1], [0, 0, 1, 1], [], []>} : vector<16x32xf32>, vector<32x64xf32>, vector<16x64xf32> -> vector<16x64xf32>
    %c1_120 = arith.constant 1 : index
    %c0_121 = arith.constant 0 : index
    %c0_122 = arith.constant 0 : index
    %273 = vector.load %arg12[%c1_120, %c0_121, %c0_122] : memref<2x1x64xf32, #tpu.memory_space<vmem>>, vector<1x1x64xf32>
    %274 = vector.shape_cast %273 : vector<1x1x64xf32> to vector<1x64xf32>
    %275 = vector.broadcast %274 : vector<1x64xf32> to vector<16x64xf32>
    %276 = arith.addf %272, %275 : vector<16x64xf32>
    %cst_123 = arith.constant 5.000000e-01 : f32
    %277 = vector.broadcast %cst_123 : f32 to vector<16x64xf32>
    %278 = arith.mulf %277, %276 : vector<16x64xf32>
    %cst_124 = arith.constant 4.471500e-02 : f32
    %279 = vector.broadcast %cst_124 : f32 to vector<16x64xf32>
    %280 = arith.mulf %279, %276 : vector<16x64xf32>
    %281 = arith.mulf %280, %276 : vector<16x64xf32>
    %282 = arith.mulf %281, %276 : vector<16x64xf32>
    %283 = arith.addf %276, %282 : vector<16x64xf32>
    %cst_125 = arith.constant 0.797884583 : f32
    %284 = vector.broadcast %cst_125 : f32 to vector<16x64xf32>
    %285 = arith.mulf %284, %283 : vector<16x64xf32>
    %286 = math.tanh %285 : vector<16x64xf32>
    %cst_126 = arith.constant 1.000000e+00 : f32
    %287 = vector.broadcast %cst_126 : f32 to vector<16x64xf32>
    %288 = arith.addf %287, %286 : vector<16x64xf32>
    %289 = arith.mulf %278, %288 : vector<16x64xf32>
    %c1_127 = arith.constant 1 : index
    %c0_128 = arith.constant 0 : index
    %c0_129 = arith.constant 0 : index
    %290 = vector.load %arg13[%c1_127, %c0_128, %c0_129] : memref<2x64x32xf32, #tpu.memory_space<vmem>>, vector<1x64x32xf32>
    %291 = vector.shape_cast %290 : vector<1x64x32xf32> to vector<64x32xf32>
    %cst_130 = arith.constant dense<0.000000e+00> : vector<16x32xf32>
    %292 = tpu.matmul %289, %291, %cst_130 {dimension_numbers = #tpu.dot_dimension_numbers<[1], [0], [0], [1], [0, 0, 1, 1], [], []>} : vector<16x64xf32>, vector<64x32xf32>, vector<16x32xf32> -> vector<16x32xf32>
    %c1_131 = arith.constant 1 : index
    %c0_132 = arith.constant 0 : index
    %c0_133 = arith.constant 0 : index
    %293 = vector.load %arg14[%c1_131, %c0_132, %c0_133] : memref<2x1x32xf32, #tpu.memory_space<vmem>>, vector<1x1x32xf32>
    %294 = vector.shape_cast %293 : vector<1x1x32xf32> to vector<1x32xf32>
    %295 = vector.broadcast %294 : vector<1x32xf32> to vector<16x32xf32>
    %296 = arith.addf %292, %295 : vector<16x32xf32>
    %297 = arith.addf %269, %296 : vector<16x32xf32>
    %c1_134 = arith.constant 1 : index
    %c0_135 = arith.constant 0 : index
    %c0_136 = arith.constant 0 : index
    %298 = vector.load %arg15[%c1_134, %c0_135, %c0_136] : memref<2x1x32xf32, #tpu.memory_space<vmem>>, vector<1x1x32xf32>
    %299 = vector.shape_cast %298 : vector<1x1x32xf32> to vector<1x32xf32>
    %c1_137 = arith.constant 1 : index
    %c0_138 = arith.constant 0 : index
    %c0_139 = arith.constant 0 : index
    %300 = vector.load %arg16[%c1_137, %c0_138, %c0_139] : memref<2x1x32xf32, #tpu.memory_space<vmem>>, vector<1x1x32xf32>
    %301 = vector.shape_cast %300 : vector<1x1x32xf32> to vector<1x32xf32>
    %cst_140 = arith.constant dense<0.000000e+00> : vector<16xf32>
    %302 = vector.multi_reduction <add>, %297, %cst_140 [1] : vector<16x32xf32> to vector<16xf32>
    %303 = vector.shape_cast %302 : vector<16xf32> to vector<16x1xf32>
    %cst_141 = arith.constant 3.200000e+01 : f32
    %304 = vector.broadcast %cst_141 : f32 to vector<16x1xf32>
    %305 = arith.divf %303, %304 : vector<16x1xf32>
    %306 = vector.broadcast %305 : vector<16x1xf32> to vector<16x32xf32>
    %307 = arith.subf %297, %306 : vector<16x32xf32>
    %308 = arith.mulf %307, %307 : vector<16x32xf32>
    %cst_142 = arith.constant dense<0.000000e+00> : vector<16xf32>
    %309 = vector.multi_reduction <add>, %308, %cst_142 [1] : vector<16x32xf32> to vector<16xf32>
    %310 = vector.shape_cast %309 : vector<16xf32> to vector<16x1xf32>
    %cst_143 = arith.constant 3.200000e+01 : f32
    %311 = vector.broadcast %cst_143 : f32 to vector<16x1xf32>
    %312 = arith.divf %310, %311 : vector<16x1xf32>
    %313 = vector.broadcast %305 : vector<16x1xf32> to vector<16x32xf32>
    %314 = arith.subf %297, %313 : vector<16x32xf32>
    %cst_144 = arith.constant 9.99999996E-13 : f32
    %315 = vector.broadcast %cst_144 : f32 to vector<16x1xf32>
    %316 = arith.addf %312, %315 : vector<16x1xf32>
    %317 = math.rsqrt %316 : vector<16x1xf32>
    %318 = vector.broadcast %317 : vector<16x1xf32> to vector<16x32xf32>
    %319 = arith.mulf %314, %318 : vector<16x32xf32>
    %320 = vector.broadcast %299 : vector<1x32xf32> to vector<16x32xf32>
    %321 = arith.mulf %319, %320 : vector<16x32xf32>
    %322 = vector.broadcast %301 : vector<1x32xf32> to vector<16x32xf32>
    %323 = arith.addf %321, %322 : vector<16x32xf32>
    %324 = tpu.iota {dimensions = array<i32: 1>} : vector<2x16xi32>
    %325 = tpu.iota {dimensions = array<i32: 0>} : vector<2x16xi32>
    %c8_i32 = arith.constant 8 : i32
    %326 = vector.broadcast %c8_i32 : i32 to vector<2x16xi32>
    %327 = arith.muli %325, %326 : vector<2x16xi32>
    %328 = arith.cmpi eq, %324, %327 : vector<2x16xi32>
    %329 = arith.extui %328 : vector<2x16xi1> to vector<2x16xi32>
    %330 = arith.sitofp %329 : vector<2x16xi32> to vector<2x16xf32>
    %cst_145 = arith.constant dense<0.000000e+00> : vector<2x32xf32>
    %331 = tpu.matmul %330, %323, %cst_145 {dimension_numbers = #tpu.dot_dimension_numbers<[1], [0], [0], [1], [0, 0, 1, 1], [], []>} : vector<2x16xf32>, vector<16x32xf32>, vector<2x32xf32> -> vector<2x32xf32>
    %c0_146 = arith.constant 0 : index
    %c0_147 = arith.constant 0 : index
    %332 = vector.load %arg2[%c0_146, %c0_147] : memref<2x10xf32, #tpu.memory_space<vmem>>, vector<2x10xf32>
    %c0_148 = arith.constant 0 : index
    %c0_149 = arith.constant 0 : index
    %333 = vector.load %arg17[%c0_148, %c0_149] : memref<10x50xf32, #tpu.memory_space<vmem>>, vector<10x50xf32>
    %cst_150 = arith.constant dense<0.000000e+00> : vector<2x50xf32>
    %334 = tpu.matmul %332, %333, %cst_150 {dimension_numbers = #tpu.dot_dimension_numbers<[1], [0], [0], [1], [0, 0, 1, 1], [], []>} : vector<2x10xf32>, vector<10x50xf32>, vector<2x50xf32> -> vector<2x50xf32>
    %c0_151 = arith.constant 0 : index
    %c0_152 = arith.constant 0 : index
    %335 = vector.load %arg18[%c0_151, %c0_152] : memref<1x50xf32, #tpu.memory_space<vmem>>, vector<1x50xf32>
    %336 = vector.broadcast %335 : vector<1x50xf32> to vector<2x50xf32>
    %337 = arith.addf %334, %336 : vector<2x50xf32>
    %cst_153 = arith.constant 0.000000e+00 : f32
    %338 = vector.broadcast %cst_153 : f32 to vector<2x50xf32>
    %339 = arith.maximumf %337, %338 : vector<2x50xf32>
    %c0_154 = arith.constant 0 : index
    %c0_155 = arith.constant 0 : index
    %340 = vector.load %arg19[%c0_154, %c0_155] : memref<50x50xf32, #tpu.memory_space<vmem>>, vector<50x50xf32>
    %cst_156 = arith.constant dense<0.000000e+00> : vector<2x50xf32>
    %341 = tpu.matmul %339, %340, %cst_156 {dimension_numbers = #tpu.dot_dimension_numbers<[1], [0], [0], [1], [0, 0, 1, 1], [], []>} : vector<2x50xf32>, vector<50x50xf32>, vector<2x50xf32> -> vector<2x50xf32>
    %c0_157 = arith.constant 0 : index
    %c0_158 = arith.constant 0 : index
    %342 = vector.load %arg20[%c0_157, %c0_158] : memref<1x50xf32, #tpu.memory_space<vmem>>, vector<1x50xf32>
    %343 = vector.broadcast %342 : vector<1x50xf32> to vector<2x50xf32>
    %344 = arith.addf %341, %343 : vector<2x50xf32>
    %c0_159 = arith.constant 0 : index
    %c0_160 = arith.constant 0 : index
    %345 = vector.load %arg21[%c0_159, %c0_160] : memref<32x1xf32, #tpu.memory_space<vmem>>, vector<32x1xf32>
    %cst_161 = arith.constant dense<0.000000e+00> : vector<2x1xf32>
    %346 = tpu.matmul %331, %345, %cst_161 {dimension_numbers = #tpu.dot_dimension_numbers<[1], [0], [0], [1], [0, 0, 1, 1], [], []>} : vector<2x32xf32>, vector<32x1xf32>, vector<2x1xf32> -> vector<2x1xf32>
    %c0_162 = arith.constant 0 : index
    %c0_163 = arith.constant 0 : index
    %347 = vector.load %arg22[%c0_162, %c0_163] : memref<50x1xf32, #tpu.memory_space<vmem>>, vector<50x1xf32>
    %cst_164 = arith.constant dense<0.000000e+00> : vector<2x1xf32>
    %348 = tpu.matmul %344, %347, %cst_164 {dimension_numbers = #tpu.dot_dimension_numbers<[1], [0], [0], [1], [0, 0, 1, 1], [], []>} : vector<2x50xf32>, vector<50x1xf32>, vector<2x1xf32> -> vector<2x1xf32>
    %349 = arith.addf %346, %348 : vector<2x1xf32>
    %c0_165 = arith.constant 0 : index
    %c0_166 = arith.constant 0 : index
    %350 = vector.load %arg23[%c0_165, %c0_166] : memref<1x1xf32, #tpu.memory_space<vmem>>, vector<1x1xf32>
    %351 = vector.broadcast %350 : vector<1x1xf32> to vector<2x1xf32>
    %352 = arith.addf %349, %351 : vector<2x1xf32>
    %c0_167 = arith.constant 0 : index
    %c0_168 = arith.constant 0 : index
    %353 = vector.load %arg24[%c0_167, %c0_168] : memref<2x1xf32, #tpu.memory_space<vmem>>, vector<2x1xf32>
    tpu.vector_store %arg24[%c0_167, %c0_168], %352 {strides = array<i32>} : memref<2x1xf32, #tpu.memory_space<vmem>>, vector<2x1xf32>,
    return
  }
}

</mosaic_0001>

<llo_original>
// kernel: tpu_custom_call.1
$region0: #{tpu_custom_call.1}
  #allocation0 [shape = 'u32[]', space=smem, size = 0x4, offset = 0x4, fixed_abs, tag = 'smem constant byte address 0x4 - core index']
  #allocation1 [shape = 'u32[144,128]{1,0:T(1,128)}', space=vmem, size = 0x12000, scoped, tag = 'internal scratch']
  #allocation2 [shape = 'f32[1,1]{1,0:T(1,128)S(1)}', space=vmem, size = 0x200, scoped, tag = 'scoped memory for tpu_custom_call.1']
  %s0 = inlined_call_operand.hbm [shape: f32[16,32], index: 0, kind: input, shape index: {}]
  %s1 = inlined_call_operand.vmem [shape: f32[2,1,8], index: 1, kind: input, shape index: {}]
  %s2 = inlined_call_operand.hbm [shape: f32[2,10], index: 2, kind: input, shape index: {}]
  %s3 = inlined_call_operand.hbm [shape: f32[1,32], index: 3, kind: input, shape index: {}]
  %s4 = inlined_call_operand.hbm [shape: f32[1,32], index: 4, kind: input, shape index: {}]
  %s5 = inlined_call_operand.vmem [shape: f32[2,32,96], index: 5, kind: input, shape index: {}]
  %s6 = inlined_call_operand.hbm [shape: f32[2,1,96], index: 6, kind: input, shape index: {}]
  %s7 = inlined_call_operand.vmem [shape: f32[2,32,32], index: 7, kind: input, shape index: {}]
  %s8 = inlined_call_operand.hbm [shape: f32[2,1,32], index: 8, kind: input, shape index: {}]
  %s9 = inlined_call_operand.hbm [shape: f32[2,1,32], index: 9, kind: input, shape index: {}]
  %s10 = inlined_call_operand.hbm [shape: f32[2,1,32], index: 10, kind: input, shape index: {}]
  %s11 = inlined_call_operand.vmem [shape: f32[2,32,64], index: 11, kind: input, shape index: {}]
  %s12 = inlined_call_operand.hbm [shape: f32[2,1,64], index: 12, kind: input, shape index: {}]
  %s13 = inlined_call_operand.vmem [shape: f32[2,64,32], index: 13, kind: input, shape index: {}]
  %s14 = inlined_call_operand.hbm [shape: f32[2,1,32], index: 14, kind: input, shape index: {}]
  %s15 = inlined_call_operand.hbm [shape: f32[2,1,32], index: 15, kind: input, shape index: {}]
  %s16 = inlined_call_operand.hbm [shape: f32[2,1,32], index: 16, kind: input, shape index: {}]
  %s17 = inlined_call_operand.hbm [shape: f32[10,50], index: 17, kind: input, shape index: {}]
  %s18 = inlined_call_operand.hbm [shape: f32[1,50], index: 18, kind: input, shape index: {}]
  %s19 = inlined_call_operand.vmem [shape: f32[50,50], index: 19, kind: input, shape index: {}]
  %s20 = inlined_call_operand.vmem [shape: f32[1,50], index: 20, kind: input, shape index: {}]
  %s21 = inlined_call_operand.vmem [shape: f32[32,1], index: 21, kind: input, shape index: {}]
  %s22 = inlined_call_operand.vmem [shape: f32[50,1], index: 22, kind: input, shape index: {}]
  %s23 = inlined_call_operand.<no memory space> [shape: f32[1,1], index: 23, kind: input, shape index: {}]
  %s24 = inlined_call_operand.vmem [shape: f32[2,1], index: 24, kind: output, shape index: {}]
  %s25 = sld [smem:[#allocation0]]
  $region162: #{tpu_custom_call.1} parent=0
    _
  %s27 = ssub.s32 1, %s25
  %s28 = scalar_select 0, %s27, %s25
  %v29 = vstv %s23
  %30 = vst [vmem:[#allocation2] sm:$0x1] %v29
  $region1: #{tpu_custom_call.1} parent=0
    #allocation3 [shape = 'u8[8192]{0}', space=vmem, size = 0x2000, scoped, tag = 'input window, operand 0, single buffered']
    #allocation4 [shape = 's32[1]{0}', space=sflag, size = 0x4, scoped, tag = 'scoped memory for tpu_custom_call.1']
    #allocation5 [shape = 'u8[1024]{0}', space=vmem, size = 0x400, scoped, tag = 'input window, operand 2, single buffered']
    #allocation6 [shape = 's32[1]{0}', space=sflag, size = 0x4, scoped, tag = 'scoped memory for tpu_custom_call.1']
    #allocation7 [shape = 'u8[512]{0}', space=vmem, size = 0x400, scoped, tag = 'input window, operand 3, single buffered']
    #allocation8 [shape = 'u8[512]{0}', space=vmem, size = 0x400, scoped, tag = 'input window, operand 4, single buffered']
    #allocation9 [shape = 's32[1]{0}', space=sflag, size = 0x4, scoped, tag = 'scoped memory for tpu_custom_call.1']
    #allocation10 [shape = 'u8[1024]{0}', space=vmem, size = 0x400, scoped, tag = 'input window, operand 6, single buffered']
    #allocation11 [shape = 'u8[1024]{0}', space=vmem, size = 0x400, scoped, tag = 'input window, operand 8, single buffered']
    #allocation12 [shape = 's32[1]{0}', space=sflag, size = 0x4, scoped, tag = 'scoped memory for tpu_custom_call.1']
    #allocation13 [shape = 'u8[1024]{0}', space=vmem, size = 0x400, scoped, tag = 'input window, operand 9, single buffered']
    #allocation14 [shape = 'u8[1024]{0}', space=vmem, size = 0x400, scoped, tag = 'input window, operand 10, single buffered']
    #allocation15 [shape = 's32[1]{0}', space=sflag, size = 0x4, scoped, tag = 'scoped memory for tpu_custom_call.1']
    #allocation16 [shape = 'u8[1024]{0}', space=vmem, size = 0x400, scoped, tag = 'input window, operand 12, single buffered']
    #allocation17 [shape = 'u8[1024]{0}', space=vmem, size = 0x400, scoped, tag = 'input window, operand 14, single buffered']
    #allocation18 [shape = 's32[1]{0}', space=sflag, size = 0x4, scoped, tag = 'scoped memory for tpu_custom_call.1']
    #allocation19 [shape = 'u8[1024]{0}', space=vmem, size = 0x400, scoped, tag = 'input window, operand 15, single buffered']
    #allocation20 [shape = 'u8[1024]{0}', space=vmem, size = 0x400, scoped, tag = 'input window, operand 16, single buffered']
    #allocation21 [shape = 's32[1]{0}', space=sflag, size = 0x4, scoped, tag = 'scoped memory for tpu_custom_call.1']
    #allocation22 [shape = 'u8[8192]{0}', space=vmem, size = 0x2000, scoped, tag = 'input window, operand 17, single buffered']
    #allocation23 [shape = 'u8[512]{0}', space=vmem, size = 0x400, scoped, tag = 'input window, operand 18, single buffered']
    #allocation24 [shape = 's32[1]{0}', space=sflag, size = 0x4, scoped, tag = 'scoped memory for tpu_custom_call.1']
    %31 = vsyncpa [#allocation4], 0
    %32 = vsyncpa [#allocation6], 0
    %33 = vsyncpa [#allocation9], 0
    %34 = vsyncpa [#allocation12], 0
    %35 = vsyncpa [#allocation15], 0
    %36 = vsyncpa [#allocation18], 0
    %37 = vsyncpa [#allocation21], 0
    %38 = vsyncpa [#allocation24], 0
    // Predicated region
    $region2: #{tpu_custom_call.1} parent=1 // pred_check
      _
    $region3: #{tpu_custom_call.1} parent=1 // pred_check_branch
      %40 = sbr.rel (0) target = $region5
    $region4: #{tpu_custom_call.1} parent=1 // pred_region
      %s42 = ssub.s32 256, 256
      %43 = vsyncadd [#allocation4], %s42
      %s44 = sshll.u32 [#allocation3], 4
      %s45 = int_to_ptr.vmem [resolvable:$true] %s44
      %50 = dma.hbm_to_vmem [thread:$0]  %s0, 256, %s45, [#allocation4], 128, 128, 8
    $region5: #{tpu_custom_call.1} parent=1 // pred_fallthru
      _
    // Predicated region
    $region6: #{tpu_custom_call.1} parent=1 // pred_check
      _
    $region7: #{tpu_custom_call.1} parent=1 // pred_check_branch
      %52 = sbr.rel (0) target = $region9
    $region8: #{tpu_custom_call.1} parent=1 // pred_region
      _
    $region9: #{tpu_custom_call.1} parent=1 // pred_fallthru
      _
    // Predicated region
    $region10: #{tpu_custom_call.1} parent=1 // pred_check
      _
    $region11: #{tpu_custom_call.1} parent=1 // pred_check_branch
      %54 = sbr.rel (0) target = $region13
    $region12: #{tpu_custom_call.1} parent=1 // pred_region
      %s56 = ssub.s32 32, 32
      %57 = vsyncadd [#allocation6], %s56
      %s59 = sshll.u32 [#allocation5], 4
      %s60 = int_to_ptr.vmem [resolvable:$true] %s59
      %62 = dma.hbm_to_vmem [thread:$0]  %s2, 32, %s60, [#allocation6]
    $region13: #{tpu_custom_call.1} parent=1 // pred_fallthru
      _
    // Predicated region
    $region14: #{tpu_custom_call.1} parent=1 // pred_check
      _
    $region15: #{tpu_custom_call.1} parent=1 // pred_check_branch
      %64 = sbr.rel (0) target = $region17
    $region16: #{tpu_custom_call.1} parent=1 // pred_region
      %s66 = ssub.s32 16, 16
      %67 = vsyncadd [#allocation6], %s66
      %s69 = sshll.u32 [#allocation7], 4
      %s70 = int_to_ptr.vmem [resolvable:$true] %s69
      %72 = dma.hbm_to_vmem [thread:$0]  %s3, 16, %s70, [#allocation6]
    $region17: #{tpu_custom_call.1} parent=1 // pred_fallthru
      _
    // Predicated region
    $region18: #{tpu_custom_call.1} parent=1 // pred_check
      _
    $region19: #{tpu_custom_call.1} parent=1 // pred_check_branch
      %74 = sbr.rel (0) target = $region21
    $region20: #{tpu_custom_call.1} parent=1 // pred_region
      %s76 = ssub.s32 16, 16
      %77 = vsyncadd [#allocation9], %s76
      %s79 = sshll.u32 [#allocation8], 4
      %s80 = int_to_ptr.vmem [resolvable:$true] %s79
      %82 = dma.hbm_to_vmem [thread:$0]  %s4, 16, %s80, [#allocation9]
    $region21: #{tpu_custom_call.1} parent=1 // pred_fallthru
      _
    // Predicated region
    $region22: #{tpu_custom_call.1} parent=1 // pred_check
      _
    $region23: #{tpu_custom_call.1} parent=1 // pred_check_branch
      %84 = sbr.rel (0) target = $region25
    $region24: #{tpu_custom_call.1} parent=1 // pred_region
      _
    $region25: #{tpu_custom_call.1} parent=1 // pred_fallthru
      _
    // Predicated region
    $region26: #{tpu_custom_call.1} parent=1 // pred_check
      _
    $region27: #{tpu_custom_call.1} parent=1 // pred_check_branch
      %86 = sbr.rel (0) target = $region29
    $region28: #{tpu_custom_call.1} parent=1 // pred_region
      %s88 = ssub.s32 32, 32
      %89 = vsyncadd [#allocation9], %s88
      %s90 = sshll.u32 [#allocation10], 4
      %s91 = int_to_ptr.vmem [resolvable:$true] %s90
      %96 = dma.hbm_to_vmem [thread:$0]  %s6, 32, %s91, [#allocation9], 16, 16, 1
    $region29: #{tpu_custom_call.1} parent=1 // pred_fallthru
      _
    // Predicated region
    $region30: #{tpu_custom_call.1} parent=1 // pred_check
      _
    $region31: #{tpu_custom_call.1} parent=1 // pred_check_branch
      %98 = sbr.rel (0) target = $region33
    $region32: #{tpu_custom_call.1} parent=1 // pred_region
      _
    $region33: #{tpu_custom_call.1} parent=1 // pred_fallthru
      _
    // Predicated region
    $region34: #{tpu_custom_call.1} parent=1 // pred_check
      _
    $region35: #{tpu_custom_call.1} parent=1 // pred_check_branch
      %100 = sbr.rel (0) target = $region37
    $region36: #{tpu_custom_call.1} parent=1 // pred_region
      %s102 = ssub.s32 32, 32
      %103 = vsyncadd [#allocation12], %s102
      %s104 = sshll.u32 [#allocation11], 4
      %s105 = int_to_ptr.vmem [resolvable:$true] %s104
      %110 = dma.hbm_to_vmem [thread:$0]  %s8, 32, %s105, [#allocation12], 16, 16, 1
    $region37: #{tpu_custom_call.1} parent=1 // pred_fallthru
      _
    // Predicated region
    $region38: #{tpu_custom_call.1} parent=1 // pred_check
      _
    $region39: #{tpu_custom_call.1} parent=1 // pred_check_branch
      %112 = sbr.rel (0) target = $region41
    $region40: #{tpu_custom_call.1} parent=1 // pred_region
      %s114 = ssub.s32 32, 32
      %115 = vsyncadd [#allocation12], %s114
      %s116 = sshll.u32 [#allocation13], 4
      %s117 = int_to_ptr.vmem [resolvable:$true] %s116
      %122 = dma.hbm_to_vmem [thread:$0]  %s9, 32, %s117, [#allocation12], 16, 16, 1
    $region41: #{tpu_custom_call.1} parent=1 // pred_fallthru
      _
    // Predicated region
    $region42: #{tpu_custom_call.1} parent=1 // pred_check
      _
    $region43: #{tpu_custom_call.1} parent=1 // pred_check_branch
      %124 = sbr.rel (0) target = $region45
    $region44: #{tpu_custom_call.1} parent=1 // pred_region
      %s126 = ssub.s32 32, 32
      %127 = vsyncadd [#allocation15], %s126
      %s128 = sshll.u32 [#allocation14], 4
      %s129 = int_to_ptr.vmem [resolvable:$true] %s128
      %134 = dma.hbm_to_vmem [thread:$0]  %s10, 32, %s129, [#allocation15], 16, 16, 1
    $region45: #{tpu_custom_call.1} parent=1 // pred_fallthru
      _
    // Predicated region
    $region46: #{tpu_custom_call.1} parent=1 // pred_check
      _
    $region47: #{tpu_custom_call.1} parent=1 // pred_check_branch
      %136 = sbr.rel (0) target = $region49
    $region48: #{tpu_custom_call.1} parent=1 // pred_region
      _
    $region49: #{tpu_custom_call.1} parent=1 // pred_fallthru
      _
    // Predicated region
    $region50: #{tpu_custom_call.1} parent=1 // pred_check
      _
    $region51: #{tpu_custom_call.1} parent=1 // pred_check_branch
      %138 = sbr.rel (0) target = $region53
    $region52: #{tpu_custom_call.1} parent=1 // pred_region
      %s140 = ssub.s32 32, 32
      %141 = vsyncadd [#allocation15], %s140
      %s142 = sshll.u32 [#allocation16], 4
      %s143 = int_to_ptr.vmem [resolvable:$true] %s142
      %148 = dma.hbm_to_vmem [thread:$0]  %s12, 32, %s143, [#allocation15], 16, 16, 1
    $region53: #{tpu_custom_call.1} parent=1 // pred_fallthru
      _
    // Predicated region
    $region54: #{tpu_custom_call.1} parent=1 // pred_check
      _
    $region55: #{tpu_custom_call.1} parent=1 // pred_check_branch
      %150 = sbr.rel (0) target = $region57
    $region56: #{tpu_custom_call.1} parent=1 // pred_region
      _
    $region57: #{tpu_custom_call.1} parent=1 // pred_fallthru
      _
    // Predicated region
    $region58: #{tpu_custom_call.1} parent=1 // pred_check
      _
    $region59: #{tpu_custom_call.1} parent=1 // pred_check_branch
      %152 = sbr.rel (0) target = $region61
    $region60: #{tpu_custom_call.1} parent=1 // pred_region
      %s154 = ssub.s32 32, 32
      %155 = vsyncadd [#allocation18], %s154
      %s156 = sshll.u32 [#allocation17], 4
      %s157 = int_to_ptr.vmem [resolvable:$true] %s156
      %162 = dma.hbm_to_vmem [thread:$0]  %s14, 32, %s157, [#allocation18], 16, 16, 1
    $region61: #{tpu_custom_call.1} parent=1 // pred_fallthru
      _
    // Predicated region
    $region62: #{tpu_custom_call.1} parent=1 // pred_check
      _
    $region63: #{tpu_custom_call.1} parent=1 // pred_check_branch
      %164 = sbr.rel (0) target = $region65
    $region64: #{tpu_custom_call.1} parent=1 // pred_region
      %s166 = ssub.s32 32, 32
      %167 = vsyncadd [#allocation18], %s166
      %s168 = sshll.u32 [#allocation19], 4
      %s169 = int_to_ptr.vmem [resolvable:$true] %s168
      %174 = dma.hbm_to_vmem [thread:$0]  %s15, 32, %s169, [#allocation18], 16, 16, 1
    $region65: #{tpu_custom_call.1} parent=1 // pred_fallthru
      _
    // Predicated region
    $region66: #{tpu_custom_call.1} parent=1 // pred_check
      _
    $region67: #{tpu_custom_call.1} parent=1 // pred_check_branch
      %176 = sbr.rel (0) target = $region69
    $region68: #{tpu_custom_call.1} parent=1 // pred_region
      %s178 = ssub.s32 32, 32
      %179 = vsyncadd [#allocation21], %s178
      %s180 = sshll.u32 [#allocation20], 4
      %s181 = int_to_ptr.vmem [resolvable:$true] %s180
      %186 = dma.hbm_to_vmem [thread:$0]  %s16, 32, %s181, [#allocation21], 16, 16, 1
    $region69: #{tpu_custom_call.1} parent=1 // pred_fallthru
      _
    // Predicated region
    $region70: #{tpu_custom_call.1} parent=1 // pred_check
      _
    $region71: #{tpu_custom_call.1} parent=1 // pred_check_branch
      %188 = sbr.rel (0) target = $region73
    $region72: #{tpu_custom_call.1} parent=1 // pred_region
      %s190 = ssub.s32 256, 256
      %191 = vsyncadd [#allocation21], %s190
      %s192 = sshll.u32 [#allocation22], 4
      %s193 = int_to_ptr.vmem [resolvable:$true] %s192
      %198 = dma.hbm_to_vmem [thread:$0]  %s17, 256, %s193, [#allocation21], 128, 128, 8
    $region73: #{tpu_custom_call.1} parent=1 // pred_fallthru
      _
    // Predicated region
    $region74: #{tpu_custom_call.1} parent=1 // pred_check
      _
    $region75: #{tpu_custom_call.1} parent=1 // pred_check_branch
      %200 = sbr.rel (0) target = $region77
    $region76: #{tpu_custom_call.1} parent=1 // pred_region
      %s202 = ssub.s32 16, 16
      %203 = vsyncadd [#allocation24], %s202
      %s205 = sshll.u32 [#allocation23], 4
      %s206 = int_to_ptr.vmem [resolvable:$true] %s205
      %208 = dma.hbm_to_vmem [thread:$0]  %s18, 16, %s206, [#allocation24]
    $region77: #{tpu_custom_call.1} parent=1 // pred_fallthru
      _
    // Predicated region
    $region78: #{tpu_custom_call.1} parent=1 // pred_check
      _
    $region79: #{tpu_custom_call.1} parent=1 // pred_check_branch
      %210 = sbr.rel (0) target = $region81
    $region80: #{tpu_custom_call.1} parent=1 // pred_region
      _
    $region81: #{tpu_custom_call.1} parent=1 // pred_fallthru
      _
    // Predicated region
    $region82: #{tpu_custom_call.1} parent=1 // pred_check
      _
    $region83: #{tpu_custom_call.1} parent=1 // pred_check_branch
      %212 = sbr.rel (0) target = $region85
    $region84: #{tpu_custom_call.1} parent=1 // pred_region
      _
    $region85: #{tpu_custom_call.1} parent=1 // pred_fallthru
      _
    // Predicated region
    $region86: #{tpu_custom_call.1} parent=1 // pred_check
      _
    $region87: #{tpu_custom_call.1} parent=1 // pred_check_branch
      %214 = sbr.rel (0) target = $region89
    $region88: #{tpu_custom_call.1} parent=1 // pred_region
      _
    $region89: #{tpu_custom_call.1} parent=1 // pred_fallthru
      _
    // Predicated region
    $region90: #{tpu_custom_call.1} parent=1 // pred_check
      _
    $region91: #{tpu_custom_call.1} parent=1 // pred_check_branch
      %216 = sbr.rel (0) target = $region93
    $region92: #{tpu_custom_call.1} parent=1 // pred_region
      _
    $region93: #{tpu_custom_call.1} parent=1 // pred_fallthru
      _
    // Predicated region
    $region94: #{tpu_custom_call.1} parent=1 // pred_check
      _
    $region95: #{tpu_custom_call.1} parent=1 // pred_check_branch
      %218 = sbr.rel (0) target = $region97
    $region96: #{tpu_custom_call.1} parent=1 // pred_region
      _
    $region97: #{tpu_custom_call.1} parent=1 // pred_fallthru
      _
    // Predicated region
    $region98: #{tpu_custom_call.1} parent=1 // pred_check
      _
    $region99: #{tpu_custom_call.1} parent=1 // pred_check_branch
      %220 = sbr.rel (0) target = $region101
    $region100: #{tpu_custom_call.1} parent=1 // pred_region
      %221 = dma.done [#allocation4], 256
    $region101: #{tpu_custom_call.1} parent=1 // pred_fallthru
      _
    // Predicated region
    $region102: #{tpu_custom_call.1} parent=1 // pred_check
      _
    $region103: #{tpu_custom_call.1} parent=1 // pred_check_branch
      %223 = sbr.rel (0) target = $region105
    $region104: #{tpu_custom_call.1} parent=1 // pred_region
      %224 = dma.done [#allocation6], 32
    $region105: #{tpu_custom_call.1} parent=1 // pred_fallthru
      _
    // Predicated region
    $region106: #{tpu_custom_call.1} parent=1 // pred_check
      _
    $region107: #{tpu_custom_call.1} parent=1 // pred_check_branch
      %226 = sbr.rel (0) target = $region109
    $region108: #{tpu_custom_call.1} parent=1 // pred_region
      %227 = dma.done [#allocation6], 16
    $region109: #{tpu_custom_call.1} parent=1 // pred_fallthru
      _
    // Predicated region
    $region110: #{tpu_custom_call.1} parent=1 // pred_check
      _
    $region111: #{tpu_custom_call.1} parent=1 // pred_check_branch
      %229 = sbr.rel (0) target = $region113
    $region112: #{tpu_custom_call.1} parent=1 // pred_region
      %230 = dma.done [#allocation9], 16
    $region113: #{tpu_custom_call.1} parent=1 // pred_fallthru
      _
    // Predicated region
    $region114: #{tpu_custom_call.1} parent=1 // pred_check
      _
    $region115: #{tpu_custom_call.1} parent=1 // pred_check_branch
      %232 = sbr.rel (0) target = $region117
    $region116: #{tpu_custom_call.1} parent=1 // pred_region
      %233 = dma.done [#allocation9], 32
    $region117: #{tpu_custom_call.1} parent=1 // pred_fallthru
      _
    // Predicated region
    $region118: #{tpu_custom_call.1} parent=1 // pred_check
      _
    $region119: #{tpu_custom_call.1} parent=1 // pred_check_branch
      %235 = sbr.rel (0) target = $region121
    $region120: #{tpu_custom_call.1} parent=1 // pred_region
      %236 = dma.done [#allocation12], 32
    $region121: #{tpu_custom_call.1} parent=1 // pred_fallthru
      _
    // Predicated region
    $region122: #{tpu_custom_call.1} parent=1 // pred_check
      _
    $region123: #{tpu_custom_call.1} parent=1 // pred_check_branch
      %238 = sbr.rel (0) target = $region125
    $region124: #{tpu_custom_call.1} parent=1 // pred_region
      %239 = dma.done [#allocation12], 32
    $region125: #{tpu_custom_call.1} parent=1 // pred_fallthru
      _
    // Predicated region
    $region126: #{tpu_custom_call.1} parent=1 // pred_check
      _
    $region127: #{tpu_custom_call.1} parent=1 // pred_check_branch
      %241 = sbr.rel (0) target = $region129
    $region128: #{tpu_custom_call.1} parent=1 // pred_region
      %242 = dma.done [#allocation15], 32
    $region129: #{tpu_custom_call.1} parent=1 // pred_fallthru
      _
    // Predicated region
    $region130: #{tpu_custom_call.1} parent=1 // pred_check
      _
    $region131: #{tpu_custom_call.1} parent=1 // pred_check_branch
      %244 = sbr.rel (0) target = $region133
    $region132: #{tpu_custom_call.1} parent=1 // pred_region
      %245 = dma.done [#allocation15], 32
    $region133: #{tpu_custom_call.1} parent=1 // pred_fallthru
      _
    // Predicated region
    $region134: #{tpu_custom_call.1} parent=1 // pred_check
      _
    $region135: #{tpu_custom_call.1} parent=1 // pred_check_branch
      %247 = sbr.rel (0) target = $region137
    $region136: #{tpu_custom_call.1} parent=1 // pred_region
      %248 = dma.done [#allocation18], 32
    $region137: #{tpu_custom_call.1} parent=1 // pred_fallthru
      _
    // Predicated region
    $region138: #{tpu_custom_call.1} parent=1 // pred_check
      _
    $region139: #{tpu_custom_call.1} parent=1 // pred_check_branch
      %250 = sbr.rel (0) target = $region141
    $region140: #{tpu_custom_call.1} parent=1 // pred_region
      %251 = dma.done [#allocation18], 32
    $region141: #{tpu_custom_call.1} parent=1 // pred_fallthru
      _
    // Predicated region
    $region142: #{tpu_custom_call.1} parent=1 // pred_check
      _
    $region143: #{tpu_custom_call.1} parent=1 // pred_check_branch
      %253 = sbr.rel (0) target = $region145
    $region144: #{tpu_custom_call.1} parent=1 // pred_region
      %254 = dma.done [#allocation21], 32
    $region145: #{tpu_custom_call.1} parent=1 // pred_fallthru
      _
    // Predicated region
    $region146: #{tpu_custom_call.1} parent=1 // pred_check
      _
    $region147: #{tpu_custom_call.1} parent=1 // pred_check_branch
      %256 = sbr.rel (0) target = $region149
    $region148: #{tpu_custom_call.1} parent=1 // pred_region
      %257 = dma.done [#allocation21], 256
    $region149: #{tpu_custom_call.1} parent=1 // pred_fallthru
      _
    // Predicated region
    $region150: #{tpu_custom_call.1} parent=1 // pred_check
      _
    $region151: #{tpu_custom_call.1} parent=1 // pred_check_branch
      %259 = sbr.rel (0) target = $region153
    $region152: #{tpu_custom_call.1} parent=1 // pred_region
      %260 = dma.done [#allocation24], 16
    $region153: #{tpu_custom_call.1} parent=1 // pred_fallthru
      _
    %v261 = vld [vmem:[#allocation3] sm:$0xff]
    %v262 = vld [vmem:[#allocation3 + $0x8] sm:$0xff]
    %v263 = vld [vmem:[#allocation7] sm:$0x1]
    %v264 = vld [vmem:[#allocation8] sm:$0x1]
    %vm265 = vcmask 261120
    %v266 = vsel %vm265, %v261, 0.0
    %267 = vadd.xlane.f32.xlu0 %v266
    %v268 = vpop.xlane.xlu0 %267
    %v269 = vsel %vm265, %v262, 0.0
    %270 = vadd.xlane.f32.xlu0 %v269
    %v271 = vpop.xlane.xlu0 %270
    %v272 = vrcp.pop 32.0
    %v273 = vmul.f32 %v268, %v272
    %v274 = vmul.f32 %v271, %v272
    %v275 = vsub.f32 %v261, %v273
    %v276 = vsub.f32 %v262, %v274
    %v277 = vmul.f32 %v275, %v275
    %v278 = vmul.f32 %v276, %v276
    %v279 = vsel %vm265, %v277, 0.0
    %280 = vadd.xlane.f32.xlu0 %v279
    %v281 = vpop.xlane.xlu0 %280
    %v282 = vsel %vm265, %v278, 0.0
    %283 = vadd.xlane.f32.xlu0 %v282
    %v284 = vpop.xlane.xlu0 %283
    %v285 = vmul.f32 %v281, %v272
    %v286 = vmul.f32 %v284, %v272
    %v287 = vadd.f32 %v285, 1e-12
    %v288 = vadd.f32 %v286, 1e-12
    %v289 = vrsqrt.pop %v287
    %v290 = vrsqrt.pop %v288
    %v291 = vmul.f32 %v275, %v289
    %v292 = vmul.f32 %v276, %v290
    %v294 = vlaneseq
    %v295 = vshrl.u32 %v294, 7
    %v296 = vsub.s32 0, %v295
    %v297 = vrot.slane %v263, %v296
    %v299 = vmul.f32 %v291, %v297
    %v300 = vmul.f32 %v292, %v297
    %v302 = vlaneseq
    %v303 = vshrl.u32 %v302, 7
    %v304 = vsub.s32 0, %v303
    %v305 = vrot.slane %v264, %v304
    %v307 = vadd.f32 %v299, %v305
    %v308 = vadd.f32 %v300, %v305
    %v309 = vld [vmem:[%s1] sm:$0x1]
    %v310 = vld [vmem:[%s1 + $0x1] sm:$0x1]
    %v311 = vsub.f32 1.0, %v309
    %v312 = vsub.f32 1.0, %v310
    %v313 = vmul.f32 %v311, -1e+09
    %v314 = vmul.f32 %v312, -1e+09
    %v315 = vld [vmem:[%s5] sm:$0xff]
    %v316 = vld [vmem:[%s5 + $0x8] sm:$0xff]
    %v317 = vld [vmem:[%s5 + $0x10] sm:$0xff]
    %v318 = vld [vmem:[%s5 + $0x18] sm:$0xff]
    %v319 = vld [vmem:[#allocation10] sm:$0x1]
    %v321 = vlaneseq
    %v322 = vshrl.u32 %v321, 7
    %v323 = vsub.s32 0, %v322
    %v324 = vrot.slane %v319, %v323
    %v327 = vsel %vm265, %v307, 0
    %v330 = vsel %vm265, %v308, 0
    %332 = vmatprep.subr.mxu0 0.0
    %333 = vmatpush1.msra.mxu0 0.0
    %334 = vmatprep.subr.mxu0 0.0
    %335 = vmatpush1.msra.mxu0 0.0
    %336 = vmatprep.subr.mxu0 0.0
    %337 = vmatpush1.msra.mxu0 0.0
    %338 = vmatprep.subr.mxu0 0.0
    %339 = vmatpush1.msra.mxu0 0.0
    %340 = vmatprep.subr.mxu0 0.0
    %341 = vmatpush1.msra.mxu0 0.0
    %342 = vmatprep.subr.mxu0 0.0
    %343 = vmatpush1.msra.mxu0 0.0
    %344 = vmatprep.subr.mxu0 0.0
    %345 = vmatpush1.msra.mxu0 0.0
    %346 = vmatprep.subr.mxu0 0.0
    %347 = vmatpush1.msra.mxu0 0.0
    %348 = vmatprep.subr.mxu0 0.0
    %349 = vmatpush1.msra.mxu0 0.0
    %350 = vmatprep.subr.mxu0 0.0
    %351 = vmatpush1.msra.mxu0 0.0
    %352 = vmatprep.subr.mxu0 0.0
    %353 = vmatpush1.msra.mxu0 0.0
    %354 = vmatprep.subr.mxu0 0.0
    %355 = vmatpush1.msra.mxu0 0.0
    %356 = vmatprep.subr.mxu0 0.0
    %357 = vmatpush1.msra.mxu0 %v318
    %358 = vmatprep.subr.mxu0 0.0
    %359 = vmatpush1.msra.mxu0 %v317
    %360 = vmatprep.subr.mxu0 0.0
    %361 = vmatpush1.msra.mxu0 %v316
    %362 = vmatprep.subr.mxu0 0.0
    %363 = vmatpush1.msra.mxu0 %v315
    %364 = vmatprep.subr.mxu0 0.0
    %365 = vmatpush2.msra.mxu0 0.0
    %366 = vmatprep.subr.mxu0 0.0
    %367 = vmatpush2.msra.mxu0 0.0
    %368 = vmatprep.subr.mxu0 0.0
    %369 = vmatpush2.msra.mxu0 0.0
    %370 = vmatprep.subr.mxu0 0.0
    %371 = vmatpush2.msra.mxu0 0.0
    %372 = vmatprep.subr.mxu0 0.0
    %373 = vmatpush2.msra.mxu0 0.0
    %374 = vmatprep.subr.mxu0 0.0
    %375 = vmatpush2.msra.mxu0 0.0
    %376 = vmatprep.subr.mxu0 0.0
    %377 = vmatpush2.msra.mxu0 0.0
    %378 = vmatprep.subr.mxu0 0.0
    %379 = vmatpush2.msra.mxu0 0.0
    %380 = vmatprep.subr.mxu0 0.0
    %381 = vmatpush2.msra.mxu0 0.0
    %382 = vmatprep.subr.mxu0 0.0
    %383 = vmatpush2.msra.mxu0 0.0
    %384 = vmatprep.subr.mxu0 0.0
    %385 = vmatpush2.msra.mxu0 0.0
    %386 = vmatprep.subr.mxu0 0.0
    %387 = vmatpush2.msra.mxu0 0.0
    %388 = vmatprep.subr.mxu0 0.0
    %389 = vmatpush2.msra.mxu0 0.0
    %390 = vmatprep.subr.mxu0 0.0
    %391 = vmatpush2.msra.mxu0 0.0
    %392 = vmatprep.subr.mxu0 0.0
    %393 = vmatpush2.msra.mxu0 0.0
    %394 = vmatprep.subr.mxu0 0.0
    %395 = vmatpush2.msra.mxu0 0.0
    %396 = vmatprep.mubr.f32.mxu0 0.0
    %397 = vmatmul.mubr.f32.gmra.mxu0 %v327
    %v398 = vpop.f32.mrf.mxu0
    %v399 = vadd.f32 %v324, %v398
    %v400 = vpop.f32.mrf.mxu0
    %401 = vmatprep.mubr.f32.mxu0 0.0
    %402 = vmatmul.mubr.f32.gmra.mxu0 %v330
    %v403 = vpop.f32.mrf.mxu0
    %v404 = vadd.f32 %v324, %v403
    %v405 = vpop.f32.mrf.mxu0
    %406 = vdwg.mxu0
    %v407 = vld [vmem:[%s7] sm:$0xff]
    %v408 = vld [vmem:[%s7 + $0x8] sm:$0xff]
    %v409 = vld [vmem:[%s7 + $0x10] sm:$0xff]
    %v410 = vld [vmem:[%s7 + $0x18] sm:$0xff]
    %412 = vrot.lane.b32.xlu0 %v399, 96
    %v413 = vpop.permute.xlu0 %412
    %vm414 = vcmask 130048
    %v415 = vsel %vm414, %v399, 0
    %v417 = vsel %vm414, %v413, 0
    %419 = vmatprep.subr.mxu0 0.0
    %420 = vmatpush1.xpose.msra.mxu0 0.0
    %421 = vmatprep.subr.mxu0 0.0
    %422 = vmatpush1.xpose.msra.mxu0 0.0
    %423 = vmatprep.subr.mxu0 0.0
    %424 = vmatpush1.xpose.msra.mxu0 0.0
    %425 = vmatprep.subr.mxu0 0.0
    %426 = vmatpush1.xpose.msra.mxu0 0.0
    %427 = vmatprep.subr.mxu0 0.0
    %428 = vmatpush1.xpose.msra.mxu0 0.0
    %429 = vmatprep.subr.mxu0 0.0
    %430 = vmatpush1.xpose.msra.mxu0 0.0
    %431 = vmatprep.subr.mxu0 0.0
    %432 = vmatpush1.xpose.msra.mxu0 0.0
    %433 = vmatprep.subr.mxu0 0.0
    %434 = vmatpush1.xpose.msra.mxu0 0.0
    %435 = vmatprep.subr.mxu0 0.0
    %436 = vmatpush1.xpose.msra.mxu0 0.0
    %437 = vmatprep.subr.mxu0 0.0
    %438 = vmatpush1.xpose.msra.mxu0 0.0
    %439 = vmatprep.subr.mxu0 0.0
    %440 = vmatpush1.xpose.msra.mxu0 0.0
    %441 = vmatprep.subr.mxu0 0.0
    %442 = vmatpush1.xpose.msra.mxu0 0.0
    %443 = vmatprep.subr.mxu0 0.0
    %444 = vmatpush1.xpose.msra.mxu0 0.0
    %445 = vmatprep.subr.mxu0 0.0
    %446 = vmatpush1.xpose.msra.mxu0 0.0
    %447 = vmatprep.subr.mxu0 0.0
    %448 = vmatpush1.xpose.msra.mxu0 0.0
    %449 = vmatprep.subr.mxu0 0.0
    %450 = vmatpush1.xpose.msra.mxu0 %v417
    %451 = vmatprep.subr.mxu0 0.0
    %452 = vmatpush2.xpose.msra.mxu0 0.0
    %453 = vmatprep.subr.mxu0 0.0
    %454 = vmatpush2.xpose.msra.mxu0 0.0
    %455 = vmatprep.subr.mxu0 0.0
    %456 = vmatpush2.xpose.msra.mxu0 0.0
    %457 = vmatprep.subr.mxu0 0.0
    %458 = vmatpush2.xpose.msra.mxu0 0.0
    %459 = vmatprep.subr.mxu0 0.0
    %460 = vmatpush2.xpose.msra.mxu0 0.0
    %461 = vmatprep.subr.mxu0 0.0
    %462 = vmatpush2.xpose.msra.mxu0 0.0
    %463 = vmatprep.subr.mxu0 0.0
    %464 = vmatpush2.xpose.msra.mxu0 0.0
    %465 = vmatprep.subr.mxu0 0.0
    %466 = vmatpush2.xpose.msra.mxu0 0.0
    %467 = vmatprep.subr.mxu0 0.0
    %468 = vmatpush2.xpose.msra.mxu0 0.0
    %469 = vmatprep.subr.mxu0 0.0
    %470 = vmatpush2.xpose.msra.mxu0 0.0
    %471 = vmatprep.subr.mxu0 0.0
    %472 = vmatpush2.xpose.msra.mxu0 0.0
    %473 = vmatprep.subr.mxu0 0.0
    %474 = vmatpush2.xpose.msra.mxu0 0.0
    %475 = vmatprep.subr.mxu0 0.0
    %476 = vmatpush2.xpose.msra.mxu0 0.0
    %477 = vmatprep.subr.mxu0 0.0
    %478 = vmatpush2.xpose.msra.mxu0 0.0
    %479 = vmatprep.subr.mxu0 0.0
    %480 = vmatpush2.xpose.msra.mxu0 0.0
    %481 = vmatprep.subr.mxu0 0.0
    %482 = vmatpush2.xpose.msra.mxu0 0.0
    %483 = vmatprep.mubr.f32.mxu0 0.0
    %484 = vmatmul.mubr.f32.gmra.mxu0 %v415
    %v485 = vpop.f32.mrf.mxu0
    %v486 = vadd.f32 0.0, %v485
    %v487 = vpop.f32.mrf.mxu0
    %488 = vdwg.mxu0
    %490 = vrot.lane.b32.xlu0 %v404, 96
    %v491 = vpop.permute.xlu0 %490
    %v492 = vsel %vm414, %v404, 0
    %v494 = vsel %vm414, %v491, 0
    %496 = vmatprep.subr.mxu0 0.0
    %497 = vmatpush1.xpose.msra.mxu0 0.0
    %498 = vmatprep.subr.mxu0 0.0
    %499 = vmatpush1.xpose.msra.mxu0 0.0
    %500 = vmatprep.subr.mxu0 0.0
    %501 = vmatpush1.xpose.msra.mxu0 0.0
    %502 = vmatprep.subr.mxu0 0.0
    %503 = vmatpush1.xpose.msra.mxu0 0.0
    %504 = vmatprep.subr.mxu0 0.0
    %505 = vmatpush1.xpose.msra.mxu0 0.0
    %506 = vmatprep.subr.mxu0 0.0
    %507 = vmatpush1.xpose.msra.mxu0 0.0
    %508 = vmatprep.subr.mxu0 0.0
    %509 = vmatpush1.xpose.msra.mxu0 0.0
    %510 = vmatprep.subr.mxu0 0.0
    %511 = vmatpush1.xpose.msra.mxu0 0.0
    %512 = vmatprep.subr.mxu0 0.0
    %513 = vmatpush1.xpose.msra.mxu0 0.0
    %514 = vmatprep.subr.mxu0 0.0
    %515 = vmatpush1.xpose.msra.mxu0 0.0
    %516 = vmatprep.subr.mxu0 0.0
    %517 = vmatpush1.xpose.msra.mxu0 0.0
    %518 = vmatprep.subr.mxu0 0.0
    %519 = vmatpush1.xpose.msra.mxu0 0.0
    %520 = vmatprep.subr.mxu0 0.0
    %521 = vmatpush1.xpose.msra.mxu0 0.0
    %522 = vmatprep.subr.mxu0 0.0
    %523 = vmatpush1.xpose.msra.mxu0 0.0
    %524 = vmatprep.subr.mxu0 0.0
    %525 = vmatpush1.xpose.msra.mxu0 0.0
    %526 = vmatprep.subr.mxu0 0.0
    %527 = vmatpush1.xpose.msra.mxu0 %v494
    %528 = vmatprep.subr.mxu0 0.0
    %529 = vmatpush2.xpose.msra.mxu0 0.0
    %530 = vmatprep.subr.mxu0 0.0
    %531 = vmatpush2.xpose.msra.mxu0 0.0
    %532 = vmatprep.subr.mxu0 0.0
    %533 = vmatpush2.xpose.msra.mxu0 0.0
    %534 = vmatprep.subr.mxu0 0.0
    %535 = vmatpush2.xpose.msra.mxu0 0.0
    %536 = vmatprep.subr.mxu0 0.0
    %537 = vmatpush2.xpose.msra.mxu0 0.0
    %538 = vmatprep.subr.mxu0 0.0
    %539 = vmatpush2.xpose.msra.mxu0 0.0
    %540 = vmatprep.subr.mxu0 0.0
    %541 = vmatpush2.xpose.msra.mxu0 0.0
    %542 = vmatprep.subr.mxu0 0.0
    %543 = vmatpush2.xpose.msra.mxu0 0.0
    %544 = vmatprep.subr.mxu0 0.0
    %545 = vmatpush2.xpose.msra.mxu0 0.0
    %546 = vmatprep.subr.mxu0 0.0
    %547 = vmatpush2.xpose.msra.mxu0 0.0
    %548 = vmatprep.subr.mxu0 0.0
    %549 = vmatpush2.xpose.msra.mxu0 0.0
    %550 = vmatprep.subr.mxu0 0.0
    %551 = vmatpush2.xpose.msra.mxu0 0.0
    %552 = vmatprep.subr.mxu0 0.0
    %553 = vmatpush2.xpose.msra.mxu0 0.0
    %554 = vmatprep.subr.mxu0 0.0
    %555 = vmatpush2.xpose.msra.mxu0 0.0
    %556 = vmatprep.subr.mxu0 0.0
    %557 = vmatpush2.xpose.msra.mxu0 0.0
    %558 = vmatprep.subr.mxu0 0.0
    %559 = vmatpush2.xpose.msra.mxu0 0.0
    %560 = vmatprep.mubr.f32.mxu0 0.0
    %561 = vmatmul.mubr.f32.gmra.mxu0 %v492
    %v562 = vpop.f32.mrf.mxu0
    %v563 = vadd.f32 0.0, %v562
    %v564 = vpop.f32.mrf.mxu0
    %565 = vdwg.mxu0
    %v566 = vmul.f32 %v486, 0.25
    %v567 = vmul.f32 %v563, 0.25
    %v570 = vlaneseq
    %v571 = vshrl.u32 %v570, 7
    %v572 = vsub.s32 0, %v571
    %v573 = vrot.slane %v313, %v572
    %v574 = vlaneseq
    %v575 = vshrl.u32 %v574, 7
    %v576 = vsub.s32 0, %v575
    %v577 = vrot.slane %v314, %v576
    %v580 = vadd.f32 %v566, %v573
    %v581 = vadd.f32 %v567, %v577
    %vm582 = vcmask 64512
    %v583 = vsel %vm582, %v580, -inf
    %584 = vmax.xlane.f32.xlu0 %v583
    %v585 = vpop.xlane.xlu0 %584
    %v586 = vsel %vm582, %v581, -inf
    %587 = vmax.xlane.f32.xlu0 %v586
    %v588 = vpop.xlane.xlu0 %587
    %v589 = vsub.f32 %v580, %v585
    %v590 = vsub.f32 %v581, %v588
    %v591 = vmul.f32 %v589, 1.442695
    %v592 = vpow.pop %v591
    %v593 = vmul.f32 %v590, 1.442695
    %v594 = vpow.pop %v593
    %v595 = vsel %vm582, %v592, 0.0
    %596 = vadd.xlane.f32.xlu0 %v595
    %v597 = vpop.xlane.xlu0 %596
    %v598 = vsel %vm582, %v594, 0.0
    %599 = vadd.xlane.f32.xlu0 %v598
    %v600 = vpop.xlane.xlu0 %599
    %v601 = vrcp.pop %v597
    %v602 = vrcp.pop %v600
    %v603 = vmul.f32 %v592, %v601
    %v604 = vmul.f32 %v594, %v602
    %605 = vrot.lane.b32.xlu0 %v399, 64
    %v606 = vpop.permute.xlu0 %605
    %v609 = vsel %vm582, %v603, 0
    %611 = vmatprep.subr.mxu0 0.0
    %612 = vmatpush1.msra.mxu0 0.0
    %613 = vmatprep.subr.mxu0 0.0
    %614 = vmatpush1.msra.mxu0 0.0
    %615 = vmatprep.subr.mxu0 0.0
    %616 = vmatpush1.msra.mxu0 0.0
    %617 = vmatprep.subr.mxu0 0.0
    %618 = vmatpush1.msra.mxu0 0.0
    %619 = vmatprep.subr.mxu0 0.0
    %620 = vmatpush1.msra.mxu0 0.0
    %621 = vmatprep.subr.mxu0 0.0
    %622 = vmatpush1.msra.mxu0 0.0
    %623 = vmatprep.subr.mxu0 0.0
    %624 = vmatpush1.msra.mxu0 0.0
    %625 = vmatprep.subr.mxu0 0.0
    %626 = vmatpush1.msra.mxu0 0.0
    %627 = vmatprep.subr.mxu0 0.0
    %628 = vmatpush1.msra.mxu0 0.0
    %629 = vmatprep.subr.mxu0 0.0
    %630 = vmatpush1.msra.mxu0 0.0
    %631 = vmatprep.subr.mxu0 0.0
    %632 = vmatpush1.msra.mxu0 0.0
    %633 = vmatprep.subr.mxu0 0.0
    %634 = vmatpush1.msra.mxu0 0.0
    %635 = vmatprep.subr.mxu0 0.0
    %636 = vmatpush1.msra.mxu0 0.0
    %637 = vmatprep.subr.mxu0 0.0
    %638 = vmatpush1.msra.mxu0 0.0
    %639 = vmatprep.subr.mxu0 0.0
    %640 = vmatpush1.msra.mxu0 0.0
    %641 = vmatprep.subr.mxu0 0.0
    %642 = vmatpush1.msra.mxu0 %v606
    %643 = vmatprep.subr.mxu0 0.0
    %644 = vmatpush2.msra.mxu0 0.0
    %645 = vmatprep.subr.mxu0 0.0
    %646 = vmatpush2.msra.mxu0 0.0
    %647 = vmatprep.subr.mxu0 0.0
    %648 = vmatpush2.msra.mxu0 0.0
    %649 = vmatprep.subr.mxu0 0.0
    %650 = vmatpush2.msra.mxu0 0.0
    %651 = vmatprep.subr.mxu0 0.0
    %652 = vmatpush2.msra.mxu0 0.0
    %653 = vmatprep.subr.mxu0 0.0
    %654 = vmatpush2.msra.mxu0 0.0
    %655 = vmatprep.subr.mxu0 0.0
    %656 = vmatpush2.msra.mxu0 0.0
    %657 = vmatprep.subr.mxu0 0.0
    %658 = vmatpush2.msra.mxu0 0.0
    %659 = vmatprep.subr.mxu0 0.0
    %660 = vmatpush2.msra.mxu0 0.0
    %661 = vmatprep.subr.mxu0 0.0
    %662 = vmatpush2.msra.mxu0 0.0
    %663 = vmatprep.subr.mxu0 0.0
    %664 = vmatpush2.msra.mxu0 0.0
    %665 = vmatprep.subr.mxu0 0.0
    %666 = vmatpush2.msra.mxu0 0.0
    %667 = vmatprep.subr.mxu0 0.0
    %668 = vmatpush2.msra.mxu0 0.0
    %669 = vmatprep.subr.mxu0 0.0
    %670 = vmatpush2.msra.mxu0 0.0
    %671 = vmatprep.subr.mxu0 0.0
    %672 = vmatpush2.msra.mxu0 0.0
    %673 = vmatprep.subr.mxu0 0.0
    %674 = vmatpush2.msra.mxu0 0.0
    %675 = vmatprep.mubr.f32.mxu0 0.0
    %676 = vmatmul.mubr.f32.gmra.mxu0 %v609
    %v677 = vpop.f32.mrf.mxu0
    %v678 = vadd.f32 0.0, %v677
    %v679 = vpop.f32.mrf.mxu0
    %680 = vdwg.mxu0
    %681 = vrot.lane.b32.xlu0 %v404, 64
    %v682 = vpop.permute.xlu0 %681
    %v685 = vsel %vm582, %v604, 0
    %687 = vmatprep.subr.mxu0 0.0
    %688 = vmatpush1.msra.mxu0 0.0
    %689 = vmatprep.subr.mxu0 0.0
    %690 = vmatpush1.msra.mxu0 0.0
    %691 = vmatprep.subr.mxu0 0.0
    %692 = vmatpush1.msra.mxu0 0.0
    %693 = vmatprep.subr.mxu0 0.0
    %694 = vmatpush1.msra.mxu0 0.0
    %695 = vmatprep.subr.mxu0 0.0
    %696 = vmatpush1.msra.mxu0 0.0
    %697 = vmatprep.subr.mxu0 0.0
    %698 = vmatpush1.msra.mxu0 0.0
    %699 = vmatprep.subr.mxu0 0.0
    %700 = vmatpush1.msra.mxu0 0.0
    %701 = vmatprep.subr.mxu0 0.0
    %702 = vmatpush1.msra.mxu0 0.0
    %703 = vmatprep.subr.mxu0 0.0
    %704 = vmatpush1.msra.mxu0 0.0
    %705 = vmatprep.subr.mxu0 0.0
    %706 = vmatpush1.msra.mxu0 0.0
    %707 = vmatprep.subr.mxu0 0.0
    %708 = vmatpush1.msra.mxu0 0.0
    %709 = vmatprep.subr.mxu0 0.0
    %710 = vmatpush1.msra.mxu0 0.0
    %711 = vmatprep.subr.mxu0 0.0
    %712 = vmatpush1.msra.mxu0 0.0
    %713 = vmatprep.subr.mxu0 0.0
    %714 = vmatpush1.msra.mxu0 0.0
    %715 = vmatprep.subr.mxu0 0.0
    %716 = vmatpush1.msra.mxu0 0.0
    %717 = vmatprep.subr.mxu0 0.0
    %718 = vmatpush1.msra.mxu0 %v682
    %719 = vmatprep.subr.mxu0 0.0
    %720 = vmatpush2.msra.mxu0 0.0
    %721 = vmatprep.subr.mxu0 0.0
    %722 = vmatpush2.msra.mxu0 0.0
    %723 = vmatprep.subr.mxu0 0.0
    %724 = vmatpush2.msra.mxu0 0.0
    %725 = vmatprep.subr.mxu0 0.0
    %726 = vmatpush2.msra.mxu0 0.0
    %727 = vmatprep.subr.mxu0 0.0
    %728 = vmatpush2.msra.mxu0 0.0
    %729 = vmatprep.subr.mxu0 0.0
    %730 = vmatpush2.msra.mxu0 0.0
    %731 = vmatprep.subr.mxu0 0.0
    %732 = vmatpush2.msra.mxu0 0.0
    %733 = vmatprep.subr.mxu0 0.0
    %734 = vmatpush2.msra.mxu0 0.0
    %735 = vmatprep.subr.mxu0 0.0
    %736 = vmatpush2.msra.mxu0 0.0
    %737 = vmatprep.subr.mxu0 0.0
    %738 = vmatpush2.msra.mxu0 0.0
    %739 = vmatprep.subr.mxu0 0.0
    %740 = vmatpush2.msra.mxu0 0.0
    %741 = vmatprep.subr.mxu0 0.0
    %742 = vmatpush2.msra.mxu0 0.0
    %743 = vmatprep.subr.mxu0 0.0
    %744 = vmatpush2.msra.mxu0 0.0
    %745 = vmatprep.subr.mxu0 0.0
    %746 = vmatpush2.msra.mxu0 0.0
    %747 = vmatprep.subr.mxu0 0.0
    %748 = vmatpush2.msra.mxu0 0.0
    %749 = vmatprep.subr.mxu0 0.0
    %750 = vmatpush2.msra.mxu0 0.0
    %751 = vmatprep.mubr.f32.mxu0 0.0
    %752 = vmatmul.mubr.f32.gmra.mxu0 %v685
    %v753 = vpop.f32.mrf.mxu0
    %v754 = vadd.f32 0.0, %v753
    %v755 = vpop.f32.mrf.mxu0
    %756 = vdwg.mxu0
    %757 = vrot.lane.b32.xlu0 %v399, 112
    %v758 = vpop.permute.xlu0 %757
    %759 = vrot.lane.b32.xlu0 %v399, 80
    %v760 = vpop.permute.xlu0 %759
    %v761 = vsel %vm414, %v758, 0
    %v763 = vsel %vm414, %v760, 0
    %765 = vmatprep.subr.mxu0 0.0
    %766 = vmatpush1.xpose.msra.mxu0 0.0
    %767 = vmatprep.subr.mxu0 0.0
    %768 = vmatpush1.xpose.msra.mxu0 0.0
    %769 = vmatprep.subr.mxu0 0.0
    %770 = vmatpush1.xpose.msra.mxu0 0.0
    %771 = vmatprep.subr.mxu0 0.0
    %772 = vmatpush1.xpose.msra.mxu0 0.0
    %773 = vmatprep.subr.mxu0 0.0
    %774 = vmatpush1.xpose.msra.mxu0 0.0
    %775 = vmatprep.subr.mxu0 0.0
    %776 = vmatpush1.xpose.msra.mxu0 0.0
    %777 = vmatprep.subr.mxu0 0.0
    %778 = vmatpush1.xpose.msra.mxu0 0.0
    %779 = vmatprep.subr.mxu0 0.0
    %780 = vmatpush1.xpose.msra.mxu0 0.0
    %781 = vmatprep.subr.mxu0 0.0
    %782 = vmatpush1.xpose.msra.mxu0 0.0
    %783 = vmatprep.subr.mxu0 0.0
    %784 = vmatpush1.xpose.msra.mxu0 0.0
    %785 = vmatprep.subr.mxu0 0.0
    %786 = vmatpush1.xpose.msra.mxu0 0.0
    %787 = vmatprep.subr.mxu0 0.0
    %788 = vmatpush1.xpose.msra.mxu0 0.0
    %789 = vmatprep.subr.mxu0 0.0
    %790 = vmatpush1.xpose.msra.mxu0 0.0
    %791 = vmatprep.subr.mxu0 0.0
    %792 = vmatpush1.xpose.msra.mxu0 0.0
    %793 = vmatprep.subr.mxu0 0.0
    %794 = vmatpush1.xpose.msra.mxu0 0.0
    %795 = vmatprep.subr.mxu0 0.0
    %796 = vmatpush1.xpose.msra.mxu0 %v763
    %797 = vmatprep.subr.mxu0 0.0
    %798 = vmatpush2.xpose.msra.mxu0 0.0
    %799 = vmatprep.subr.mxu0 0.0
    %800 = vmatpush2.xpose.msra.mxu0 0.0
    %801 = vmatprep.subr.mxu0 0.0
    %802 = vmatpush2.xpose.msra.mxu0 0.0
    %803 = vmatprep.subr.mxu0 0.0
    %804 = vmatpush2.xpose.msra.mxu0 0.0
    %805 = vmatprep.subr.mxu0 0.0
    %806 = vmatpush2.xpose.msra.mxu0 0.0
    %807 = vmatprep.subr.mxu0 0.0
    %808 = vmatpush2.xpose.msra.mxu0 0.0
    %809 = vmatprep.subr.mxu0 0.0
    %810 = vmatpush2.xpose.msra.mxu0 0.0
    %811 = vmatprep.subr.mxu0 0.0
    %812 = vmatpush2.xpose.msra.mxu0 0.0
    %813 = vmatprep.subr.mxu0 0.0
    %814 = vmatpush2.xpose.msra.mxu0 0.0
    %815 = vmatprep.subr.mxu0 0.0
    %816 = vmatpush2.xpose.msra.mxu0 0.0
    %817 = vmatprep.subr.mxu0 0.0
    %818 = vmatpush2.xpose.msra.mxu0 0.0
    %819 = vmatprep.subr.mxu0 0.0
    %820 = vmatpush2.xpose.msra.mxu0 0.0
    %821 = vmatprep.subr.mxu0 0.0
    %822 = vmatpush2.xpose.msra.mxu0 0.0
    %823 = vmatprep.subr.mxu0 0.0
    %824 = vmatpush2.xpose.msra.mxu0 0.0
    %825 = vmatprep.subr.mxu0 0.0
    %826 = vmatpush2.xpose.msra.mxu0 0.0
    %827 = vmatprep.subr.mxu0 0.0
    %828 = vmatpush2.xpose.msra.mxu0 0.0
    %829 = vmatprep.mubr.f32.mxu0 0.0
    %830 = vmatmul.mubr.f32.gmra.mxu0 %v761
    %v831 = vpop.f32.mrf.mxu0
    %v832 = vadd.f32 0.0, %v831
    %v833 = vpop.f32.mrf.mxu0
    %834 = vdwg.mxu0
    %835 = vrot.lane.b32.xlu0 %v404, 112
    %v836 = vpop.permute.xlu0 %835
    %837 = vrot.lane.b32.xlu0 %v404, 80
    %v838 = vpop.permute.xlu0 %837
    %v839 = vsel %vm414, %v836, 0
    %v841 = vsel %vm414, %v838, 0
    %843 = vmatprep.subr.mxu0 0.0
    %844 = vmatpush1.xpose.msra.mxu0 0.0
    %845 = vmatprep.subr.mxu0 0.0
    %846 = vmatpush1.xpose.msra.mxu0 0.0
    %847 = vmatprep.subr.mxu0 0.0
    %848 = vmatpush1.xpose.msra.mxu0 0.0
    %849 = vmatprep.subr.mxu0 0.0
    %850 = vmatpush1.xpose.msra.mxu0 0.0
    %851 = vmatprep.subr.mxu0 0.0
    %852 = vmatpush1.xpose.msra.mxu0 0.0
    %853 = vmatprep.subr.mxu0 0.0
    %854 = vmatpush1.xpose.msra.mxu0 0.0
    %855 = vmatprep.subr.mxu0 0.0
    %856 = vmatpush1.xpose.msra.mxu0 0.0
    %857 = vmatprep.subr.mxu0 0.0
    %858 = vmatpush1.xpose.msra.mxu0 0.0
    %859 = vmatprep.subr.mxu0 0.0
    %860 = vmatpush1.xpose.msra.mxu0 0.0
    %861 = vmatprep.subr.mxu0 0.0
    %862 = vmatpush1.xpose.msra.mxu0 0.0
    %863 = vmatprep.subr.mxu0 0.0
    %864 = vmatpush1.xpose.msra.mxu0 0.0
    %865 = vmatprep.subr.mxu0 0.0
    %866 = vmatpush1.xpose.msra.mxu0 0.0
    %867 = vmatprep.subr.mxu0 0.0
    %868 = vmatpush1.xpose.msra.mxu0 0.0
    %869 = vmatprep.subr.mxu0 0.0
    %870 = vmatpush1.xpose.msra.mxu0 0.0
    %871 = vmatprep.subr.mxu0 0.0
    %872 = vmatpush1.xpose.msra.mxu0 0.0
    %873 = vmatprep.subr.mxu0 0.0
    %874 = vmatpush1.xpose.msra.mxu0 %v841
    %875 = vmatprep.subr.mxu0 0.0
    %876 = vmatpush2.xpose.msra.mxu0 0.0
    %877 = vmatprep.subr.mxu0 0.0
    %878 = vmatpush2.xpose.msra.mxu0 0.0
    %879 = vmatprep.subr.mxu0 0.0
    %880 = vmatpush2.xpose.msra.mxu0 0.0
    %881 = vmatprep.subr.mxu0 0.0
    %882 = vmatpush2.xpose.msra.mxu0 0.0
    %883 = vmatprep.subr.mxu0 0.0
    %884 = vmatpush2.xpose.msra.mxu0 0.0
    %885 = vmatprep.subr.mxu0 0.0
    %886 = vmatpush2.xpose.msra.mxu0 0.0
    %887 = vmatprep.subr.mxu0 0.0
    %888 = vmatpush2.xpose.msra.mxu0 0.0
    %889 = vmatprep.subr.mxu0 0.0
    %890 = vmatpush2.xpose.msra.mxu0 0.0
    %891 = vmatprep.subr.mxu0 0.0
    %892 = vmatpush2.xpose.msra.mxu0 0.0
    %893 = vmatprep.subr.mxu0 0.0
    %894 = vmatpush2.xpose.msra.mxu0 0.0
    %895 = vmatprep.subr.mxu0 0.0
    %896 = vmatpush2.xpose.msra.mxu0 0.0
    %897 = vmatprep.subr.mxu0 0.0
    %898 = vmatpush2.xpose.msra.mxu0 0.0
    %899 = vmatprep.subr.mxu0 0.0
    %900 = vmatpush2.xpose.msra.mxu0 0.0
    %901 = vmatprep.subr.mxu0 0.0
    %902 = vmatpush2.xpose.msra.mxu0 0.0
    %903 = vmatprep.subr.mxu0 0.0
    %904 = vmatpush2.xpose.msra.mxu0 0.0
    %905 = vmatprep.subr.mxu0 0.0
    %906 = vmatpush2.xpose.msra.mxu0 0.0
    %907 = vmatprep.mubr.f32.mxu0 0.0
    %908 = vmatmul.mubr.f32.gmra.mxu0 %v839
    %v909 = vpop.f32.mrf.mxu0
    %v910 = vadd.f32 0.0, %v909
    %v911 = vpop.f32.mrf.mxu0
    %912 = vdwg.mxu0
    %v913 = vmul.f32 %v832, 0.25
    %v914 = vmul.f32 %v910, 0.25
    %v915 = vadd.f32 %v913, %v573
    %v916 = vadd.f32 %v914, %v577
    %v917 = vsel %vm582, %v915, -inf
    %918 = vmax.xlane.f32.xlu0 %v917
    %v919 = vpop.xlane.xlu0 %918
    %v920 = vsel %vm582, %v916, -inf
    %921 = vmax.xlane.f32.xlu0 %v920
    %v922 = vpop.xlane.xlu0 %921
    %v923 = vsub.f32 %v915, %v919
    %v924 = vsub.f32 %v916, %v922
    %v925 = vmul.f32 %v923, 1.442695
    %v926 = vpow.pop %v925
    %v927 = vmul.f32 %v924, 1.442695
    %v928 = vpow.pop %v927
    %v929 = vsel %vm582, %v926, 0.0
    %930 = vadd.xlane.f32.xlu0 %v929
    %v931 = vpop.xlane.xlu0 %930
    %v932 = vsel %vm582, %v928, 0.0
    %933 = vadd.xlane.f32.xlu0 %v932
    %v934 = vpop.xlane.xlu0 %933
    %v935 = vrcp.pop %v931
    %v936 = vrcp.pop %v934
    %v937 = vmul.f32 %v926, %v935
    %v938 = vmul.f32 %v928, %v936
    %939 = vrot.lane.b32.xlu0 %v399, 48
    %v940 = vpop.permute.xlu0 %939
    %v943 = vsel %vm582, %v937, 0
    %945 = vmatprep.subr.mxu0 0.0
    %946 = vmatpush1.msra.mxu0 0.0
    %947 = vmatprep.subr.mxu0 0.0
    %948 = vmatpush1.msra.mxu0 0.0
    %949 = vmatprep.subr.mxu0 0.0
    %950 = vmatpush1.msra.mxu0 0.0
    %951 = vmatprep.subr.mxu0 0.0
    %952 = vmatpush1.msra.mxu0 0.0
    %953 = vmatprep.subr.mxu0 0.0
    %954 = vmatpush1.msra.mxu0 0.0
    %955 = vmatprep.subr.mxu0 0.0
    %956 = vmatpush1.msra.mxu0 0.0
    %957 = vmatprep.subr.mxu0 0.0
    %958 = vmatpush1.msra.mxu0 0.0
    %959 = vmatprep.subr.mxu0 0.0
    %960 = vmatpush1.msra.mxu0 0.0
    %961 = vmatprep.subr.mxu0 0.0
    %962 = vmatpush1.msra.mxu0 0.0
    %963 = vmatprep.subr.mxu0 0.0
    %964 = vmatpush1.msra.mxu0 0.0
    %965 = vmatprep.subr.mxu0 0.0
    %966 = vmatpush1.msra.mxu0 0.0
    %967 = vmatprep.subr.mxu0 0.0
    %968 = vmatpush1.msra.mxu0 0.0
    %969 = vmatprep.subr.mxu0 0.0
    %970 = vmatpush1.msra.mxu0 0.0
    %971 = vmatprep.subr.mxu0 0.0
    %972 = vmatpush1.msra.mxu0 0.0
    %973 = vmatprep.subr.mxu0 0.0
    %974 = vmatpush1.msra.mxu0 0.0
    %975 = vmatprep.subr.mxu0 0.0
    %976 = vmatpush1.msra.mxu0 %v940
    %977 = vmatprep.subr.mxu0 0.0
    %978 = vmatpush2.msra.mxu0 0.0
    %979 = vmatprep.subr.mxu0 0.0
    %980 = vmatpush2.msra.mxu0 0.0
    %981 = vmatprep.subr.mxu0 0.0
    %982 = vmatpush2.msra.mxu0 0.0
    %983 = vmatprep.subr.mxu0 0.0
    %984 = vmatpush2.msra.mxu0 0.0
    %985 = vmatprep.subr.mxu0 0.0
    %986 = vmatpush2.msra.mxu0 0.0
    %987 = vmatprep.subr.mxu0 0.0
    %988 = vmatpush2.msra.mxu0 0.0
    %989 = vmatprep.subr.mxu0 0.0
    %990 = vmatpush2.msra.mxu0 0.0
    %991 = vmatprep.subr.mxu0 0.0
    %992 = vmatpush2.msra.mxu0 0.0
    %993 = vmatprep.subr.mxu0 0.0
    %994 = vmatpush2.msra.mxu0 0.0
    %995 = vmatprep.subr.mxu0 0.0
    %996 = vmatpush2.msra.mxu0 0.0
    %997 = vmatprep.subr.mxu0 0.0
    %998 = vmatpush2.msra.mxu0 0.0
    %999 = vmatprep.subr.mxu0 0.0
    %1000 = vmatpush2.msra.mxu0 0.0
    %1001 = vmatprep.subr.mxu0 0.0
    %1002 = vmatpush2.msra.mxu0 0.0
    %1003 = vmatprep.subr.mxu0 0.0
    %1004 = vmatpush2.msra.mxu0 0.0
    %1005 = vmatprep.subr.mxu0 0.0
    %1006 = vmatpush2.msra.mxu0 0.0
    %1007 = vmatprep.subr.mxu0 0.0
    %1008 = vmatpush2.msra.mxu0 0.0
    %1009 = vmatprep.mubr.f32.mxu0 0.0
    %1010 = vmatmul.mubr.f32.gmra.mxu0 %v943
    %v1011 = vpop.f32.mrf.mxu0
    %v1012 = vadd.f32 0.0, %v1011
    %v1013 = vpop.f32.mrf.mxu0
    %1014 = vdwg.mxu0
    %1015 = vrot.lane.b32.xlu0 %v404, 48
    %v1016 = vpop.permute.xlu0 %1015
    %v1019 = vsel %vm582, %v938, 0
    %1021 = vmatprep.subr.mxu0 0.0
    %1022 = vmatpush1.msra.mxu0 0.0
    %1023 = vmatprep.subr.mxu0 0.0
    %1024 = vmatpush1.msra.mxu0 0.0
    %1025 = vmatprep.subr.mxu0 0.0
    %1026 = vmatpush1.msra.mxu0 0.0
    %1027 = vmatprep.subr.mxu0 0.0
    %1028 = vmatpush1.msra.mxu0 0.0
    %1029 = vmatprep.subr.mxu0 0.0
    %1030 = vmatpush1.msra.mxu0 0.0
    %1031 = vmatprep.subr.mxu0 0.0
    %1032 = vmatpush1.msra.mxu0 0.0
    %1033 = vmatprep.subr.mxu0 0.0
    %1034 = vmatpush1.msra.mxu0 0.0
    %1035 = vmatprep.subr.mxu0 0.0
    %1036 = vmatpush1.msra.mxu0 0.0
    %1037 = vmatprep.subr.mxu0 0.0
    %1038 = vmatpush1.msra.mxu0 0.0
    %1039 = vmatprep.subr.mxu0 0.0
    %1040 = vmatpush1.msra.mxu0 0.0
    %1041 = vmatprep.subr.mxu0 0.0
    %1042 = vmatpush1.msra.mxu0 0.0
    %1043 = vmatprep.subr.mxu0 0.0
    %1044 = vmatpush1.msra.mxu0 0.0
    %1045 = vmatprep.subr.mxu0 0.0
    %1046 = vmatpush1.msra.mxu0 0.0
    %1047 = vmatprep.subr.mxu0 0.0
    %1048 = vmatpush1.msra.mxu0 0.0
    %1049 = vmatprep.subr.mxu0 0.0
    %1050 = vmatpush1.msra.mxu0 0.0
    %1051 = vmatprep.subr.mxu0 0.0
    %1052 = vmatpush1.msra.mxu0 %v1016
    %1053 = vmatprep.subr.mxu0 0.0
    %1054 = vmatpush2.msra.mxu0 0.0
    %1055 = vmatprep.subr.mxu0 0.0
    %1056 = vmatpush2.msra.mxu0 0.0
    %1057 = vmatprep.subr.mxu0 0.0
    %1058 = vmatpush2.msra.mxu0 0.0
    %1059 = vmatprep.subr.mxu0 0.0
    %1060 = vmatpush2.msra.mxu0 0.0
    %1061 = vmatprep.subr.mxu0 0.0
    %1062 = vmatpush2.msra.mxu0 0.0
    %1063 = vmatprep.subr.mxu0 0.0
    %1064 = vmatpush2.msra.mxu0 0.0
    %1065 = vmatprep.subr.mxu0 0.0
    %1066 = vmatpush2.msra.mxu0 0.0
    %1067 = vmatprep.subr.mxu0 0.0
    %1068 = vmatpush2.msra.mxu0 0.0
    %1069 = vmatprep.subr.mxu0 0.0
    %1070 = vmatpush2.msra.mxu0 0.0
    %1071 = vmatprep.subr.mxu0 0.0
    %1072 = vmatpush2.msra.mxu0 0.0
    %1073 = vmatprep.subr.mxu0 0.0
    %1074 = vmatpush2.msra.mxu0 0.0
    %1075 = vmatprep.subr.mxu0 0.0
    %1076 = vmatpush2.msra.mxu0 0.0
    %1077 = vmatprep.subr.mxu0 0.0
    %1078 = vmatpush2.msra.mxu0 0.0
    %1079 = vmatprep.subr.mxu0 0.0
    %1080 = vmatpush2.msra.mxu0 0.0
    %1081 = vmatprep.subr.mxu0 0.0
    %1082 = vmatpush2.msra.mxu0 0.0
    %1083 = vmatprep.subr.mxu0 0.0
    %1084 = vmatpush2.msra.mxu0 0.0
    %1085 = vmatprep.mubr.f32.mxu0 0.0
    %1086 = vmatmul.mubr.f32.gmra.mxu0 %v1019
    %v1087 = vpop.f32.mrf.mxu0
    %v1088 = vadd.f32 0.0, %v1087
    %v1089 = vpop.f32.mrf.mxu0
    %1090 = vdwg.mxu0
    %v1092 = vsel %vm414, %v1012, 0
    %v1095 = vsel %vm414, %v1088, 0
    %1097 = vmatprep.subr.mxu0 0.0
    %1098 = vmatpush1.msra.mxu0 0.0
    %1099 = vmatprep.subr.mxu0 0.0
    %1100 = vmatpush1.msra.mxu0 0.0
    %1101 = vmatprep.subr.mxu0 0.0
    %1102 = vmatpush1.msra.mxu0 0.0
    %1103 = vmatprep.subr.mxu0 0.0
    %1104 = vmatpush1.msra.mxu0 0.0
    %1105 = vmatprep.subr.mxu0 0.0
    %1106 = vmatpush1.msra.mxu0 0.0
    %1107 = vmatprep.subr.mxu0 0.0
    %1108 = vmatpush1.msra.mxu0 0.0
    %1109 = vmatprep.subr.mxu0 0.0
    %1110 = vmatpush1.msra.mxu0 0.0
    %1111 = vmatprep.subr.mxu0 0.0
    %1112 = vmatpush1.msra.mxu0 0.0
    %1113 = vmatprep.subr.mxu0 0.0
    %1114 = vmatpush1.msra.mxu0 0.0
    %1115 = vmatprep.subr.mxu0 0.0
    %1116 = vmatpush1.msra.mxu0 0.0
    %1117 = vmatprep.subr.mxu0 0.0
    %1118 = vmatpush1.msra.mxu0 0.0
    %1119 = vmatprep.subr.mxu0 0.0
    %1120 = vmatpush1.msra.mxu0 0.0
    %1121 = vmatprep.subr.mxu0 0.0
    %1122 = vmatpush1.msra.mxu0 0.0
    %1123 = vmatprep.subr.mxu0 0.0
    %1124 = vmatpush1.msra.mxu0 0.0
    %1125 = vmatprep.subr.mxu0 0.0
    %1126 = vmatpush1.msra.mxu0 %v410
    %1127 = vmatprep.subr.mxu0 0.0
    %1128 = vmatpush1.msra.mxu0 %v409
    %1129 = vmatprep.subr.mxu0 0.0
    %1130 = vmatpush2.msra.mxu0 0.0
    %1131 = vmatprep.subr.mxu0 0.0
    %1132 = vmatpush2.msra.mxu0 0.0
    %1133 = vmatprep.subr.mxu0 0.0
    %1134 = vmatpush2.msra.mxu0 0.0
    %1135 = vmatprep.subr.mxu0 0.0
    %1136 = vmatpush2.msra.mxu0 0.0
    %1137 = vmatprep.subr.mxu0 0.0
    %1138 = vmatpush2.msra.mxu0 0.0
    %1139 = vmatprep.subr.mxu0 0.0
    %1140 = vmatpush2.msra.mxu0 0.0
    %1141 = vmatprep.subr.mxu0 0.0
    %1142 = vmatpush2.msra.mxu0 0.0
    %1143 = vmatprep.subr.mxu0 0.0
    %1144 = vmatpush2.msra.mxu0 0.0
    %1145 = vmatprep.subr.mxu0 0.0
    %1146 = vmatpush2.msra.mxu0 0.0
    %1147 = vmatprep.subr.mxu0 0.0
    %1148 = vmatpush2.msra.mxu0 0.0
    %1149 = vmatprep.subr.mxu0 0.0
    %1150 = vmatpush2.msra.mxu0 0.0
    %1151 = vmatprep.subr.mxu0 0.0
    %1152 = vmatpush2.msra.mxu0 0.0
    %1153 = vmatprep.subr.mxu0 0.0
    %1154 = vmatpush2.msra.mxu0 0.0
    %1155 = vmatprep.subr.mxu0 0.0
    %1156 = vmatpush2.msra.mxu0 0.0
    %1157 = vmatprep.subr.mxu0 0.0
    %1158 = vmatpush2.msra.mxu0 0.0
    %1159 = vmatprep.subr.mxu0 0.0
    %1160 = vmatpush2.msra.mxu0 0.0
    %1161 = vmatprep.mubr.f32.mxu0 0.0
    %1162 = vmatmul.mubr.f32.gmra.mxu0 %v1092
    %v1163 = vpop.f32.mrf.mxu0
    %v1164 = vadd.f32 0.0, %v1163
    %v1165 = vpop.f32.mrf.mxu0
    %1166 = vmatprep.mubr.f32.mxu0 0.0
    %1167 = vmatmul.mubr.f32.gmra.mxu0 %v1095
    %v1168 = vpop.f32.mrf.mxu0
    %v1169 = vadd.f32 0.0, %v1168
    %v1170 = vpop.f32.mrf.mxu0
    %1171 = vdwg.mxu0
    %v1173 = vsel %vm414, %v678, 0
    %v1176 = vsel %vm414, %v754, 0
    %1178 = vmatprep.subr.mxu0 0.0
    %1179 = vmatpush1.msra.mxu0 0.0
    %1180 = vmatprep.subr.mxu0 0.0
    %1181 = vmatpush1.msra.mxu0 0.0
    %1182 = vmatprep.subr.mxu0 0.0
    %1183 = vmatpush1.msra.mxu0 0.0
    %1184 = vmatprep.subr.mxu0 0.0
    %1185 = vmatpush1.msra.mxu0 0.0
    %1186 = vmatprep.subr.mxu0 0.0
    %1187 = vmatpush1.msra.mxu0 0.0
    %1188 = vmatprep.subr.mxu0 0.0
    %1189 = vmatpush1.msra.mxu0 0.0
    %1190 = vmatprep.subr.mxu0 0.0
    %1191 = vmatpush1.msra.mxu0 0.0
    %1192 = vmatprep.subr.mxu0 0.0
    %1193 = vmatpush1.msra.mxu0 0.0
    %1194 = vmatprep.subr.mxu0 0.0
    %1195 = vmatpush1.msra.mxu0 0.0
    %1196 = vmatprep.subr.mxu0 0.0
    %1197 = vmatpush1.msra.mxu0 0.0
    %1198 = vmatprep.subr.mxu0 0.0
    %1199 = vmatpush1.msra.mxu0 0.0
    %1200 = vmatprep.subr.mxu0 0.0
    %1201 = vmatpush1.msra.mxu0 0.0
    %1202 = vmatprep.subr.mxu0 0.0
    %1203 = vmatpush1.msra.mxu0 0.0
    %1204 = vmatprep.subr.mxu0 0.0
    %1205 = vmatpush1.msra.mxu0 0.0
    %1206 = vmatprep.subr.mxu0 0.0
    %1207 = vmatpush1.msra.mxu0 %v408
    %1208 = vmatprep.subr.mxu0 0.0
    %1209 = vmatpush1.msra.mxu0 %v407
    %1210 = vmatprep.subr.mxu0 0.0
    %1211 = vmatpush2.msra.mxu0 0.0
    %1212 = vmatprep.subr.mxu0 0.0
    %1213 = vmatpush2.msra.mxu0 0.0
    %1214 = vmatprep.subr.mxu0 0.0
    %1215 = vmatpush2.msra.mxu0 0.0
    %1216 = vmatprep.subr.mxu0 0.0
    %1217 = vmatpush2.msra.mxu0 0.0
    %1218 = vmatprep.subr.mxu0 0.0
    %1219 = vmatpush2.msra.mxu0 0.0
    %1220 = vmatprep.subr.mxu0 0.0
    %1221 = vmatpush2.msra.mxu0 0.0
    %1222 = vmatprep.subr.mxu0 0.0
    %1223 = vmatpush2.msra.mxu0 0.0
    %1224 = vmatprep.subr.mxu0 0.0
    %1225 = vmatpush2.msra.mxu0 0.0
    %1226 = vmatprep.subr.mxu0 0.0
    %1227 = vmatpush2.msra.mxu0 0.0
    %1228 = vmatprep.subr.mxu0 0.0
    %1229 = vmatpush2.msra.mxu0 0.0
    %1230 = vmatprep.subr.mxu0 0.0
    %1231 = vmatpush2.msra.mxu0 0.0
    %1232 = vmatprep.subr.mxu0 0.0
    %1233 = vmatpush2.msra.mxu0 0.0
    %1234 = vmatprep.subr.mxu0 0.0
    %1235 = vmatpush2.msra.mxu0 0.0
    %1236 = vmatprep.subr.mxu0 0.0
    %1237 = vmatpush2.msra.mxu0 0.0
    %1238 = vmatprep.subr.mxu0 0.0
    %1239 = vmatpush2.msra.mxu0 0.0
    %1240 = vmatprep.subr.mxu0 0.0
    %1241 = vmatpush2.msra.mxu0 0.0
    %1242 = vmatprep.mubr.f32.mxu0 0.0
    %1243 = vmatmul.mubr.f32.gmra.mxu0 %v1173
    %v1244 = vpop.f32.mrf.mxu0
    %v1245 = vadd.f32 %v1164, %v1244
    %v1246 = vpop.f32.mrf.mxu0
    %1247 = vmatprep.mubr.f32.mxu0 0.0
    %1248 = vmatmul.mubr.f32.gmra.mxu0 %v1176
    %v1249 = vpop.f32.mrf.mxu0
    %v1250 = vadd.f32 %v1169, %v1249
    %v1251 = vpop.f32.mrf.mxu0
    %1252 = vdwg.mxu0
    %v1253 = vld [vmem:[#allocation11] sm:$0x1]
    %v1255 = vlaneseq
    %v1256 = vshrl.u32 %v1255, 7
    %v1257 = vsub.s32 0, %v1256
    %v1258 = vrot.slane %v1253, %v1257
    %v1260 = vadd.f32 %v1245, %v1258
    %v1261 = vadd.f32 %v1250, %v1258
    %v1262 = vadd.f32 %v307, %v1260
    %v1263 = vadd.f32 %v308, %v1261
    %v1264 = vld [vmem:[#allocation13] sm:$0x1]
    %v1265 = vld [vmem:[#allocation14] sm:$0x1]
    %v1266 = vsel %vm265, %v1262, 0.0
    %1267 = vadd.xlane.f32.xlu0 %v1266
    %v1268 = vpop.xlane.xlu0 %1267
    %v1269 = vsel %vm265, %v1263, 0.0
    %1270 = vadd.xlane.f32.xlu0 %v1269
    %v1271 = vpop.xlane.xlu0 %1270
    %v1272 = vmul.f32 %v1268, %v272
    %v1273 = vmul.f32 %v1271, %v272
    %v1274 = vsub.f32 %v1262, %v1272
    %v1275 = vsub.f32 %v1263, %v1273
    %v1276 = vmul.f32 %v1274, %v1274
    %v1277 = vmul.f32 %v1275, %v1275
    %v1278 = vsel %vm265, %v1276, 0.0
    %1279 = vadd.xlane.f32.xlu0 %v1278
    %v1280 = vpop.xlane.xlu0 %1279
    %v1281 = vsel %vm265, %v1277, 0.0
    %1282 = vadd.xlane.f32.xlu0 %v1281
    %v1283 = vpop.xlane.xlu0 %1282
    %v1284 = vmul.f32 %v1280, %v272
    %v1285 = vmul.f32 %v1283, %v272
    %v1286 = vadd.f32 %v1284, 1e-12
    %v1287 = vadd.f32 %v1285, 1e-12
    %v1288 = vrsqrt.pop %v1286
    %v1289 = vrsqrt.pop %v1287
    %v1290 = vmul.f32 %v1274, %v1288
    %v1291 = vmul.f32 %v1275, %v1289
    %v1293 = vlaneseq
    %v1294 = vshrl.u32 %v1293, 7
    %v1295 = vsub.s32 0, %v1294
    %v1296 = vrot.slane %v1264, %v1295
    %v1298 = vmul.f32 %v1290, %v1296
    %v1299 = vmul.f32 %v1291, %v1296
    %v1301 = vlaneseq
    %v1302 = vshrl.u32 %v1301, 7
    %v1303 = vsub.s32 0, %v1302
    %v1304 = vrot.slane %v1265, %v1303
    %v1306 = vadd.f32 %v1298, %v1304
    %v1307 = vadd.f32 %v1299, %v1304
    %v1308 = vld [vmem:[%s11] sm:$0xff]
    %v1309 = vld [vmem:[%s11 + $0x8] sm:$0xff]
    %v1310 = vld [vmem:[%s11 + $0x10] sm:$0xff]
    %v1311 = vld [vmem:[%s11 + $0x18] sm:$0xff]
    %v1312 = vld [vmem:[#allocation16] sm:$0x1]
    %v1314 = vlaneseq
    %v1315 = vshrl.u32 %v1314, 7
    %v1316 = vsub.s32 0, %v1315
    %v1317 = vrot.slane %v1312, %v1316
    %v1320 = vsel %vm265, %v1306, 0
    %v1323 = vsel %vm265, %v1307, 0
    %1325 = vmatprep.subr.mxu0 0.0
    %1326 = vmatpush1.msra.mxu0 0.0
    %1327 = vmatprep.subr.mxu0 0.0
    %1328 = vmatpush1.msra.mxu0 0.0
    %1329 = vmatprep.subr.mxu0 0.0
    %1330 = vmatpush1.msra.mxu0 0.0
    %1331 = vmatprep.subr.mxu0 0.0
    %1332 = vmatpush1.msra.mxu0 0.0
    %1333 = vmatprep.subr.mxu0 0.0
    %1334 = vmatpush1.msra.mxu0 0.0
    %1335 = vmatprep.subr.mxu0 0.0
    %1336 = vmatpush1.msra.mxu0 0.0
    %1337 = vmatprep.subr.mxu0 0.0
    %1338 = vmatpush1.msra.mxu0 0.0
    %1339 = vmatprep.subr.mxu0 0.0
    %1340 = vmatpush1.msra.mxu0 0.0
    %1341 = vmatprep.subr.mxu0 0.0
    %1342 = vmatpush1.msra.mxu0 0.0
    %1343 = vmatprep.subr.mxu0 0.0
    %1344 = vmatpush1.msra.mxu0 0.0
    %1345 = vmatprep.subr.mxu0 0.0
    %1346 = vmatpush1.msra.mxu0 0.0
    %1347 = vmatprep.subr.mxu0 0.0
    %1348 = vmatpush1.msra.mxu0 0.0
    %1349 = vmatprep.subr.mxu0 0.0
    %1350 = vmatpush1.msra.mxu0 %v1311
    %1351 = vmatprep.subr.mxu0 0.0
    %1352 = vmatpush1.msra.mxu0 %v1310
    %1353 = vmatprep.subr.mxu0 0.0
    %1354 = vmatpush1.msra.mxu0 %v1309
    %1355 = vmatprep.subr.mxu0 0.0
    %1356 = vmatpush1.msra.mxu0 %v1308
    %1357 = vmatprep.subr.mxu0 0.0
    %1358 = vmatpush2.msra.mxu0 0.0
    %1359 = vmatprep.subr.mxu0 0.0
    %1360 = vmatpush2.msra.mxu0 0.0
    %1361 = vmatprep.subr.mxu0 0.0
    %1362 = vmatpush2.msra.mxu0 0.0
    %1363 = vmatprep.subr.mxu0 0.0
    %1364 = vmatpush2.msra.mxu0 0.0
    %1365 = vmatprep.subr.mxu0 0.0
    %1366 = vmatpush2.msra.mxu0 0.0
    %1367 = vmatprep.subr.mxu0 0.0
    %1368 = vmatpush2.msra.mxu0 0.0
    %1369 = vmatprep.subr.mxu0 0.0
    %1370 = vmatpush2.msra.mxu0 0.0
    %1371 = vmatprep.subr.mxu0 0.0
    %1372 = vmatpush2.msra.mxu0 0.0
    %1373 = vmatprep.subr.mxu0 0.0
    %1374 = vmatpush2.msra.mxu0 0.0
    %1375 = vmatprep.subr.mxu0 0.0
    %1376 = vmatpush2.msra.mxu0 0.0
    %1377 = vmatprep.subr.mxu0 0.0
    %1378 = vmatpush2.msra.mxu0 0.0
    %1379 = vmatprep.subr.mxu0 0.0
    %1380 = vmatpush2.msra.mxu0 0.0
    %1381 = vmatprep.subr.mxu0 0.0
    %1382 = vmatpush2.msra.mxu0 0.0
    %1383 = vmatprep.subr.mxu0 0.0
    %1384 = vmatpush2.msra.mxu0 0.0
    %1385 = vmatprep.subr.mxu0 0.0
    %1386 = vmatpush2.msra.mxu0 0.0
    %1387 = vmatprep.subr.mxu0 0.0
    %1388 = vmatpush2.msra.mxu0 0.0
    %1389 = vmatprep.mubr.f32.mxu0 0.0
    %1390 = vmatmul.mubr.f32.gmra.mxu0 %v1320
    %v1391 = vpop.f32.mrf.mxu0
    %v1392 = vadd.f32 %v1317, %v1391
    %v1393 = vpop.f32.mrf.mxu0
    %1394 = vmatprep.mubr.f32.mxu0 0.0
    %1395 = vmatmul.mubr.f32.gmra.mxu0 %v1323
    %v1396 = vpop.f32.mrf.mxu0
    %v1397 = vadd.f32 %v1317, %v1396
    %v1398 = vpop.f32.mrf.mxu0
    %1399 = vdwg.mxu0
    %v1400 = vmul.f32 %v1392, 0.5
    %v1401 = vmul.f32 %v1397, 0.5
    %v1402 = vmul.f32 %v1392, 0.044715
    %v1403 = vmul.f32 %v1397, 0.044715
    %v1404 = vmul.f32 %v1402, %v1392
    %v1405 = vmul.f32 %v1403, %v1397
    %v1406 = vmul.f32 %v1404, %v1392
    %v1407 = vmul.f32 %v1405, %v1397
    %v1408 = vadd.f32 %v1392, %v1406
    %v1409 = vadd.f32 %v1397, %v1407
    %v1410 = vmul.f32 %v1408, 0.7978846
    %v1411 = vmul.f32 %v1409, 0.7978846
    %v1412 = vtanh.pop %v1410
    %v1413 = vtanh.pop %v1411
    %v1414 = vadd.f32 %v1412, 1.0
    %v1415 = vadd.f32 %v1413, 1.0
    %v1416 = vmul.f32 %v1400, %v1414
    %v1417 = vmul.f32 %v1401, %v1415
    %v1418 = vld [vmem:[%s13] sm:$0xff]
    %v1419 = vld [vmem:[%s13 + $0x8] sm:$0xff]
    %v1420 = vld [vmem:[%s13 + $0x10] sm:$0xff]
    %v1421 = vld [vmem:[%s13 + $0x18] sm:$0xff]
    %v1422 = vld [vmem:[%s13 + $0x20] sm:$0xff]
    %v1423 = vld [vmem:[%s13 + $0x28] sm:$0xff]
    %v1424 = vld [vmem:[%s13 + $0x30] sm:$0xff]
    %v1425 = vld [vmem:[%s13 + $0x38] sm:$0xff]
    %v1426 = vld [vmem:[#allocation17] sm:$0x1]
    %v1428 = vlaneseq
    %v1429 = vshrl.u32 %v1428, 7
    %v1430 = vsub.s32 0, %v1429
    %v1431 = vrot.slane %v1426, %v1430
    %vm1433 = vcmask 523264
    %v1435 = vsel %vm1433, %v1416, 0
    %v1438 = vsel %vm1433, %v1417, 0
    %1440 = vmatprep.subr.mxu0 0.0
    %1441 = vmatpush1.msra.mxu0 0.0
    %1442 = vmatprep.subr.mxu0 0.0
    %1443 = vmatpush1.msra.mxu0 0.0
    %1444 = vmatprep.subr.mxu0 0.0
    %1445 = vmatpush1.msra.mxu0 0.0
    %1446 = vmatprep.subr.mxu0 0.0
    %1447 = vmatpush1.msra.mxu0 0.0
    %1448 = vmatprep.subr.mxu0 0.0
    %1449 = vmatpush1.msra.mxu0 0.0
    %1450 = vmatprep.subr.mxu0 0.0
    %1451 = vmatpush1.msra.mxu0 0.0
    %1452 = vmatprep.subr.mxu0 0.0
    %1453 = vmatpush1.msra.mxu0 0.0
    %1454 = vmatprep.subr.mxu0 0.0
    %1455 = vmatpush1.msra.mxu0 0.0
    %1456 = vmatprep.subr.mxu0 0.0
    %1457 = vmatpush1.msra.mxu0 %v1425
    %1458 = vmatprep.subr.mxu0 0.0
    %1459 = vmatpush1.msra.mxu0 %v1424
    %1460 = vmatprep.subr.mxu0 0.0
    %1461 = vmatpush1.msra.mxu0 %v1423
    %1462 = vmatprep.subr.mxu0 0.0
    %1463 = vmatpush1.msra.mxu0 %v1422
    %1464 = vmatprep.subr.mxu0 0.0
    %1465 = vmatpush1.msra.mxu0 %v1421
    %1466 = vmatprep.subr.mxu0 0.0
    %1467 = vmatpush1.msra.mxu0 %v1420
    %1468 = vmatprep.subr.mxu0 0.0
    %1469 = vmatpush1.msra.mxu0 %v1419
    %1470 = vmatprep.subr.mxu0 0.0
    %1471 = vmatpush1.msra.mxu0 %v1418
    %1472 = vmatprep.subr.mxu0 0.0
    %1473 = vmatpush2.msra.mxu0 0.0
    %1474 = vmatprep.subr.mxu0 0.0
    %1475 = vmatpush2.msra.mxu0 0.0
    %1476 = vmatprep.subr.mxu0 0.0
    %1477 = vmatpush2.msra.mxu0 0.0
    %1478 = vmatprep.subr.mxu0 0.0
    %1479 = vmatpush2.msra.mxu0 0.0
    %1480 = vmatprep.subr.mxu0 0.0
    %1481 = vmatpush2.msra.mxu0 0.0
    %1482 = vmatprep.subr.mxu0 0.0
    %1483 = vmatpush2.msra.mxu0 0.0
    %1484 = vmatprep.subr.mxu0 0.0
    %1485 = vmatpush2.msra.mxu0 0.0
    %1486 = vmatprep.subr.mxu0 0.0
    %1487 = vmatpush2.msra.mxu0 0.0
    %1488 = vmatprep.subr.mxu0 0.0
    %1489 = vmatpush2.msra.mxu0 0.0
    %1490 = vmatprep.subr.mxu0 0.0
    %1491 = vmatpush2.msra.mxu0 0.0
    %1492 = vmatprep.subr.mxu0 0.0
    %1493 = vmatpush2.msra.mxu0 0.0
    %1494 = vmatprep.subr.mxu0 0.0
    %1495 = vmatpush2.msra.mxu0 0.0
    %1496 = vmatprep.subr.mxu0 0.0
    %1497 = vmatpush2.msra.mxu0 0.0
    %1498 = vmatprep.subr.mxu0 0.0
    %1499 = vmatpush2.msra.mxu0 0.0
    %1500 = vmatprep.subr.mxu0 0.0
    %1501 = vmatpush2.msra.mxu0 0.0
    %1502 = vmatprep.subr.mxu0 0.0
    %1503 = vmatpush2.msra.mxu0 0.0
    %1504 = vmatprep.mubr.f32.mxu0 0.0
    %1505 = vmatmul.mubr.f32.gmra.mxu0 %v1435
    %v1506 = vpop.f32.mrf.mxu0
    %v1507 = vadd.f32 %v1431, %v1506
    %v1508 = vpop.f32.mrf.mxu0
    %1509 = vmatprep.mubr.f32.mxu0 0.0
    %1510 = vmatmul.mubr.f32.gmra.mxu0 %v1438
    %v1511 = vpop.f32.mrf.mxu0
    %v1512 = vadd.f32 %v1431, %v1511
    %v1513 = vpop.f32.mrf.mxu0
    %1514 = vdwg.mxu0
    %v1515 = vadd.f32 %v1306, %v1507
    %v1516 = vadd.f32 %v1307, %v1512
    %v1517 = vld [vmem:[#allocation19] sm:$0x1]
    %v1518 = vld [vmem:[#allocation20] sm:$0x1]
    %v1519 = vsel %vm265, %v1515, 0.0
    %1520 = vadd.xlane.f32.xlu0 %v1519
    %v1521 = vpop.xlane.xlu0 %1520
    %v1522 = vsel %vm265, %v1516, 0.0
    %1523 = vadd.xlane.f32.xlu0 %v1522
    %v1524 = vpop.xlane.xlu0 %1523
    %v1525 = vmul.f32 %v1521, %v272
    %v1526 = vmul.f32 %v1524, %v272
    %v1527 = vsub.f32 %v1515, %v1525
    %v1528 = vsub.f32 %v1516, %v1526
    %v1529 = vmul.f32 %v1527, %v1527
    %v1530 = vmul.f32 %v1528, %v1528
    %v1531 = vsel %vm265, %v1529, 0.0
    %1532 = vadd.xlane.f32.xlu0 %v1531
    %v1533 = vpop.xlane.xlu0 %1532
    %v1534 = vsel %vm265, %v1530, 0.0
    %1535 = vadd.xlane.f32.xlu0 %v1534
    %v1536 = vpop.xlane.xlu0 %1535
    %v1537 = vmul.f32 %v1533, %v272
    %v1538 = vmul.f32 %v1536, %v272
    %v1539 = vadd.f32 %v1537, 1e-12
    %v1540 = vadd.f32 %v1538, 1e-12
    %v1541 = vrsqrt.pop %v1539
    %v1542 = vrsqrt.pop %v1540
    %v1543 = vmul.f32 %v1527, %v1541
    %v1544 = vmul.f32 %v1528, %v1542
    %v1546 = vlaneseq
    %v1547 = vshrl.u32 %v1546, 7
    %v1548 = vsub.s32 0, %v1547
    %v1549 = vrot.slane %v1517, %v1548
    %v1551 = vmul.f32 %v1543, %v1549
    %v1552 = vmul.f32 %v1544, %v1549
    %v1554 = vlaneseq
    %v1555 = vshrl.u32 %v1554, 7
    %v1556 = vsub.s32 0, %v1555
    %v1557 = vrot.slane %v1518, %v1556
    %v1559 = vadd.f32 %v1551, %v1557
    %v1560 = vadd.f32 %v1552, %v1557
    %s1561 = scalar_lea.vmem %s5, 32
    %v1562 = vld [vmem:[%s1561] sm:$0xff]
    %v1563 = vld [vmem:[%s1561 + $0x8] sm:$0xff]
    %v1564 = vld [vmem:[%s1561 + $0x10] sm:$0xff]
    %v1565 = vld [vmem:[%s1561 + $0x18] sm:$0xff]
    %s1566 = scalar_lea.vmem [#allocation10], 1
    %v1567 = vld [vmem:[%s1566] sm:$0x1]
    %v1569 = vlaneseq
    %v1570 = vshrl.u32 %v1569, 7
    %v1571 = vsub.s32 0, %v1570
    %v1572 = vrot.slane %v1567, %v1571
    %v1575 = vsel %vm265, %v1559, 0
    %v1578 = vsel %vm265, %v1560, 0
    %1580 = vmatprep.subr.mxu0 0.0
    %1581 = vmatpush1.msra.mxu0 0.0
    %1582 = vmatprep.subr.mxu0 0.0
    %1583 = vmatpush1.msra.mxu0 0.0
    %1584 = vmatprep.subr.mxu0 0.0
    %1585 = vmatpush1.msra.mxu0 0.0
    %1586 = vmatprep.subr.mxu0 0.0
    %1587 = vmatpush1.msra.mxu0 0.0
    %1588 = vmatprep.subr.mxu0 0.0
    %1589 = vmatpush1.msra.mxu0 0.0
    %1590 = vmatprep.subr.mxu0 0.0
    %1591 = vmatpush1.msra.mxu0 0.0
    %1592 = vmatprep.subr.mxu0 0.0
    %1593 = vmatpush1.msra.mxu0 0.0
    %1594 = vmatprep.subr.mxu0 0.0
    %1595 = vmatpush1.msra.mxu0 0.0
    %1596 = vmatprep.subr.mxu0 0.0
    %1597 = vmatpush1.msra.mxu0 0.0
    %1598 = vmatprep.subr.mxu0 0.0
    %1599 = vmatpush1.msra.mxu0 0.0
    %1600 = vmatprep.subr.mxu0 0.0
    %1601 = vmatpush1.msra.mxu0 0.0
    %1602 = vmatprep.subr.mxu0 0.0
    %1603 = vmatpush1.msra.mxu0 0.0
    %1604 = vmatprep.subr.mxu0 0.0
    %1605 = vmatpush1.msra.mxu0 %v1565
    %1606 = vmatprep.subr.mxu0 0.0
    %1607 = vmatpush1.msra.mxu0 %v1564
    %1608 = vmatprep.subr.mxu0 0.0
    %1609 = vmatpush1.msra.mxu0 %v1563
    %1610 = vmatprep.subr.mxu0 0.0
    %1611 = vmatpush1.msra.mxu0 %v1562
    %1612 = vmatprep.subr.mxu0 0.0
    %1613 = vmatpush2.msra.mxu0 0.0
    %1614 = vmatprep.subr.mxu0 0.0
    %1615 = vmatpush2.msra.mxu0 0.0
    %1616 = vmatprep.subr.mxu0 0.0
    %1617 = vmatpush2.msra.mxu0 0.0
    %1618 = vmatprep.subr.mxu0 0.0
    %1619 = vmatpush2.msra.mxu0 0.0
    %1620 = vmatprep.subr.mxu0 0.0
    %1621 = vmatpush2.msra.mxu0 0.0
    %1622 = vmatprep.subr.mxu0 0.0
    %1623 = vmatpush2.msra.mxu0 0.0
    %1624 = vmatprep.subr.mxu0 0.0
    %1625 = vmatpush2.msra.mxu0 0.0
    %1626 = vmatprep.subr.mxu0 0.0
    %1627 = vmatpush2.msra.mxu0 0.0
    %1628 = vmatprep.subr.mxu0 0.0
    %1629 = vmatpush2.msra.mxu0 0.0
    %1630 = vmatprep.subr.mxu0 0.0
    %1631 = vmatpush2.msra.mxu0 0.0
    %1632 = vmatprep.subr.mxu0 0.0
    %1633 = vmatpush2.msra.mxu0 0.0
    %1634 = vmatprep.subr.mxu0 0.0
    %1635 = vmatpush2.msra.mxu0 0.0
    %1636 = vmatprep.subr.mxu0 0.0
    %1637 = vmatpush2.msra.mxu0 0.0
    %1638 = vmatprep.subr.mxu0 0.0
    %1639 = vmatpush2.msra.mxu0 0.0
    %1640 = vmatprep.subr.mxu0 0.0
    %1641 = vmatpush2.msra.mxu0 0.0
    %1642 = vmatprep.subr.mxu0 0.0
    %1643 = vmatpush2.msra.mxu0 0.0
    %1644 = vmatprep.mubr.f32.mxu0 0.0
    %1645 = vmatmul.mubr.f32.gmra.mxu0 %v1575
    %v1646 = vpop.f32.mrf.mxu0
    %v1647 = vadd.f32 %v1572, %v1646
    %v1648 = vpop.f32.mrf.mxu0
    %1649 = vmatprep.mubr.f32.mxu0 0.0
    %1650 = vmatmul.mubr.f32.gmra.mxu0 %v1578
    %v1651 = vpop.f32.mrf.mxu0
    %v1652 = vadd.f32 %v1572, %v1651
    %v1653 = vpop.f32.mrf.mxu0
    %1654 = vdwg.mxu0
    %s1655 = scalar_lea.vmem %s7, 32
    %v1656 = vld [vmem:[%s1655] sm:$0xff]
    %v1657 = vld [vmem:[%s1655 + $0x8] sm:$0xff]
    %v1658 = vld [vmem:[%s1655 + $0x10] sm:$0xff]
    %v1659 = vld [vmem:[%s1655 + $0x18] sm:$0xff]
    %1661 = vrot.lane.b32.xlu0 %v1647, 96
    %v1662 = vpop.permute.xlu0 %1661
    %v1663 = vsel %vm414, %v1647, 0
    %v1665 = vsel %vm414, %v1662, 0
    %1667 = vmatprep.subr.mxu0 0.0
    %1668 = vmatpush1.xpose.msra.mxu0 0.0
    %1669 = vmatprep.subr.mxu0 0.0
    %1670 = vmatpush1.xpose.msra.mxu0 0.0
    %1671 = vmatprep.subr.mxu0 0.0
    %1672 = vmatpush1.xpose.msra.mxu0 0.0
    %1673 = vmatprep.subr.mxu0 0.0
    %1674 = vmatpush1.xpose.msra.mxu0 0.0
    %1675 = vmatprep.subr.mxu0 0.0
    %1676 = vmatpush1.xpose.msra.mxu0 0.0
    %1677 = vmatprep.subr.mxu0 0.0
    %1678 = vmatpush1.xpose.msra.mxu0 0.0
    %1679 = vmatprep.subr.mxu0 0.0
    %1680 = vmatpush1.xpose.msra.mxu0 0.0
    %1681 = vmatprep.subr.mxu0 0.0
    %1682 = vmatpush1.xpose.msra.mxu0 0.0
    %1683 = vmatprep.subr.mxu0 0.0
    %1684 = vmatpush1.xpose.msra.mxu0 0.0
    %1685 = vmatprep.subr.mxu0 0.0
    %1686 = vmatpush1.xpose.msra.mxu0 0.0
    %1687 = vmatprep.subr.mxu0 0.0
    %1688 = vmatpush1.xpose.msra.mxu0 0.0
    %1689 = vmatprep.subr.mxu0 0.0
    %1690 = vmatpush1.xpose.msra.mxu0 0.0
    %1691 = vmatprep.subr.mxu0 0.0
    %1692 = vmatpush1.xpose.msra.mxu0 0.0
    %1693 = vmatprep.subr.mxu0 0.0
    %1694 = vmatpush1.xpose.msra.mxu0 0.0
    %1695 = vmatprep.subr.mxu0 0.0
    %1696 = vmatpush1.xpose.msra.mxu0 0.0
    %1697 = vmatprep.subr.mxu0 0.0
    %1698 = vmatpush1.xpose.msra.mxu0 %v1665
    %1699 = vmatprep.subr.mxu0 0.0
    %1700 = vmatpush2.xpose.msra.mxu0 0.0
    %1701 = vmatprep.subr.mxu0 0.0
    %1702 = vmatpush2.xpose.msra.mxu0 0.0
    %1703 = vmatprep.subr.mxu0 0.0
    %1704 = vmatpush2.xpose.msra.mxu0 0.0
    %1705 = vmatprep.subr.mxu0 0.0
    %1706 = vmatpush2.xpose.msra.mxu0 0.0
    %1707 = vmatprep.subr.mxu0 0.0
    %1708 = vmatpush2.xpose.msra.mxu0 0.0
    %1709 = vmatprep.subr.mxu0 0.0
    %1710 = vmatpush2.xpose.msra.mxu0 0.0
    %1711 = vmatprep.subr.mxu0 0.0
    %1712 = vmatpush2.xpose.msra.mxu0 0.0
    %1713 = vmatprep.subr.mxu0 0.0
    %1714 = vmatpush2.xpose.msra.mxu0 0.0
    %1715 = vmatprep.subr.mxu0 0.0
    %1716 = vmatpush2.xpose.msra.mxu0 0.0
    %1717 = vmatprep.subr.mxu0 0.0
    %1718 = vmatpush2.xpose.msra.mxu0 0.0
    %1719 = vmatprep.subr.mxu0 0.0
    %1720 = vmatpush2.xpose.msra.mxu0 0.0
    %1721 = vmatprep.subr.mxu0 0.0
    %1722 = vmatpush2.xpose.msra.mxu0 0.0
    %1723 = vmatprep.subr.mxu0 0.0
    %1724 = vmatpush2.xpose.msra.mxu0 0.0
    %1725 = vmatprep.subr.mxu0 0.0
    %1726 = vmatpush2.xpose.msra.mxu0 0.0
    %1727 = vmatprep.subr.mxu0 0.0
    %1728 = vmatpush2.xpose.msra.mxu0 0.0
    %1729 = vmatprep.subr.mxu0 0.0
    %1730 = vmatpush2.xpose.msra.mxu0 0.0
    %1731 = vmatprep.mubr.f32.mxu0 0.0
    %1732 = vmatmul.mubr.f32.gmra.mxu0 %v1663
    %v1733 = vpop.f32.mrf.mxu0
    %v1734 = vadd.f32 0.0, %v1733
    %v1735 = vpop.f32.mrf.mxu0
    %1736 = vdwg.mxu0
    %1738 = vrot.lane.b32.xlu0 %v1652, 96
    %v1739 = vpop.permute.xlu0 %1738
    %v1740 = vsel %vm414, %v1652, 0
    %v1742 = vsel %vm414, %v1739, 0
    %1744 = vmatprep.subr.mxu0 0.0
    %1745 = vmatpush1.xpose.msra.mxu0 0.0
    %1746 = vmatprep.subr.mxu0 0.0
    %1747 = vmatpush1.xpose.msra.mxu0 0.0
    %1748 = vmatprep.subr.mxu0 0.0
    %1749 = vmatpush1.xpose.msra.mxu0 0.0
    %1750 = vmatprep.subr.mxu0 0.0
    %1751 = vmatpush1.xpose.msra.mxu0 0.0
    %1752 = vmatprep.subr.mxu0 0.0
    %1753 = vmatpush1.xpose.msra.mxu0 0.0
    %1754 = vmatprep.subr.mxu0 0.0
    %1755 = vmatpush1.xpose.msra.mxu0 0.0
    %1756 = vmatprep.subr.mxu0 0.0
    %1757 = vmatpush1.xpose.msra.mxu0 0.0
    %1758 = vmatprep.subr.mxu0 0.0
    %1759 = vmatpush1.xpose.msra.mxu0 0.0
    %1760 = vmatprep.subr.mxu0 0.0
    %1761 = vmatpush1.xpose.msra.mxu0 0.0
    %1762 = vmatprep.subr.mxu0 0.0
    %1763 = vmatpush1.xpose.msra.mxu0 0.0
    %1764 = vmatprep.subr.mxu0 0.0
    %1765 = vmatpush1.xpose.msra.mxu0 0.0
    %1766 = vmatprep.subr.mxu0 0.0
    %1767 = vmatpush1.xpose.msra.mxu0 0.0
    %1768 = vmatprep.subr.mxu0 0.0
    %1769 = vmatpush1.xpose.msra.mxu0 0.0
    %1770 = vmatprep.subr.mxu0 0.0
    %1771 = vmatpush1.xpose.msra.mxu0 0.0
    %1772 = vmatprep.subr.mxu0 0.0
    %1773 = vmatpush1.xpose.msra.mxu0 0.0
    %1774 = vmatprep.subr.mxu0 0.0
    %1775 = vmatpush1.xpose.msra.mxu0 %v1742
    %1776 = vmatprep.subr.mxu0 0.0
    %1777 = vmatpush2.xpose.msra.mxu0 0.0
    %1778 = vmatprep.subr.mxu0 0.0
    %1779 = vmatpush2.xpose.msra.mxu0 0.0
    %1780 = vmatprep.subr.mxu0 0.0
    %1781 = vmatpush2.xpose.msra.mxu0 0.0
    %1782 = vmatprep.subr.mxu0 0.0
    %1783 = vmatpush2.xpose.msra.mxu0 0.0
    %1784 = vmatprep.subr.mxu0 0.0
    %1785 = vmatpush2.xpose.msra.mxu0 0.0
    %1786 = vmatprep.subr.mxu0 0.0
    %1787 = vmatpush2.xpose.msra.mxu0 0.0
    %1788 = vmatprep.subr.mxu0 0.0
    %1789 = vmatpush2.xpose.msra.mxu0 0.0
    %1790 = vmatprep.subr.mxu0 0.0
    %1791 = vmatpush2.xpose.msra.mxu0 0.0
    %1792 = vmatprep.subr.mxu0 0.0
    %1793 = vmatpush2.xpose.msra.mxu0 0.0
    %1794 = vmatprep.subr.mxu0 0.0
    %1795 = vmatpush2.xpose.msra.mxu0 0.0
    %1796 = vmatprep.subr.mxu0 0.0
    %1797 = vmatpush2.xpose.msra.mxu0 0.0
    %1798 = vmatprep.subr.mxu0 0.0
    %1799 = vmatpush2.xpose.msra.mxu0 0.0
    %1800 = vmatprep.subr.mxu0 0.0
    %1801 = vmatpush2.xpose.msra.mxu0 0.0
    %1802 = vmatprep.subr.mxu0 0.0
    %1803 = vmatpush2.xpose.msra.mxu0 0.0
    %1804 = vmatprep.subr.mxu0 0.0
    %1805 = vmatpush2.xpose.msra.mxu0 0.0
    %1806 = vmatprep.subr.mxu0 0.0
    %1807 = vmatpush2.xpose.msra.mxu0 0.0
    %1808 = vmatprep.mubr.f32.mxu0 0.0
    %1809 = vmatmul.mubr.f32.gmra.mxu0 %v1740
    %v1810 = vpop.f32.mrf.mxu0
    %v1811 = vadd.f32 0.0, %v1810
    %v1812 = vpop.f32.mrf.mxu0
    %1813 = vdwg.mxu0
    %v1814 = vmul.f32 %v1734, 0.25
    %v1815 = vmul.f32 %v1811, 0.25
    %v1816 = vadd.f32 %v1814, %v573
    %v1817 = vadd.f32 %v1815, %v577
    %v1818 = vsel %vm582, %v1816, -inf
    %1819 = vmax.xlane.f32.xlu0 %v1818
    %v1820 = vpop.xlane.xlu0 %1819
    %v1821 = vsel %vm582, %v1817, -inf
    %1822 = vmax.xlane.f32.xlu0 %v1821
    %v1823 = vpop.xlane.xlu0 %1822
    %v1824 = vsub.f32 %v1816, %v1820
    %v1825 = vsub.f32 %v1817, %v1823
    %v1826 = vmul.f32 %v1824, 1.442695
    %v1827 = vpow.pop %v1826
    %v1828 = vmul.f32 %v1825, 1.442695
    %v1829 = vpow.pop %v1828
    %v1830 = vsel %vm582, %v1827, 0.0
    %1831 = vadd.xlane.f32.xlu0 %v1830
    %v1832 = vpop.xlane.xlu0 %1831
    %v1833 = vsel %vm582, %v1829, 0.0
    %1834 = vadd.xlane.f32.xlu0 %v1833
    %v1835 = vpop.xlane.xlu0 %1834
    %v1836 = vrcp.pop %v1832
    %v1837 = vrcp.pop %v1835
    %v1838 = vmul.f32 %v1827, %v1836
    %v1839 = vmul.f32 %v1829, %v1837
    %1840 = vrot.lane.b32.xlu0 %v1647, 64
    %v1841 = vpop.permute.xlu0 %1840
    %v1844 = vsel %vm582, %v1838, 0
    %1846 = vmatprep.subr.mxu0 0.0
    %1847 = vmatpush1.msra.mxu0 0.0
    %1848 = vmatprep.subr.mxu0 0.0
    %1849 = vmatpush1.msra.mxu0 0.0
    %1850 = vmatprep.subr.mxu0 0.0
    %1851 = vmatpush1.msra.mxu0 0.0
    %1852 = vmatprep.subr.mxu0 0.0
    %1853 = vmatpush1.msra.mxu0 0.0
    %1854 = vmatprep.subr.mxu0 0.0
    %1855 = vmatpush1.msra.mxu0 0.0
    %1856 = vmatprep.subr.mxu0 0.0
    %1857 = vmatpush1.msra.mxu0 0.0
    %1858 = vmatprep.subr.mxu0 0.0
    %1859 = vmatpush1.msra.mxu0 0.0
    %1860 = vmatprep.subr.mxu0 0.0
    %1861 = vmatpush1.msra.mxu0 0.0
    %1862 = vmatprep.subr.mxu0 0.0
    %1863 = vmatpush1.msra.mxu0 0.0
    %1864 = vmatprep.subr.mxu0 0.0
    %1865 = vmatpush1.msra.mxu0 0.0
    %1866 = vmatprep.subr.mxu0 0.0
    %1867 = vmatpush1.msra.mxu0 0.0
    %1868 = vmatprep.subr.mxu0 0.0
    %1869 = vmatpush1.msra.mxu0 0.0
    %1870 = vmatprep.subr.mxu0 0.0
    %1871 = vmatpush1.msra.mxu0 0.0
    %1872 = vmatprep.subr.mxu0 0.0
    %1873 = vmatpush1.msra.mxu0 0.0
    %1874 = vmatprep.subr.mxu0 0.0
    %1875 = vmatpush1.msra.mxu0 0.0
    %1876 = vmatprep.subr.mxu0 0.0
    %1877 = vmatpush1.msra.mxu0 %v1841
    %1878 = vmatprep.subr.mxu0 0.0
    %1879 = vmatpush2.msra.mxu0 0.0
    %1880 = vmatprep.subr.mxu0 0.0
    %1881 = vmatpush2.msra.mxu0 0.0
    %1882 = vmatprep.subr.mxu0 0.0
    %1883 = vmatpush2.msra.mxu0 0.0
    %1884 = vmatprep.subr.mxu0 0.0
    %1885 = vmatpush2.msra.mxu0 0.0
    %1886 = vmatprep.subr.mxu0 0.0
    %1887 = vmatpush2.msra.mxu0 0.0
    %1888 = vmatprep.subr.mxu0 0.0
    %1889 = vmatpush2.msra.mxu0 0.0
    %1890 = vmatprep.subr.mxu0 0.0
    %1891 = vmatpush2.msra.mxu0 0.0
    %1892 = vmatprep.subr.mxu0 0.0
    %1893 = vmatpush2.msra.mxu0 0.0
    %1894 = vmatprep.subr.mxu0 0.0
    %1895 = vmatpush2.msra.mxu0 0.0
    %1896 = vmatprep.subr.mxu0 0.0
    %1897 = vmatpush2.msra.mxu0 0.0
    %1898 = vmatprep.subr.mxu0 0.0
    %1899 = vmatpush2.msra.mxu0 0.0
    %1900 = vmatprep.subr.mxu0 0.0
    %1901 = vmatpush2.msra.mxu0 0.0
    %1902 = vmatprep.subr.mxu0 0.0
    %1903 = vmatpush2.msra.mxu0 0.0
    %1904 = vmatprep.subr.mxu0 0.0
    %1905 = vmatpush2.msra.mxu0 0.0
    %1906 = vmatprep.subr.mxu0 0.0
    %1907 = vmatpush2.msra.mxu0 0.0
    %1908 = vmatprep.subr.mxu0 0.0
    %1909 = vmatpush2.msra.mxu0 0.0
    %1910 = vmatprep.mubr.f32.mxu0 0.0
    %1911 = vmatmul.mubr.f32.gmra.mxu0 %v1844
    %v1912 = vpop.f32.mrf.mxu0
    %v1913 = vadd.f32 0.0, %v1912
    %v1914 = vpop.f32.mrf.mxu0
    %1915 = vdwg.mxu0
    %1916 = vrot.lane.b32.xlu0 %v1652, 64
    %v1917 = vpop.permute.xlu0 %1916
    %v1920 = vsel %vm582, %v1839, 0
    %1922 = vmatprep.subr.mxu0 0.0
    %1923 = vmatpush1.msra.mxu0 0.0
    %1924 = vmatprep.subr.mxu0 0.0
    %1925 = vmatpush1.msra.mxu0 0.0
    %1926 = vmatprep.subr.mxu0 0.0
    %1927 = vmatpush1.msra.mxu0 0.0
    %1928 = vmatprep.subr.mxu0 0.0
    %1929 = vmatpush1.msra.mxu0 0.0
    %1930 = vmatprep.subr.mxu0 0.0
    %1931 = vmatpush1.msra.mxu0 0.0
    %1932 = vmatprep.subr.mxu0 0.0
    %1933 = vmatpush1.msra.mxu0 0.0
    %1934 = vmatprep.subr.mxu0 0.0
    %1935 = vmatpush1.msra.mxu0 0.0
    %1936 = vmatprep.subr.mxu0 0.0
    %1937 = vmatpush1.msra.mxu0 0.0
    %1938 = vmatprep.subr.mxu0 0.0
    %1939 = vmatpush1.msra.mxu0 0.0
    %1940 = vmatprep.subr.mxu0 0.0
    %1941 = vmatpush1.msra.mxu0 0.0
    %1942 = vmatprep.subr.mxu0 0.0
    %1943 = vmatpush1.msra.mxu0 0.0
    %1944 = vmatprep.subr.mxu0 0.0
    %1945 = vmatpush1.msra.mxu0 0.0
    %1946 = vmatprep.subr.mxu0 0.0
    %1947 = vmatpush1.msra.mxu0 0.0
    %1948 = vmatprep.subr.mxu0 0.0
    %1949 = vmatpush1.msra.mxu0 0.0
    %1950 = vmatprep.subr.mxu0 0.0
    %1951 = vmatpush1.msra.mxu0 0.0
    %1952 = vmatprep.subr.mxu0 0.0
    %1953 = vmatpush1.msra.mxu0 %v1917
    %1954 = vmatprep.subr.mxu0 0.0
    %1955 = vmatpush2.msra.mxu0 0.0
    %1956 = vmatprep.subr.mxu0 0.0
    %1957 = vmatpush2.msra.mxu0 0.0
    %1958 = vmatprep.subr.mxu0 0.0
    %1959 = vmatpush2.msra.mxu0 0.0
    %1960 = vmatprep.subr.mxu0 0.0
    %1961 = vmatpush2.msra.mxu0 0.0
    %1962 = vmatprep.subr.mxu0 0.0
    %1963 = vmatpush2.msra.mxu0 0.0
    %1964 = vmatprep.subr.mxu0 0.0
    %1965 = vmatpush2.msra.mxu0 0.0
    %1966 = vmatprep.subr.mxu0 0.0
    %1967 = vmatpush2.msra.mxu0 0.0
    %1968 = vmatprep.subr.mxu0 0.0
    %1969 = vmatpush2.msra.mxu0 0.0
    %1970 = vmatprep.subr.mxu0 0.0
    %1971 = vmatpush2.msra.mxu0 0.0
    %1972 = vmatprep.subr.mxu0 0.0
    %1973 = vmatpush2.msra.mxu0 0.0
    %1974 = vmatprep.subr.mxu0 0.0
    %1975 = vmatpush2.msra.mxu0 0.0
    %1976 = vmatprep.subr.mxu0 0.0
    %1977 = vmatpush2.msra.mxu0 0.0
    %1978 = vmatprep.subr.mxu0 0.0
    %1979 = vmatpush2.msra.mxu0 0.0
    %1980 = vmatprep.subr.mxu0 0.0
    %1981 = vmatpush2.msra.mxu0 0.0
    %1982 = vmatprep.subr.mxu0 0.0
    %1983 = vmatpush2.msra.mxu0 0.0
    %1984 = vmatprep.subr.mxu0 0.0
    %1985 = vmatpush2.msra.mxu0 0.0
    %1986 = vmatprep.mubr.f32.mxu0 0.0
    %1987 = vmatmul.mubr.f32.gmra.mxu0 %v1920
    %v1988 = vpop.f32.mrf.mxu0
    %v1989 = vadd.f32 0.0, %v1988
    %v1990 = vpop.f32.mrf.mxu0
    %1991 = vdwg.mxu0
    %1992 = vrot.lane.b32.xlu0 %v1647, 112
    %v1993 = vpop.permute.xlu0 %1992
    %1994 = vrot.lane.b32.xlu0 %v1647, 80
    %v1995 = vpop.permute.xlu0 %1994
    %v1996 = vsel %vm414, %v1993, 0
    %v1998 = vsel %vm414, %v1995, 0
    %2000 = vmatprep.subr.mxu0 0.0
    %2001 = vmatpush1.xpose.msra.mxu0 0.0
    %2002 = vmatprep.subr.mxu0 0.0
    %2003 = vmatpush1.xpose.msra.mxu0 0.0
    %2004 = vmatprep.subr.mxu0 0.0
    %2005 = vmatpush1.xpose.msra.mxu0 0.0
    %2006 = vmatprep.subr.mxu0 0.0
    %2007 = vmatpush1.xpose.msra.mxu0 0.0
    %2008 = vmatprep.subr.mxu0 0.0
    %2009 = vmatpush1.xpose.msra.mxu0 0.0
    %2010 = vmatprep.subr.mxu0 0.0
    %2011 = vmatpush1.xpose.msra.mxu0 0.0
    %2012 = vmatprep.subr.mxu0 0.0
    %2013 = vmatpush1.xpose.msra.mxu0 0.0
    %2014 = vmatprep.subr.mxu0 0.0
    %2015 = vmatpush1.xpose.msra.mxu0 0.0
    %2016 = vmatprep.subr.mxu0 0.0
    %2017 = vmatpush1.xpose.msra.mxu0 0.0
    %2018 = vmatprep.subr.mxu0 0.0
    %2019 = vmatpush1.xpose.msra.mxu0 0.0
    %2020 = vmatprep.subr.mxu0 0.0
    %2021 = vmatpush1.xpose.msra.mxu0 0.0
    %2022 = vmatprep.subr.mxu0 0.0
    %2023 = vmatpush1.xpose.msra.mxu0 0.0
    %2024 = vmatprep.subr.mxu0 0.0
    %2025 = vmatpush1.xpose.msra.mxu0 0.0
    %2026 = vmatprep.subr.mxu0 0.0
    %2027 = vmatpush1.xpose.msra.mxu0 0.0
    %2028 = vmatprep.subr.mxu0 0.0
    %2029 = vmatpush1.xpose.msra.mxu0 0.0
    %2030 = vmatprep.subr.mxu0 0.0
    %2031 = vmatpush1.xpose.msra.mxu0 %v1998
    %2032 = vmatprep.subr.mxu0 0.0
    %2033 = vmatpush2.xpose.msra.mxu0 0.0
    %2034 = vmatprep.subr.mxu0 0.0
    %2035 = vmatpush2.xpose.msra.mxu0 0.0
    %2036 = vmatprep.subr.mxu0 0.0
    %2037 = vmatpush2.xpose.msra.mxu0 0.0
    %2038 = vmatprep.subr.mxu0 0.0
    %2039 = vmatpush2.xpose.msra.mxu0 0.0
    %2040 = vmatprep.subr.mxu0 0.0
    %2041 = vmatpush2.xpose.msra.mxu0 0.0
    %2042 = vmatprep.subr.mxu0 0.0
    %2043 = vmatpush2.xpose.msra.mxu0 0.0
    %2044 = vmatprep.subr.mxu0 0.0
    %2045 = vmatpush2.xpose.msra.mxu0 0.0
    %2046 = vmatprep.subr.mxu0 0.0
    %2047 = vmatpush2.xpose.msra.mxu0 0.0
    %2048 = vmatprep.subr.mxu0 0.0
    %2049 = vmatpush2.xpose.msra.mxu0 0.0
    %2050 = vmatprep.subr.mxu0 0.0
    %2051 = vmatpush2.xpose.msra.mxu0 0.0
    %2052 = vmatprep.subr.mxu0 0.0
    %2053 = vmatpush2.xpose.msra.mxu0 0.0
    %2054 = vmatprep.subr.mxu0 0.0
    %2055 = vmatpush2.xpose.msra.mxu0 0.0
    %2056 = vmatprep.subr.mxu0 0.0
    %2057 = vmatpush2.xpose.msra.mxu0 0.0
    %2058 = vmatprep.subr.mxu0 0.0
    %2059 = vmatpush2.xpose.msra.mxu0 0.0
    %2060 = vmatprep.subr.mxu0 0.0
    %2061 = vmatpush2.xpose.msra.mxu0 0.0
    %2062 = vmatprep.subr.mxu0 0.0
    %2063 = vmatpush2.xpose.msra.mxu0 0.0
    %2064 = vmatprep.mubr.f32.mxu0 0.0
    %2065 = vmatmul.mubr.f32.gmra.mxu0 %v1996
    %v2066 = vpop.f32.mrf.mxu0
    %v2067 = vadd.f32 0.0, %v2066
    %v2068 = vpop.f32.mrf.mxu0
    %2069 = vdwg.mxu0
    %2070 = vrot.lane.b32.xlu0 %v1652, 112
    %v2071 = vpop.permute.xlu0 %2070
    %2072 = vrot.lane.b32.xlu0 %v1652, 80
    %v2073 = vpop.permute.xlu0 %2072
    %v2074 = vsel %vm414, %v2071, 0
    %v2076 = vsel %vm414, %v2073, 0
    %2078 = vmatprep.subr.mxu0 0.0
    %2079 = vmatpush1.xpose.msra.mxu0 0.0
    %2080 = vmatprep.subr.mxu0 0.0
    %2081 = vmatpush1.xpose.msra.mxu0 0.0
    %2082 = vmatprep.subr.mxu0 0.0
    %2083 = vmatpush1.xpose.msra.mxu0 0.0
    %2084 = vmatprep.subr.mxu0 0.0
    %2085 = vmatpush1.xpose.msra.mxu0 0.0
    %2086 = vmatprep.subr.mxu0 0.0
    %2087 = vmatpush1.xpose.msra.mxu0 0.0
    %2088 = vmatprep.subr.mxu0 0.0
    %2089 = vmatpush1.xpose.msra.mxu0 0.0
    %2090 = vmatprep.subr.mxu0 0.0
    %2091 = vmatpush1.xpose.msra.mxu0 0.0
    %2092 = vmatprep.subr.mxu0 0.0
    %2093 = vmatpush1.xpose.msra.mxu0 0.0
    %2094 = vmatprep.subr.mxu0 0.0
    %2095 = vmatpush1.xpose.msra.mxu0 0.0
    %2096 = vmatprep.subr.mxu0 0.0
    %2097 = vmatpush1.xpose.msra.mxu0 0.0
    %2098 = vmatprep.subr.mxu0 0.0
    %2099 = vmatpush1.xpose.msra.mxu0 0.0
    %2100 = vmatprep.subr.mxu0 0.0
    %2101 = vmatpush1.xpose.msra.mxu0 0.0
    %2102 = vmatprep.subr.mxu0 0.0
    %2103 = vmatpush1.xpose.msra.mxu0 0.0
    %2104 = vmatprep.subr.mxu0 0.0
    %2105 = vmatpush1.xpose.msra.mxu0 0.0
    %2106 = vmatprep.subr.mxu0 0.0
    %2107 = vmatpush1.xpose.msra.mxu0 0.0
    %2108 = vmatprep.subr.mxu0 0.0
    %2109 = vmatpush1.xpose.msra.mxu0 %v2076
    %2110 = vmatprep.subr.mxu0 0.0
    %2111 = vmatpush2.xpose.msra.mxu0 0.0
    %2112 = vmatprep.subr.mxu0 0.0
    %2113 = vmatpush2.xpose.msra.mxu0 0.0
    %2114 = vmatprep.subr.mxu0 0.0
    %2115 = vmatpush2.xpose.msra.mxu0 0.0
    %2116 = vmatprep.subr.mxu0 0.0
    %2117 = vmatpush2.xpose.msra.mxu0 0.0
    %2118 = vmatprep.subr.mxu0 0.0
    %2119 = vmatpush2.xpose.msra.mxu0 0.0
    %2120 = vmatprep.subr.mxu0 0.0
    %2121 = vmatpush2.xpose.msra.mxu0 0.0
    %2122 = vmatprep.subr.mxu0 0.0
    %2123 = vmatpush2.xpose.msra.mxu0 0.0
    %2124 = vmatprep.subr.mxu0 0.0
    %2125 = vmatpush2.xpose.msra.mxu0 0.0
    %2126 = vmatprep.subr.mxu0 0.0
    %2127 = vmatpush2.xpose.msra.mxu0 0.0
    %2128 = vmatprep.subr.mxu0 0.0
    %2129 = vmatpush2.xpose.msra.mxu0 0.0
    %2130 = vmatprep.subr.mxu0 0.0
    %2131 = vmatpush2.xpose.msra.mxu0 0.0
    %2132 = vmatprep.subr.mxu0 0.0
    %2133 = vmatpush2.xpose.msra.mxu0 0.0
    %2134 = vmatprep.subr.mxu0 0.0
    %2135 = vmatpush2.xpose.msra.mxu0 0.0
    %2136 = vmatprep.subr.mxu0 0.0
    %2137 = vmatpush2.xpose.msra.mxu0 0.0
    %2138 = vmatprep.subr.mxu0 0.0
    %2139 = vmatpush2.xpose.msra.mxu0 0.0
    %2140 = vmatprep.subr.mxu0 0.0
    %2141 = vmatpush2.xpose.msra.mxu0 0.0
    %2142 = vmatprep.mubr.f32.mxu0 0.0
    %2143 = vmatmul.mubr.f32.gmra.mxu0 %v2074
    %v2144 = vpop.f32.mrf.mxu0
    %v2145 = vadd.f32 0.0, %v2144
    %v2146 = vpop.f32.mrf.mxu0
    %2147 = vdwg.mxu0
    %v2148 = vmul.f32 %v2067, 0.25
    %v2149 = vmul.f32 %v2145, 0.25
    %v2150 = vadd.f32 %v2148, %v573
    %v2151 = vadd.f32 %v2149, %v577
    %v2152 = vsel %vm582, %v2150, -inf
    %2153 = vmax.xlane.f32.xlu0 %v2152
    %v2154 = vpop.xlane.xlu0 %2153
    %v2155 = vsel %vm582, %v2151, -inf
    %2156 = vmax.xlane.f32.xlu0 %v2155
    %v2157 = vpop.xlane.xlu0 %2156
    %v2158 = vsub.f32 %v2150, %v2154
    %v2159 = vsub.f32 %v2151, %v2157
    %v2160 = vmul.f32 %v2158, 1.442695
    %v2161 = vpow.pop %v2160
    %v2162 = vmul.f32 %v2159, 1.442695
    %v2163 = vpow.pop %v2162
    %v2164 = vsel %vm582, %v2161, 0.0
    %2165 = vadd.xlane.f32.xlu0 %v2164
    %v2166 = vpop.xlane.xlu0 %2165
    %v2167 = vsel %vm582, %v2163, 0.0
    %2168 = vadd.xlane.f32.xlu0 %v2167
    %v2169 = vpop.xlane.xlu0 %2168
    %v2170 = vrcp.pop %v2166
    %v2171 = vrcp.pop %v2169
    %v2172 = vmul.f32 %v2161, %v2170
    %v2173 = vmul.f32 %v2163, %v2171
    %2174 = vrot.lane.b32.xlu0 %v1647, 48
    %v2175 = vpop.permute.xlu0 %2174
    %v2178 = vsel %vm582, %v2172, 0
    %2180 = vmatprep.subr.mxu0 0.0
    %2181 = vmatpush1.msra.mxu0 0.0
    %2182 = vmatprep.subr.mxu0 0.0
    %2183 = vmatpush1.msra.mxu0 0.0
    %2184 = vmatprep.subr.mxu0 0.0
    %2185 = vmatpush1.msra.mxu0 0.0
    %2186 = vmatprep.subr.mxu0 0.0
    %2187 = vmatpush1.msra.mxu0 0.0
    %2188 = vmatprep.subr.mxu0 0.0
    %2189 = vmatpush1.msra.mxu0 0.0
    %2190 = vmatprep.subr.mxu0 0.0
    %2191 = vmatpush1.msra.mxu0 0.0
    %2192 = vmatprep.subr.mxu0 0.0
    %2193 = vmatpush1.msra.mxu0 0.0
    %2194 = vmatprep.subr.mxu0 0.0
    %2195 = vmatpush1.msra.mxu0 0.0
    %2196 = vmatprep.subr.mxu0 0.0
    %2197 = vmatpush1.msra.mxu0 0.0
    %2198 = vmatprep.subr.mxu0 0.0
    %2199 = vmatpush1.msra.mxu0 0.0
    %2200 = vmatprep.subr.mxu0 0.0
    %2201 = vmatpush1.msra.mxu0 0.0
    %2202 = vmatprep.subr.mxu0 0.0
    %2203 = vmatpush1.msra.mxu0 0.0
    %2204 = vmatprep.subr.mxu0 0.0
    %2205 = vmatpush1.msra.mxu0 0.0
    %2206 = vmatprep.subr.mxu0 0.0
    %2207 = vmatpush1.msra.mxu0 0.0
    %2208 = vmatprep.subr.mxu0 0.0
    %2209 = vmatpush1.msra.mxu0 0.0
    %2210 = vmatprep.subr.mxu0 0.0
    %2211 = vmatpush1.msra.mxu0 %v2175
    %2212 = vmatprep.subr.mxu0 0.0
    %2213 = vmatpush2.msra.mxu0 0.0
    %2214 = vmatprep.subr.mxu0 0.0
    %2215 = vmatpush2.msra.mxu0 0.0
    %2216 = vmatprep.subr.mxu0 0.0
    %2217 = vmatpush2.msra.mxu0 0.0
    %2218 = vmatprep.subr.mxu0 0.0
    %2219 = vmatpush2.msra.mxu0 0.0
    %2220 = vmatprep.subr.mxu0 0.0
    %2221 = vmatpush2.msra.mxu0 0.0
    %2222 = vmatprep.subr.mxu0 0.0
    %2223 = vmatpush2.msra.mxu0 0.0
    %2224 = vmatprep.subr.mxu0 0.0
    %2225 = vmatpush2.msra.mxu0 0.0
    %2226 = vmatprep.subr.mxu0 0.0
    %2227 = vmatpush2.msra.mxu0 0.0
    %2228 = vmatprep.subr.mxu0 0.0
    %2229 = vmatpush2.msra.mxu0 0.0
    %2230 = vmatprep.subr.mxu0 0.0
    %2231 = vmatpush2.msra.mxu0 0.0
    %2232 = vmatprep.subr.mxu0 0.0
    %2233 = vmatpush2.msra.mxu0 0.0
    %2234 = vmatprep.subr.mxu0 0.0
    %2235 = vmatpush2.msra.mxu0 0.0
    %2236 = vmatprep.subr.mxu0 0.0
    %2237 = vmatpush2.msra.mxu0 0.0
    %2238 = vmatprep.subr.mxu0 0.0
    %2239 = vmatpush2.msra.mxu0 0.0
    %2240 = vmatprep.subr.mxu0 0.0
    %2241 = vmatpush2.msra.mxu0 0.0
    %2242 = vmatprep.subr.mxu0 0.0
    %2243 = vmatpush2.msra.mxu0 0.0
    %2244 = vmatprep.mubr.f32.mxu0 0.0
    %2245 = vmatmul.mubr.f32.gmra.mxu0 %v2178
    %v2246 = vpop.f32.mrf.mxu0
    %v2247 = vadd.f32 0.0, %v2246
    %v2248 = vpop.f32.mrf.mxu0
    %2249 = vdwg.mxu0
    %2250 = vrot.lane.b32.xlu0 %v1652, 48
    %v2251 = vpop.permute.xlu0 %2250
    %v2254 = vsel %vm582, %v2173, 0
    %2256 = vmatprep.subr.mxu0 0.0
    %2257 = vmatpush1.msra.mxu0 0.0
    %2258 = vmatprep.subr.mxu0 0.0
    %2259 = vmatpush1.msra.mxu0 0.0
    %2260 = vmatprep.subr.mxu0 0.0
    %2261 = vmatpush1.msra.mxu0 0.0
    %2262 = vmatprep.subr.mxu0 0.0
    %2263 = vmatpush1.msra.mxu0 0.0
    %2264 = vmatprep.subr.mxu0 0.0
    %2265 = vmatpush1.msra.mxu0 0.0
    %2266 = vmatprep.subr.mxu0 0.0
    %2267 = vmatpush1.msra.mxu0 0.0
    %2268 = vmatprep.subr.mxu0 0.0
    %2269 = vmatpush1.msra.mxu0 0.0
    %2270 = vmatprep.subr.mxu0 0.0
    %2271 = vmatpush1.msra.mxu0 0.0
    %2272 = vmatprep.subr.mxu0 0.0
    %2273 = vmatpush1.msra.mxu0 0.0
    %2274 = vmatprep.subr.mxu0 0.0
    %2275 = vmatpush1.msra.mxu0 0.0
    %2276 = vmatprep.subr.mxu0 0.0
    %2277 = vmatpush1.msra.mxu0 0.0
    %2278 = vmatprep.subr.mxu0 0.0
    %2279 = vmatpush1.msra.mxu0 0.0
    %2280 = vmatprep.subr.mxu0 0.0
    %2281 = vmatpush1.msra.mxu0 0.0
    %2282 = vmatprep.subr.mxu0 0.0
    %2283 = vmatpush1.msra.mxu0 0.0
    %2284 = vmatprep.subr.mxu0 0.0
    %2285 = vmatpush1.msra.mxu0 0.0
    %2286 = vmatprep.subr.mxu0 0.0
    %2287 = vmatpush1.msra.mxu0 %v2251
    %2288 = vmatprep.subr.mxu0 0.0
    %2289 = vmatpush2.msra.mxu0 0.0
    %2290 = vmatprep.subr.mxu0 0.0
    %2291 = vmatpush2.msra.mxu0 0.0
    %2292 = vmatprep.subr.mxu0 0.0
    %2293 = vmatpush2.msra.mxu0 0.0
    %2294 = vmatprep.subr.mxu0 0.0
    %2295 = vmatpush2.msra.mxu0 0.0
    %2296 = vmatprep.subr.mxu0 0.0
    %2297 = vmatpush2.msra.mxu0 0.0
    %2298 = vmatprep.subr.mxu0 0.0
    %2299 = vmatpush2.msra.mxu0 0.0
    %2300 = vmatprep.subr.mxu0 0.0
    %2301 = vmatpush2.msra.mxu0 0.0
    %2302 = vmatprep.subr.mxu0 0.0
    %2303 = vmatpush2.msra.mxu0 0.0
    %2304 = vmatprep.subr.mxu0 0.0
    %2305 = vmatpush2.msra.mxu0 0.0
    %2306 = vmatprep.subr.mxu0 0.0
    %2307 = vmatpush2.msra.mxu0 0.0
    %2308 = vmatprep.subr.mxu0 0.0
    %2309 = vmatpush2.msra.mxu0 0.0
    %2310 = vmatprep.subr.mxu0 0.0
    %2311 = vmatpush2.msra.mxu0 0.0
    %2312 = vmatprep.subr.mxu0 0.0
    %2313 = vmatpush2.msra.mxu0 0.0
    %2314 = vmatprep.subr.mxu0 0.0
    %2315 = vmatpush2.msra.mxu0 0.0
    %2316 = vmatprep.subr.mxu0 0.0
    %2317 = vmatpush2.msra.mxu0 0.0
    %2318 = vmatprep.subr.mxu0 0.0
    %2319 = vmatpush2.msra.mxu0 0.0
    %2320 = vmatprep.mubr.f32.mxu0 0.0
    %2321 = vmatmul.mubr.f32.gmra.mxu0 %v2254
    %v2322 = vpop.f32.mrf.mxu0
    %v2323 = vadd.f32 0.0, %v2322
    %v2324 = vpop.f32.mrf.mxu0
    %2325 = vdwg.mxu0
    %v2327 = vsel %vm414, %v2247, 0
    %v2330 = vsel %vm414, %v2323, 0
    %2332 = vmatprep.subr.mxu0 0.0
    %2333 = vmatpush1.msra.mxu0 0.0
    %2334 = vmatprep.subr.mxu0 0.0
    %2335 = vmatpush1.msra.mxu0 0.0
    %2336 = vmatprep.subr.mxu0 0.0
    %2337 = vmatpush1.msra.mxu0 0.0
    %2338 = vmatprep.subr.mxu0 0.0
    %2339 = vmatpush1.msra.mxu0 0.0
    %2340 = vmatprep.subr.mxu0 0.0
    %2341 = vmatpush1.msra.mxu0 0.0
    %2342 = vmatprep.subr.mxu0 0.0
    %2343 = vmatpush1.msra.mxu0 0.0
    %2344 = vmatprep.subr.mxu0 0.0
    %2345 = vmatpush1.msra.mxu0 0.0
    %2346 = vmatprep.subr.mxu0 0.0
    %2347 = vmatpush1.msra.mxu0 0.0
    %2348 = vmatprep.subr.mxu0 0.0
    %2349 = vmatpush1.msra.mxu0 0.0
    %2350 = vmatprep.subr.mxu0 0.0
    %2351 = vmatpush1.msra.mxu0 0.0
    %2352 = vmatprep.subr.mxu0 0.0
    %2353 = vmatpush1.msra.mxu0 0.0
    %2354 = vmatprep.subr.mxu0 0.0
    %2355 = vmatpush1.msra.mxu0 0.0
    %2356 = vmatprep.subr.mxu0 0.0
    %2357 = vmatpush1.msra.mxu0 0.0
    %2358 = vmatprep.subr.mxu0 0.0
    %2359 = vmatpush1.msra.mxu0 0.0
    %2360 = vmatprep.subr.mxu0 0.0
    %2361 = vmatpush1.msra.mxu0 %v1659
    %2362 = vmatprep.subr.mxu0 0.0
    %2363 = vmatpush1.msra.mxu0 %v1658
    %2364 = vmatprep.subr.mxu0 0.0
    %2365 = vmatpush2.msra.mxu0 0.0
    %2366 = vmatprep.subr.mxu0 0.0
    %2367 = vmatpush2.msra.mxu0 0.0
    %2368 = vmatprep.subr.mxu0 0.0
    %2369 = vmatpush2.msra.mxu0 0.0
    %2370 = vmatprep.subr.mxu0 0.0
    %2371 = vmatpush2.msra.mxu0 0.0
    %2372 = vmatprep.subr.mxu0 0.0
    %2373 = vmatpush2.msra.mxu0 0.0
    %2374 = vmatprep.subr.mxu0 0.0
    %2375 = vmatpush2.msra.mxu0 0.0
    %2376 = vmatprep.subr.mxu0 0.0
    %2377 = vmatpush2.msra.mxu0 0.0
    %2378 = vmatprep.subr.mxu0 0.0
    %2379 = vmatpush2.msra.mxu0 0.0
    %2380 = vmatprep.subr.mxu0 0.0
    %2381 = vmatpush2.msra.mxu0 0.0
    %2382 = vmatprep.subr.mxu0 0.0
    %2383 = vmatpush2.msra.mxu0 0.0
    %2384 = vmatprep.subr.mxu0 0.0
    %2385 = vmatpush2.msra.mxu0 0.0
    %2386 = vmatprep.subr.mxu0 0.0
    %2387 = vmatpush2.msra.mxu0 0.0
    %2388 = vmatprep.subr.mxu0 0.0
    %2389 = vmatpush2.msra.mxu0 0.0
    %2390 = vmatprep.subr.mxu0 0.0
    %2391 = vmatpush2.msra.mxu0 0.0
    %2392 = vmatprep.subr.mxu0 0.0
    %2393 = vmatpush2.msra.mxu0 0.0
    %2394 = vmatprep.subr.mxu0 0.0
    %2395 = vmatpush2.msra.mxu0 0.0
    %2396 = vmatprep.mubr.f32.mxu0 0.0
    %2397 = vmatmul.mubr.f32.gmra.mxu0 %v2327
    %v2398 = vpop.f32.mrf.mxu0
    %v2399 = vadd.f32 0.0, %v2398
    %v2400 = vpop.f32.mrf.mxu0
    %2401 = vmatprep.mubr.f32.mxu0 0.0
    %2402 = vmatmul.mubr.f32.gmra.mxu0 %v2330
    %v2403 = vpop.f32.mrf.mxu0
    %v2404 = vadd.f32 0.0, %v2403
    %v2405 = vpop.f32.mrf.mxu0
    %2406 = vdwg.mxu0
    %v2408 = vsel %vm414, %v1913, 0
    %v2411 = vsel %vm414, %v1989, 0
    %2413 = vmatprep.subr.mxu0 0.0
    %2414 = vmatpush1.msra.mxu0 0.0
    %2415 = vmatprep.subr.mxu0 0.0
    %2416 = vmatpush1.msra.mxu0 0.0
    %2417 = vmatprep.subr.mxu0 0.0
    %2418 = vmatpush1.msra.mxu0 0.0
    %2419 = vmatprep.subr.mxu0 0.0
    %2420 = vmatpush1.msra.mxu0 0.0
    %2421 = vmatprep.subr.mxu0 0.0
    %2422 = vmatpush1.msra.mxu0 0.0
    %2423 = vmatprep.subr.mxu0 0.0
    %2424 = vmatpush1.msra.mxu0 0.0
    %2425 = vmatprep.subr.mxu0 0.0
    %2426 = vmatpush1.msra.mxu0 0.0
    %2427 = vmatprep.subr.mxu0 0.0
    %2428 = vmatpush1.msra.mxu0 0.0
    %2429 = vmatprep.subr.mxu0 0.0
    %2430 = vmatpush1.msra.mxu0 0.0
    %2431 = vmatprep.subr.mxu0 0.0
    %2432 = vmatpush1.msra.mxu0 0.0
    %2433 = vmatprep.subr.mxu0 0.0
    %2434 = vmatpush1.msra.mxu0 0.0
    %2435 = vmatprep.subr.mxu0 0.0
    %2436 = vmatpush1.msra.mxu0 0.0
    %2437 = vmatprep.subr.mxu0 0.0
    %2438 = vmatpush1.msra.mxu0 0.0
    %2439 = vmatprep.subr.mxu0 0.0
    %2440 = vmatpush1.msra.mxu0 0.0
    %2441 = vmatprep.subr.mxu0 0.0
    %2442 = vmatpush1.msra.mxu0 %v1657
    %2443 = vmatprep.subr.mxu0 0.0
    %2444 = vmatpush1.msra.mxu0 %v1656
    %2445 = vmatprep.subr.mxu0 0.0
    %2446 = vmatpush2.msra.mxu0 0.0
    %2447 = vmatprep.subr.mxu0 0.0
    %2448 = vmatpush2.msra.mxu0 0.0
    %2449 = vmatprep.subr.mxu0 0.0
    %2450 = vmatpush2.msra.mxu0 0.0
    %2451 = vmatprep.subr.mxu0 0.0
    %2452 = vmatpush2.msra.mxu0 0.0
    %2453 = vmatprep.subr.mxu0 0.0
    %2454 = vmatpush2.msra.mxu0 0.0
    %2455 = vmatprep.subr.mxu0 0.0
    %2456 = vmatpush2.msra.mxu0 0.0
    %2457 = vmatprep.subr.mxu0 0.0
    %2458 = vmatpush2.msra.mxu0 0.0
    %2459 = vmatprep.subr.mxu0 0.0
    %2460 = vmatpush2.msra.mxu0 0.0
    %2461 = vmatprep.subr.mxu0 0.0
    %2462 = vmatpush2.msra.mxu0 0.0
    %2463 = vmatprep.subr.mxu0 0.0
    %2464 = vmatpush2.msra.mxu0 0.0
    %2465 = vmatprep.subr.mxu0 0.0
    %2466 = vmatpush2.msra.mxu0 0.0
    %2467 = vmatprep.subr.mxu0 0.0
    %2468 = vmatpush2.msra.mxu0 0.0
    %2469 = vmatprep.subr.mxu0 0.0
    %2470 = vmatpush2.msra.mxu0 0.0
    %2471 = vmatprep.subr.mxu0 0.0
    %2472 = vmatpush2.msra.mxu0 0.0
    %2473 = vmatprep.subr.mxu0 0.0
    %2474 = vmatpush2.msra.mxu0 0.0
    %2475 = vmatprep.subr.mxu0 0.0
    %2476 = vmatpush2.msra.mxu0 0.0
    %2477 = vmatprep.mubr.f32.mxu0 0.0
    %2478 = vmatmul.mubr.f32.gmra.mxu0 %v2408
    %v2479 = vpop.f32.mrf.mxu0
    %v2480 = vadd.f32 %v2399, %v2479
    %v2481 = vpop.f32.mrf.mxu0
    %2482 = vmatprep.mubr.f32.mxu0 0.0
    %2483 = vmatmul.mubr.f32.gmra.mxu0 %v2411
    %v2484 = vpop.f32.mrf.mxu0
    %v2485 = vadd.f32 %v2404, %v2484
    %v2486 = vpop.f32.mrf.mxu0
    %2487 = vdwg.mxu0
    %s2488 = scalar_lea.vmem [#allocation11], 1
    %v2489 = vld [vmem:[%s2488] sm:$0x1]
    %v2491 = vlaneseq
    %v2492 = vshrl.u32 %v2491, 7
    %v2493 = vsub.s32 0, %v2492
    %v2494 = vrot.slane %v2489, %v2493
    %v2496 = vadd.f32 %v2480, %v2494
    %v2497 = vadd.f32 %v2485, %v2494
    %v2498 = vadd.f32 %v1559, %v2496
    %v2499 = vadd.f32 %v1560, %v2497
    %s2500 = scalar_lea.vmem [#allocation13], 1
    %v2501 = vld [vmem:[%s2500] sm:$0x1]
    %s2502 = scalar_lea.vmem [#allocation14], 1
    %v2503 = vld [vmem:[%s2502] sm:$0x1]
    %v2504 = vsel %vm265, %v2498, 0.0
    %2505 = vadd.xlane.f32.xlu0 %v2504
    %v2506 = vpop.xlane.xlu0 %2505
    %v2507 = vsel %vm265, %v2499, 0.0
    %2508 = vadd.xlane.f32.xlu0 %v2507
    %v2509 = vpop.xlane.xlu0 %2508
    %v2510 = vmul.f32 %v2506, %v272
    %v2511 = vmul.f32 %v2509, %v272
    %v2512 = vsub.f32 %v2498, %v2510
    %v2513 = vsub.f32 %v2499, %v2511
    %v2514 = vmul.f32 %v2512, %v2512
    %v2515 = vmul.f32 %v2513, %v2513
    %v2516 = vsel %vm265, %v2514, 0.0
    %2517 = vadd.xlane.f32.xlu0 %v2516
    %v2518 = vpop.xlane.xlu0 %2517
    %v2519 = vsel %vm265, %v2515, 0.0
    %2520 = vadd.xlane.f32.xlu0 %v2519
    %v2521 = vpop.xlane.xlu0 %2520
    %v2522 = vmul.f32 %v2518, %v272
    %v2523 = vmul.f32 %v2521, %v272
    %v2524 = vadd.f32 %v2522, 1e-12
    %v2525 = vadd.f32 %v2523, 1e-12
    %v2526 = vrsqrt.pop %v2524
    %v2527 = vrsqrt.pop %v2525
    %v2528 = vmul.f32 %v2512, %v2526
    %v2529 = vmul.f32 %v2513, %v2527
    %v2531 = vlaneseq
    %v2532 = vshrl.u32 %v2531, 7
    %v2533 = vsub.s32 0, %v2532
    %v2534 = vrot.slane %v2501, %v2533
    %v2536 = vmul.f32 %v2528, %v2534
    %v2537 = vmul.f32 %v2529, %v2534
    %v2539 = vlaneseq
    %v2540 = vshrl.u32 %v2539, 7
    %v2541 = vsub.s32 0, %v2540
    %v2542 = vrot.slane %v2503, %v2541
    %v2544 = vadd.f32 %v2536, %v2542
    %v2545 = vadd.f32 %v2537, %v2542
    %s2546 = scalar_lea.vmem %s11, 32
    %v2547 = vld [vmem:[%s2546] sm:$0xff]
    %v2548 = vld [vmem:[%s2546 + $0x8] sm:$0xff]
    %v2549 = vld [vmem:[%s2546 + $0x10] sm:$0xff]
    %v2550 = vld [vmem:[%s2546 + $0x18] sm:$0xff]
    %s2551 = scalar_lea.vmem [#allocation16], 1
    %v2552 = vld [vmem:[%s2551] sm:$0x1]
    %v2554 = vlaneseq
    %v2555 = vshrl.u32 %v2554, 7
    %v2556 = vsub.s32 0, %v2555
    %v2557 = vrot.slane %v2552, %v2556
    %v2560 = vsel %vm265, %v2544, 0
    %v2563 = vsel %vm265, %v2545, 0
    %2565 = vmatprep.subr.mxu0 0.0
    %2566 = vmatpush1.msra.mxu0 0.0
    %2567 = vmatprep.subr.mxu0 0.0
    %2568 = vmatpush1.msra.mxu0 0.0
    %2569 = vmatprep.subr.mxu0 0.0
    %2570 = vmatpush1.msra.mxu0 0.0
    %2571 = vmatprep.subr.mxu0 0.0
    %2572 = vmatpush1.msra.mxu0 0.0
    %2573 = vmatprep.subr.mxu0 0.0
    %2574 = vmatpush1.msra.mxu0 0.0
    %2575 = vmatprep.subr.mxu0 0.0
    %2576 = vmatpush1.msra.mxu0 0.0
    %2577 = vmatprep.subr.mxu0 0.0
    %2578 = vmatpush1.msra.mxu0 0.0
    %2579 = vmatprep.subr.mxu0 0.0
    %2580 = vmatpush1.msra.mxu0 0.0
    %2581 = vmatprep.subr.mxu0 0.0
    %2582 = vmatpush1.msra.mxu0 0.0
    %2583 = vmatprep.subr.mxu0 0.0
    %2584 = vmatpush1.msra.mxu0 0.0
    %2585 = vmatprep.subr.mxu0 0.0
    %2586 = vmatpush1.msra.mxu0 0.0
    %2587 = vmatprep.subr.mxu0 0.0
    %2588 = vmatpush1.msra.mxu0 0.0
    %2589 = vmatprep.subr.mxu0 0.0
    %2590 = vmatpush1.msra.mxu0 %v2550
    %2591 = vmatprep.subr.mxu0 0.0
    %2592 = vmatpush1.msra.mxu0 %v2549
    %2593 = vmatprep.subr.mxu0 0.0
    %2594 = vmatpush1.msra.mxu0 %v2548
    %2595 = vmatprep.subr.mxu0 0.0
    %2596 = vmatpush1.msra.mxu0 %v2547
    %2597 = vmatprep.subr.mxu0 0.0
    %2598 = vmatpush2.msra.mxu0 0.0
    %2599 = vmatprep.subr.mxu0 0.0
    %2600 = vmatpush2.msra.mxu0 0.0
    %2601 = vmatprep.subr.mxu0 0.0
    %2602 = vmatpush2.msra.mxu0 0.0
    %2603 = vmatprep.subr.mxu0 0.0
    %2604 = vmatpush2.msra.mxu0 0.0
    %2605 = vmatprep.subr.mxu0 0.0
    %2606 = vmatpush2.msra.mxu0 0.0
    %2607 = vmatprep.subr.mxu0 0.0
    %2608 = vmatpush2.msra.mxu0 0.0
    %2609 = vmatprep.subr.mxu0 0.0
    %2610 = vmatpush2.msra.mxu0 0.0
    %2611 = vmatprep.subr.mxu0 0.0
    %2612 = vmatpush2.msra.mxu0 0.0
    %2613 = vmatprep.subr.mxu0 0.0
    %2614 = vmatpush2.msra.mxu0 0.0
    %2615 = vmatprep.subr.mxu0 0.0
    %2616 = vmatpush2.msra.mxu0 0.0
    %2617 = vmatprep.subr.mxu0 0.0
    %2618 = vmatpush2.msra.mxu0 0.0
    %2619 = vmatprep.subr.mxu0 0.0
    %2620 = vmatpush2.msra.mxu0 0.0
    %2621 = vmatprep.subr.mxu0 0.0
    %2622 = vmatpush2.msra.mxu0 0.0
    %2623 = vmatprep.subr.mxu0 0.0
    %2624 = vmatpush2.msra.mxu0 0.0
    %2625 = vmatprep.subr.mxu0 0.0
    %2626 = vmatpush2.msra.mxu0 0.0
    %2627 = vmatprep.subr.mxu0 0.0
    %2628 = vmatpush2.msra.mxu0 0.0
    %2629 = vmatprep.mubr.f32.mxu0 0.0
    %2630 = vmatmul.mubr.f32.gmra.mxu0 %v2560
    %v2631 = vpop.f32.mrf.mxu0
    %v2632 = vadd.f32 %v2557, %v2631
    %v2633 = vpop.f32.mrf.mxu0
    %2634 = vmatprep.mubr.f32.mxu0 0.0
    %2635 = vmatmul.mubr.f32.gmra.mxu0 %v2563
    %v2636 = vpop.f32.mrf.mxu0
    %v2637 = vadd.f32 %v2557, %v2636
    %v2638 = vpop.f32.mrf.mxu0
    %2639 = vdwg.mxu0
    %v2640 = vmul.f32 %v2632, 0.5
    %v2641 = vmul.f32 %v2637, 0.5
    %v2642 = vmul.f32 %v2632, 0.044715
    %v2643 = vmul.f32 %v2637, 0.044715
    %v2644 = vmul.f32 %v2642, %v2632
    %v2645 = vmul.f32 %v2643, %v2637
    %v2646 = vmul.f32 %v2644, %v2632
    %v2647 = vmul.f32 %v2645, %v2637
    %v2648 = vadd.f32 %v2632, %v2646
    %v2649 = vadd.f32 %v2637, %v2647
    %v2650 = vmul.f32 %v2648, 0.7978846
    %v2651 = vmul.f32 %v2649, 0.7978846
    %v2652 = vtanh.pop %v2650
    %v2653 = vtanh.pop %v2651
    %v2654 = vadd.f32 %v2652, 1.0
    %v2655 = vadd.f32 %v2653, 1.0
    %v2656 = vmul.f32 %v2640, %v2654
    %v2657 = vmul.f32 %v2641, %v2655
    %s2658 = scalar_lea.vmem %s13, 64
    %v2659 = vld [vmem:[%s2658] sm:$0xff]
    %v2660 = vld [vmem:[%s2658 + $0x8] sm:$0xff]
    %v2661 = vld [vmem:[%s2658 + $0x10] sm:$0xff]
    %v2662 = vld [vmem:[%s2658 + $0x18] sm:$0xff]
    %v2663 = vld [vmem:[%s2658 + $0x20] sm:$0xff]
    %v2664 = vld [vmem:[%s2658 + $0x28] sm:$0xff]
    %v2665 = vld [vmem:[%s2658 + $0x30] sm:$0xff]
    %v2666 = vld [vmem:[%s2658 + $0x38] sm:$0xff]
    %s2667 = scalar_lea.vmem [#allocation17], 1
    %v2668 = vld [vmem:[%s2667] sm:$0x1]
    %v2670 = vlaneseq
    %v2671 = vshrl.u32 %v2670, 7
    %v2672 = vsub.s32 0, %v2671
    %v2673 = vrot.slane %v2668, %v2672
    %v2676 = vsel %vm1433, %v2656, 0
    %v2679 = vsel %vm1433, %v2657, 0
    %2681 = vmatprep.subr.mxu0 0.0
    %2682 = vmatpush1.msra.mxu0 0.0
    %2683 = vmatprep.subr.mxu0 0.0
    %2684 = vmatpush1.msra.mxu0 0.0
    %2685 = vmatprep.subr.mxu0 0.0
    %2686 = vmatpush1.msra.mxu0 0.0
    %2687 = vmatprep.subr.mxu0 0.0
    %2688 = vmatpush1.msra.mxu0 0.0
    %2689 = vmatprep.subr.mxu0 0.0
    %2690 = vmatpush1.msra.mxu0 0.0
    %2691 = vmatprep.subr.mxu0 0.0
    %2692 = vmatpush1.msra.mxu0 0.0
    %2693 = vmatprep.subr.mxu0 0.0
    %2694 = vmatpush1.msra.mxu0 0.0
    %2695 = vmatprep.subr.mxu0 0.0
    %2696 = vmatpush1.msra.mxu0 0.0
    %2697 = vmatprep.subr.mxu0 0.0
    %2698 = vmatpush1.msra.mxu0 %v2666
    %2699 = vmatprep.subr.mxu0 0.0
    %2700 = vmatpush1.msra.mxu0 %v2665
    %2701 = vmatprep.subr.mxu0 0.0
    %2702 = vmatpush1.msra.mxu0 %v2664
    %2703 = vmatprep.subr.mxu0 0.0
    %2704 = vmatpush1.msra.mxu0 %v2663
    %2705 = vmatprep.subr.mxu0 0.0
    %2706 = vmatpush1.msra.mxu0 %v2662
    %2707 = vmatprep.subr.mxu0 0.0
    %2708 = vmatpush1.msra.mxu0 %v2661
    %2709 = vmatprep.subr.mxu0 0.0
    %2710 = vmatpush1.msra.mxu0 %v2660
    %2711 = vmatprep.subr.mxu0 0.0
    %2712 = vmatpush1.msra.mxu0 %v2659
    %2713 = vmatprep.subr.mxu0 0.0
    %2714 = vmatpush2.msra.mxu0 0.0
    %2715 = vmatprep.subr.mxu0 0.0
    %2716 = vmatpush2.msra.mxu0 0.0
    %2717 = vmatprep.subr.mxu0 0.0
    %2718 = vmatpush2.msra.mxu0 0.0
    %2719 = vmatprep.subr.mxu0 0.0
    %2720 = vmatpush2.msra.mxu0 0.0
    %2721 = vmatprep.subr.mxu0 0.0
    %2722 = vmatpush2.msra.mxu0 0.0
    %2723 = vmatprep.subr.mxu0 0.0
    %2724 = vmatpush2.msra.mxu0 0.0
    %2725 = vmatprep.subr.mxu0 0.0
    %2726 = vmatpush2.msra.mxu0 0.0
    %2727 = vmatprep.subr.mxu0 0.0
    %2728 = vmatpush2.msra.mxu0 0.0
    %2729 = vmatprep.subr.mxu0 0.0
    %2730 = vmatpush2.msra.mxu0 0.0
    %2731 = vmatprep.subr.mxu0 0.0
    %2732 = vmatpush2.msra.mxu0 0.0
    %2733 = vmatprep.subr.mxu0 0.0
    %2734 = vmatpush2.msra.mxu0 0.0
    %2735 = vmatprep.subr.mxu0 0.0
    %2736 = vmatpush2.msra.mxu0 0.0
    %2737 = vmatprep.subr.mxu0 0.0
    %2738 = vmatpush2.msra.mxu0 0.0
    %2739 = vmatprep.subr.mxu0 0.0
    %2740 = vmatpush2.msra.mxu0 0.0
    %2741 = vmatprep.subr.mxu0 0.0
    %2742 = vmatpush2.msra.mxu0 0.0
    %2743 = vmatprep.subr.mxu0 0.0
    %2744 = vmatpush2.msra.mxu0 0.0
    %2745 = vmatprep.mubr.f32.mxu0 0.0
    %2746 = vmatmul.mubr.f32.gmra.mxu0 %v2676
    %v2747 = vpop.f32.mrf.mxu0
    %v2748 = vadd.f32 %v2673, %v2747
    %v2749 = vpop.f32.mrf.mxu0
    %2750 = vmatprep.mubr.f32.mxu0 0.0
    %2751 = vmatmul.mubr.f32.gmra.mxu0 %v2679
    %v2752 = vpop.f32.mrf.mxu0
    %v2753 = vadd.f32 %v2673, %v2752
    %v2754 = vpop.f32.mrf.mxu0
    %2755 = vdwg.mxu0
    %v2756 = vadd.f32 %v2544, %v2748
    %v2757 = vadd.f32 %v2545, %v2753
    %s2758 = scalar_lea.vmem [#allocation19], 1
    %v2759 = vld [vmem:[%s2758] sm:$0x1]
    %s2760 = scalar_lea.vmem [#allocation20], 1
    %v2761 = vld [vmem:[%s2760] sm:$0x1]
    %v2762 = vsel %vm265, %v2756, 0.0
    %2763 = vadd.xlane.f32.xlu0 %v2762
    %v2764 = vpop.xlane.xlu0 %2763
    %v2765 = vsel %vm265, %v2757, 0.0
    %2766 = vadd.xlane.f32.xlu0 %v2765
    %v2767 = vpop.xlane.xlu0 %2766
    %v2768 = vmul.f32 %v2764, %v272
    %v2769 = vmul.f32 %v2767, %v272
    %v2770 = vsub.f32 %v2756, %v2768
    %v2771 = vsub.f32 %v2757, %v2769
    %v2772 = vmul.f32 %v2770, %v2770
    %v2773 = vmul.f32 %v2771, %v2771
    %v2774 = vsel %vm265, %v2772, 0.0
    %2775 = vadd.xlane.f32.xlu0 %v2774
    %v2776 = vpop.xlane.xlu0 %2775
    %v2777 = vsel %vm265, %v2773, 0.0
    %2778 = vadd.xlane.f32.xlu0 %v2777
    %v2779 = vpop.xlane.xlu0 %2778
    %v2780 = vmul.f32 %v2776, %v272
    %v2781 = vmul.f32 %v2779, %v272
    %v2782 = vadd.f32 %v2780, 1e-12
    %v2783 = vadd.f32 %v2781, 1e-12
    %v2784 = vrsqrt.pop %v2782
    %v2785 = vrsqrt.pop %v2783
    %v2786 = vmul.f32 %v2770, %v2784
    %v2787 = vmul.f32 %v2771, %v2785
    %v2789 = vlaneseq
    %v2790 = vshrl.u32 %v2789, 7
    %v2791 = vsub.s32 0, %v2790
    %v2792 = vrot.slane %v2759, %v2791
    %v2794 = vmul.f32 %v2786, %v2792
    %v2795 = vmul.f32 %v2787, %v2792
    %v2797 = vlaneseq
    %v2798 = vshrl.u32 %v2797, 7
    %v2799 = vsub.s32 0, %v2798
    %v2800 = vrot.slane %v2761, %v2799
    %v2802 = vadd.f32 %v2794, %v2800
    %v2803 = vadd.f32 %v2795, %v2800
    %v2804 = vlaneseq
    %v2805 = vand.u32 %v2804, 127
    %v2806 = vlaneseq
    %v2807 = vshrl.u32 %v2806, 7
    %v2808 = vmul.u32 %v2807, 8
    %vm2809 = vcmp.eq.s32.totalorder %v2805, %v2808
    %v2810 = vsel %vm2809, 1, 0
    %v2811 = vcvt.s32.f32 %v2810
    %v2813 = vsel %vm414, %v2811, 0
    %2815 = vmatprep.subr.mxu0 0.0
    %2816 = vmatpush1.msra.mxu0 0.0
    %2817 = vmatprep.subr.mxu0 0.0
    %2818 = vmatpush1.msra.mxu0 0.0
    %2819 = vmatprep.subr.mxu0 0.0
    %2820 = vmatpush1.msra.mxu0 0.0
    %2821 = vmatprep.subr.mxu0 0.0
    %2822 = vmatpush1.msra.mxu0 0.0
    %2823 = vmatprep.subr.mxu0 0.0
    %2824 = vmatpush1.msra.mxu0 0.0
    %2825 = vmatprep.subr.mxu0 0.0
    %2826 = vmatpush1.msra.mxu0 0.0
    %2827 = vmatprep.subr.mxu0 0.0
    %2828 = vmatpush1.msra.mxu0 0.0
    %2829 = vmatprep.subr.mxu0 0.0
    %2830 = vmatpush1.msra.mxu0 0.0
    %2831 = vmatprep.subr.mxu0 0.0
    %2832 = vmatpush1.msra.mxu0 0.0
    %2833 = vmatprep.subr.mxu0 0.0
    %2834 = vmatpush1.msra.mxu0 0.0
    %2835 = vmatprep.subr.mxu0 0.0
    %2836 = vmatpush1.msra.mxu0 0.0
    %2837 = vmatprep.subr.mxu0 0.0
    %2838 = vmatpush1.msra.mxu0 0.0
    %2839 = vmatprep.subr.mxu0 0.0
    %2840 = vmatpush1.msra.mxu0 0.0
    %2841 = vmatprep.subr.mxu0 0.0
    %2842 = vmatpush1.msra.mxu0 0.0
    %2843 = vmatprep.subr.mxu0 0.0
    %2844 = vmatpush1.msra.mxu0 %v2803
    %2845 = vmatprep.subr.mxu0 0.0
    %2846 = vmatpush1.msra.mxu0 %v2802
    %2847 = vmatprep.subr.mxu0 0.0
    %2848 = vmatpush2.msra.mxu0 0.0
    %2849 = vmatprep.subr.mxu0 0.0
    %2850 = vmatpush2.msra.mxu0 0.0
    %2851 = vmatprep.subr.mxu0 0.0
    %2852 = vmatpush2.msra.mxu0 0.0
    %2853 = vmatprep.subr.mxu0 0.0
    %2854 = vmatpush2.msra.mxu0 0.0
    %2855 = vmatprep.subr.mxu0 0.0
    %2856 = vmatpush2.msra.mxu0 0.0
    %2857 = vmatprep.subr.mxu0 0.0
    %2858 = vmatpush2.msra.mxu0 0.0
    %2859 = vmatprep.subr.mxu0 0.0
    %2860 = vmatpush2.msra.mxu0 0.0
    %2861 = vmatprep.subr.mxu0 0.0
    %2862 = vmatpush2.msra.mxu0 0.0
    %2863 = vmatprep.subr.mxu0 0.0
    %2864 = vmatpush2.msra.mxu0 0.0
    %2865 = vmatprep.subr.mxu0 0.0
    %2866 = vmatpush2.msra.mxu0 0.0
    %2867 = vmatprep.subr.mxu0 0.0
    %2868 = vmatpush2.msra.mxu0 0.0
    %2869 = vmatprep.subr.mxu0 0.0
    %2870 = vmatpush2.msra.mxu0 0.0
    %2871 = vmatprep.subr.mxu0 0.0
    %2872 = vmatpush2.msra.mxu0 0.0
    %2873 = vmatprep.subr.mxu0 0.0
    %2874 = vmatpush2.msra.mxu0 0.0
    %2875 = vmatprep.subr.mxu0 0.0
    %2876 = vmatpush2.msra.mxu0 0.0
    %2877 = vmatprep.subr.mxu0 0.0
    %2878 = vmatpush2.msra.mxu0 0.0
    %2879 = vmatprep.mubr.f32.mxu0 0.0
    %2880 = vmatmul.mubr.f32.gmra.mxu0 %v2813
    %v2881 = vpop.f32.mrf.mxu0
    %v2882 = vadd.f32 0.0, %v2881
    %v2883 = vpop.f32.mrf.mxu0
    %2884 = vdwg.mxu0
    %v2885 = vld [vmem:[#allocation5] sm:$0x3]
    %v2886 = vld [vmem:[#allocation22] sm:$0xff]
    %v2887 = vld [vmem:[#allocation22 + $0x8] sm:$0x3]
    %v2888 = vld [vmem:[#allocation23] sm:$0x1]
    %v2890 = vlaneseq
    %v2891 = vshrl.u32 %v2890, 7
    %v2892 = vsub.s32 0, %v2891
    %v2893 = vrot.slane %v2888, %v2892
    %vm2895 = vcmask 80896
    %v2897 = vsel %vm2895, %v2885, 0
    %vm2899 = vcmask 1041408
    %v2901 = vsel %vm2899, %v2887, 0
    %2903 = vmatprep.subr.mxu0 0.0
    %2904 = vmatpush1.msra.mxu0 0.0
    %2905 = vmatprep.subr.mxu0 0.0
    %2906 = vmatpush1.msra.mxu0 0.0
    %2907 = vmatprep.subr.mxu0 0.0
    %2908 = vmatpush1.msra.mxu0 0.0
    %2909 = vmatprep.subr.mxu0 0.0
    %2910 = vmatpush1.msra.mxu0 0.0
    %2911 = vmatprep.subr.mxu0 0.0
    %2912 = vmatpush1.msra.mxu0 0.0
    %2913 = vmatprep.subr.mxu0 0.0
    %2914 = vmatpush1.msra.mxu0 0.0
    %2915 = vmatprep.subr.mxu0 0.0
    %2916 = vmatpush1.msra.mxu0 0.0
    %2917 = vmatprep.subr.mxu0 0.0
    %2918 = vmatpush1.msra.mxu0 0.0
    %2919 = vmatprep.subr.mxu0 0.0
    %2920 = vmatpush1.msra.mxu0 0.0
    %2921 = vmatprep.subr.mxu0 0.0
    %2922 = vmatpush1.msra.mxu0 0.0
    %2923 = vmatprep.subr.mxu0 0.0
    %2924 = vmatpush1.msra.mxu0 0.0
    %2925 = vmatprep.subr.mxu0 0.0
    %2926 = vmatpush1.msra.mxu0 0.0
    %2927 = vmatprep.subr.mxu0 0.0
    %2928 = vmatpush1.msra.mxu0 0.0
    %2929 = vmatprep.subr.mxu0 0.0
    %2930 = vmatpush1.msra.mxu0 0.0
    %2931 = vmatprep.subr.mxu0 0.0
    %2932 = vmatpush1.msra.mxu0 %v2901
    %2933 = vmatprep.subr.mxu0 0.0
    %2934 = vmatpush1.msra.mxu0 %v2886
    %2935 = vmatprep.subr.mxu0 0.0
    %2936 = vmatpush2.msra.mxu0 0.0
    %2937 = vmatprep.subr.mxu0 0.0
    %2938 = vmatpush2.msra.mxu0 0.0
    %2939 = vmatprep.subr.mxu0 0.0
    %2940 = vmatpush2.msra.mxu0 0.0
    %2941 = vmatprep.subr.mxu0 0.0
    %2942 = vmatpush2.msra.mxu0 0.0
    %2943 = vmatprep.subr.mxu0 0.0
    %2944 = vmatpush2.msra.mxu0 0.0
    %2945 = vmatprep.subr.mxu0 0.0
    %2946 = vmatpush2.msra.mxu0 0.0
    %2947 = vmatprep.subr.mxu0 0.0
    %2948 = vmatpush2.msra.mxu0 0.0
    %2949 = vmatprep.subr.mxu0 0.0
    %2950 = vmatpush2.msra.mxu0 0.0
    %2951 = vmatprep.subr.mxu0 0.0
    %2952 = vmatpush2.msra.mxu0 0.0
    %2953 = vmatprep.subr.mxu0 0.0
    %2954 = vmatpush2.msra.mxu0 0.0
    %2955 = vmatprep.subr.mxu0 0.0
    %2956 = vmatpush2.msra.mxu0 0.0
    %2957 = vmatprep.subr.mxu0 0.0
    %2958 = vmatpush2.msra.mxu0 0.0
    %2959 = vmatprep.subr.mxu0 0.0
    %2960 = vmatpush2.msra.mxu0 0.0
    %2961 = vmatprep.subr.mxu0 0.0
    %2962 = vmatpush2.msra.mxu0 0.0
    %2963 = vmatprep.subr.mxu0 0.0
    %2964 = vmatpush2.msra.mxu0 0.0
    %2965 = vmatprep.subr.mxu0 0.0
    %2966 = vmatpush2.msra.mxu0 0.0
    %2967 = vmatprep.mubr.f32.mxu0 0.0
    %2968 = vmatmul.mubr.f32.gmra.mxu0 %v2897
    %v2969 = vpop.f32.mrf.mxu0
    %v2970 = vadd.f32 %v2893, %v2969
    %v2971 = vpop.f32.mrf.mxu0
    %2972 = vdwg.mxu0
    %v2973 = vmax.f32 %v2970, 0.0
    %v2974 = vld [vmem:[%s19] sm:$0xff]
    %v2975 = vld [vmem:[%s19 + $0x8] sm:$0xff]
    %v2976 = vld [vmem:[%s19 + $0x10] sm:$0xff]
    %v2977 = vld [vmem:[%s19 + $0x18] sm:$0xff]
    %v2978 = vld [vmem:[%s19 + $0x20] sm:$0xff]
    %v2979 = vld [vmem:[%s19 + $0x28] sm:$0xff]
    %v2980 = vld [vmem:[%s19 + $0x30] sm:$0x3]
    %v2981 = vld [vmem:[%s20] sm:$0x1]
    %v2983 = vlaneseq
    %v2984 = vshrl.u32 %v2983, 7
    %v2985 = vsub.s32 0, %v2984
    %v2986 = vrot.slane %v2981, %v2985
    %vm2988 = vcmask 408576
    %v2990 = vsel %vm2988, %v2973, 0
    %v2993 = vsel %vm2899, %v2980, 0
    %2995 = vmatprep.subr.mxu0 0.0
    %2996 = vmatpush1.msra.mxu0 0.0
    %2997 = vmatprep.subr.mxu0 0.0
    %2998 = vmatpush1.msra.mxu0 0.0
    %2999 = vmatprep.subr.mxu0 0.0
    %3000 = vmatpush1.msra.mxu0 0.0
    %3001 = vmatprep.subr.mxu0 0.0
    %3002 = vmatpush1.msra.mxu0 0.0
    %3003 = vmatprep.subr.mxu0 0.0
    %3004 = vmatpush1.msra.mxu0 0.0
    %3005 = vmatprep.subr.mxu0 0.0
    %3006 = vmatpush1.msra.mxu0 0.0
    %3007 = vmatprep.subr.mxu0 0.0
    %3008 = vmatpush1.msra.mxu0 0.0
    %3009 = vmatprep.subr.mxu0 0.0
    %3010 = vmatpush1.msra.mxu0 0.0
    %3011 = vmatprep.subr.mxu0 0.0
    %3012 = vmatpush1.msra.mxu0 0.0
    %3013 = vmatprep.subr.mxu0 0.0
    %3014 = vmatpush1.msra.mxu0 %v2993
    %3015 = vmatprep.subr.mxu0 0.0
    %3016 = vmatpush1.msra.mxu0 %v2979
    %3017 = vmatprep.subr.mxu0 0.0
    %3018 = vmatpush1.msra.mxu0 %v2978
    %3019 = vmatprep.subr.mxu0 0.0
    %3020 = vmatpush1.msra.mxu0 %v2977
    %3021 = vmatprep.subr.mxu0 0.0
    %3022 = vmatpush1.msra.mxu0 %v2976
    %3023 = vmatprep.subr.mxu0 0.0
    %3024 = vmatpush1.msra.mxu0 %v2975
    %3025 = vmatprep.subr.mxu0 0.0
    %3026 = vmatpush1.msra.mxu0 %v2974
    %3027 = vmatprep.subr.mxu0 0.0
    %3028 = vmatpush2.msra.mxu0 0.0
    %3029 = vmatprep.subr.mxu0 0.0
    %3030 = vmatpush2.msra.mxu0 0.0
    %3031 = vmatprep.subr.mxu0 0.0
    %3032 = vmatpush2.msra.mxu0 0.0
    %3033 = vmatprep.subr.mxu0 0.0
    %3034 = vmatpush2.msra.mxu0 0.0
    %3035 = vmatprep.subr.mxu0 0.0
    %3036 = vmatpush2.msra.mxu0 0.0
    %3037 = vmatprep.subr.mxu0 0.0
    %3038 = vmatpush2.msra.mxu0 0.0
    %3039 = vmatprep.subr.mxu0 0.0
    %3040 = vmatpush2.msra.mxu0 0.0
    %3041 = vmatprep.subr.mxu0 0.0
    %3042 = vmatpush2.msra.mxu0 0.0
    %3043 = vmatprep.subr.mxu0 0.0
    %3044 = vmatpush2.msra.mxu0 0.0
    %3045 = vmatprep.subr.mxu0 0.0
    %3046 = vmatpush2.msra.mxu0 0.0
    %3047 = vmatprep.subr.mxu0 0.0
    %3048 = vmatpush2.msra.mxu0 0.0
    %3049 = vmatprep.subr.mxu0 0.0
    %3050 = vmatpush2.msra.mxu0 0.0
    %3051 = vmatprep.subr.mxu0 0.0
    %3052 = vmatpush2.msra.mxu0 0.0
    %3053 = vmatprep.subr.mxu0 0.0
    %3054 = vmatpush2.msra.mxu0 0.0
    %3055 = vmatprep.subr.mxu0 0.0
    %3056 = vmatpush2.msra.mxu0 0.0
    %3057 = vmatprep.subr.mxu0 0.0
    %3058 = vmatpush2.msra.mxu0 0.0
    %3059 = vmatprep.mubr.f32.mxu0 0.0
    %3060 = vmatmul.mubr.f32.gmra.mxu0 %v2990
    %v3061 = vpop.f32.mrf.mxu0
    %v3062 = vadd.f32 %v2986, %v3061
    %v3063 = vpop.f32.mrf.mxu0
    %3064 = vdwg.mxu0
    %v3065 = vld [vmem:[%s21] sm:$0xff]
    %v3066 = vld [vmem:[%s21 + $0x8] sm:$0xff]
    %v3067 = vld [vmem:[%s21 + $0x10] sm:$0xff]
    %v3068 = vld [vmem:[%s21 + $0x18] sm:$0xff]
    %v3069 = vld [vmem:[%s22] sm:$0xff]
    %v3070 = vld [vmem:[%s22 + $0x8] sm:$0xff]
    %v3071 = vld [vmem:[%s22 + $0x10] sm:$0xff]
    %v3072 = vld [vmem:[%s22 + $0x18] sm:$0xff]
    %v3073 = vld [vmem:[%s22 + $0x20] sm:$0xff]
    %v3074 = vld [vmem:[%s22 + $0x28] sm:$0xff]
    %v3075 = vld [vmem:[%s22 + $0x30] sm:$0x3]
    %v3077 = vsel %vm2988, %v3062, 0
    %v3080 = vsel %vm2899, %v3075, 0
    %3082 = vmatprep.subr.mxu0 0.0
    %3083 = vmatpush1.msra.mxu0 0.0
    %3084 = vmatprep.subr.mxu0 0.0
    %3085 = vmatpush1.msra.mxu0 0.0
    %3086 = vmatprep.subr.mxu0 0.0
    %3087 = vmatpush1.msra.mxu0 0.0
    %3088 = vmatprep.subr.mxu0 0.0
    %3089 = vmatpush1.msra.mxu0 0.0
    %3090 = vmatprep.subr.mxu0 0.0
    %3091 = vmatpush1.msra.mxu0 0.0
    %3092 = vmatprep.subr.mxu0 0.0
    %3093 = vmatpush1.msra.mxu0 0.0
    %3094 = vmatprep.subr.mxu0 0.0
    %3095 = vmatpush1.msra.mxu0 0.0
    %3096 = vmatprep.subr.mxu0 0.0
    %3097 = vmatpush1.msra.mxu0 0.0
    %3098 = vmatprep.subr.mxu0 0.0
    %3099 = vmatpush1.msra.mxu0 0.0
    %3100 = vmatprep.subr.mxu0 0.0
    %3101 = vmatpush1.msra.mxu0 %v3080
    %3102 = vmatprep.subr.mxu0 0.0
    %3103 = vmatpush1.msra.mxu0 %v3074
    %3104 = vmatprep.subr.mxu0 0.0
    %3105 = vmatpush1.msra.mxu0 %v3073
    %3106 = vmatprep.subr.mxu0 0.0
    %3107 = vmatpush1.msra.mxu0 %v3072
    %3108 = vmatprep.subr.mxu0 0.0
    %3109 = vmatpush1.msra.mxu0 %v3071
    %3110 = vmatprep.subr.mxu0 0.0
    %3111 = vmatpush1.msra.mxu0 %v3070
    %3112 = vmatprep.subr.mxu0 0.0
    %3113 = vmatpush1.msra.mxu0 %v3069
    %3114 = vmatprep.subr.mxu0 0.0
    %3115 = vmatpush2.msra.mxu0 0.0
    %3116 = vmatprep.subr.mxu0 0.0
    %3117 = vmatpush2.msra.mxu0 0.0
    %3118 = vmatprep.subr.mxu0 0.0
    %3119 = vmatpush2.msra.mxu0 0.0
    %3120 = vmatprep.subr.mxu0 0.0
    %3121 = vmatpush2.msra.mxu0 0.0
    %3122 = vmatprep.subr.mxu0 0.0
    %3123 = vmatpush2.msra.mxu0 0.0
    %3124 = vmatprep.subr.mxu0 0.0
    %3125 = vmatpush2.msra.mxu0 0.0
    %3126 = vmatprep.subr.mxu0 0.0
    %3127 = vmatpush2.msra.mxu0 0.0
    %3128 = vmatprep.subr.mxu0 0.0
    %3129 = vmatpush2.msra.mxu0 0.0
    %3130 = vmatprep.subr.mxu0 0.0
    %3131 = vmatpush2.msra.mxu0 0.0
    %3132 = vmatprep.subr.mxu0 0.0
    %3133 = vmatpush2.msra.mxu0 0.0
    %3134 = vmatprep.subr.mxu0 0.0
    %3135 = vmatpush2.msra.mxu0 0.0
    %3136 = vmatprep.subr.mxu0 0.0
    %3137 = vmatpush2.msra.mxu0 0.0
    %3138 = vmatprep.subr.mxu0 0.0
    %3139 = vmatpush2.msra.mxu0 0.0
    %3140 = vmatprep.subr.mxu0 0.0
    %3141 = vmatpush2.msra.mxu0 0.0
    %3142 = vmatprep.subr.mxu0 0.0
    %3143 = vmatpush2.msra.mxu0 0.0
    %3144 = vmatprep.subr.mxu0 0.0
    %3145 = vmatpush2.msra.mxu0 0.0
    %3146 = vmatprep.mubr.f32.mxu0 0.0
    %3147 = vmatmul.mubr.f32.gmra.mxu0 %v3077
    %v3148 = vpop.f32.mrf.mxu0
    %v3149 = vadd.f32 0.0, %v3148
    %v3150 = vpop.f32.mrf.mxu0
    %3151 = vdwg.mxu0
    %v3153 = vsel %vm265, %v2882, 0
    %3155 = vmatprep.subr.mxu0 0.0
    %3156 = vmatpush1.msra.mxu0 0.0
    %3157 = vmatprep.subr.mxu0 0.0
    %3158 = vmatpush1.msra.mxu0 0.0
    %3159 = vmatprep.subr.mxu0 0.0
    %3160 = vmatpush1.msra.mxu0 0.0
    %3161 = vmatprep.subr.mxu0 0.0
    %3162 = vmatpush1.msra.mxu0 0.0
    %3163 = vmatprep.subr.mxu0 0.0
    %3164 = vmatpush1.msra.mxu0 0.0
    %3165 = vmatprep.subr.mxu0 0.0
    %3166 = vmatpush1.msra.mxu0 0.0
    %3167 = vmatprep.subr.mxu0 0.0
    %3168 = vmatpush1.msra.mxu0 0.0
    %3169 = vmatprep.subr.mxu0 0.0
    %3170 = vmatpush1.msra.mxu0 0.0
    %3171 = vmatprep.subr.mxu0 0.0
    %3172 = vmatpush1.msra.mxu0 0.0
    %3173 = vmatprep.subr.mxu0 0.0
    %3174 = vmatpush1.msra.mxu0 0.0
    %3175 = vmatprep.subr.mxu0 0.0
    %3176 = vmatpush1.msra.mxu0 0.0
    %3177 = vmatprep.subr.mxu0 0.0
    %3178 = vmatpush1.msra.mxu0 0.0
    %3179 = vmatprep.subr.mxu0 0.0
    %3180 = vmatpush1.msra.mxu0 %v3068
    %3181 = vmatprep.subr.mxu0 0.0
    %3182 = vmatpush1.msra.mxu0 %v3067
    %3183 = vmatprep.subr.mxu0 0.0
    %3184 = vmatpush1.msra.mxu0 %v3066
    %3185 = vmatprep.subr.mxu0 0.0
    %3186 = vmatpush1.msra.mxu0 %v3065
    %3187 = vmatprep.subr.mxu0 0.0
    %3188 = vmatpush2.msra.mxu0 0.0
    %3189 = vmatprep.subr.mxu0 0.0
    %3190 = vmatpush2.msra.mxu0 0.0
    %3191 = vmatprep.subr.mxu0 0.0
    %3192 = vmatpush2.msra.mxu0 0.0
    %3193 = vmatprep.subr.mxu0 0.0
    %3194 = vmatpush2.msra.mxu0 0.0
    %3195 = vmatprep.subr.mxu0 0.0
    %3196 = vmatpush2.msra.mxu0 0.0
    %3197 = vmatprep.subr.mxu0 0.0
    %3198 = vmatpush2.msra.mxu0 0.0
    %3199 = vmatprep.subr.mxu0 0.0
    %3200 = vmatpush2.msra.mxu0 0.0
    %3201 = vmatprep.subr.mxu0 0.0
    %3202 = vmatpush2.msra.mxu0 0.0
    %3203 = vmatprep.subr.mxu0 0.0
    %3204 = vmatpush2.msra.mxu0 0.0
    %3205 = vmatprep.subr.mxu0 0.0
    %3206 = vmatpush2.msra.mxu0 0.0
    %3207 = vmatprep.subr.mxu0 0.0
    %3208 = vmatpush2.msra.mxu0 0.0
    %3209 = vmatprep.subr.mxu0 0.0
    %3210 = vmatpush2.msra.mxu0 0.0
    %3211 = vmatprep.subr.mxu0 0.0
    %3212 = vmatpush2.msra.mxu0 0.0
    %3213 = vmatprep.subr.mxu0 0.0
    %3214 = vmatpush2.msra.mxu0 0.0
    %3215 = vmatprep.subr.mxu0 0.0
    %3216 = vmatpush2.msra.mxu0 0.0
    %3217 = vmatprep.subr.mxu0 0.0
    %3218 = vmatpush2.msra.mxu0 0.0
    %3219 = vmatprep.mubr.f32.mxu0 0.0
    %3220 = vmatmul.mubr.f32.gmra.mxu0 %v3153
    %v3221 = vpop.f32.mrf.mxu0
    %v3222 = vadd.f32 %v3149, %v3221
    %v3223 = vpop.f32.mrf.mxu0
    %3224 = vdwg.mxu0
    %v3225 = vld [vmem:[#allocation2] sm:$0x1]
    %v3227 = vlaneseq
    %v3228 = vshrl.u32 %v3227, 7
    %v3229 = vsub.s32 0, %v3228
    %v3230 = vrot.slane %v3225, %v3229
    %v3232 = vadd.f32 %v3222, %v3230
    %vm3233 = vcmask 1024
    %3234 = vst.msk [vmem:[%s24] sm:$0x3] %vm3233, %v3232
    // Predicated region
    $region154: #{tpu_custom_call.1} parent=1 // pred_check
      _
    $region155: #{tpu_custom_call.1} parent=1 // pred_check_branch
      %3236 = sbr.rel (0) target = $region157
    $region156: #{tpu_custom_call.1} parent=1 // pred_region
      _
    $region157: #{tpu_custom_call.1} parent=1 // pred_fallthru
      _
    // Predicated region
    $region158: #{tpu_custom_call.1} parent=1 // pred_check
      _
    $region159: #{tpu_custom_call.1} parent=1 // pred_check_branch
      %3238 = sbr.rel (0) target = $region161
    $region160: #{tpu_custom_call.1} parent=1 // pred_region
      _
    $region161: #{tpu_custom_call.1} parent=1 // pred_fallthru
      _
    %3239 = vsyncpa [#allocation4], 1
    %3240 = vsyncpa [#allocation6], 1
    %3241 = vsyncpa [#allocation9], 1
    %3242 = vsyncpa [#allocation12], 1
    %3243 = vsyncpa [#allocation15], 1
    %3244 = vsyncpa [#allocation18], 1
    %3245 = vsyncpa [#allocation21], 1
    %3246 = vsyncpa [#allocation24], 1

</llo_original>
